<compile_context>
chip_gen: v6e
topology: v6e:2x2x1
jax: 0.10.0
libtpu: 0.0.40
codegen_flags: <defaults>
</compile_context>

<pallas_src>
import functools
import math

import jax
import jax.numpy as jnp
from jax import lax
from jax.experimental import pallas as pl
from jax.experimental.pallas import tpu as pltpu

NUM_HEADS = 4


def cross_attention_kernel(
    hs_ref, ehs_ref, bias_ref,
    wq_ref, bq_ref, wk_ref, bk_ref, wv_ref, bv_ref,
    wo_ref, bo_ref, wg_hs_ref, wg_ctx_ref, bg_ref, gamma_ref, beta_ref,
    out_ref,
    *, hidden_size, layer_norm_eps):
  """One (batch element, query tile) step of the fused cross-attention block."""
  H = hidden_size
  NH = NUM_HEADS
  dq = (H // NH) // NH            # per-head q/k dim (query/key proj width is H/4)
  dv = H // NH                    # per-head v dim
  f32 = jnp.float32
  cdt = hs_ref.dtype              # compute dtype for MXU operands (bf16 or f32)

  hs = hs_ref[...]                # (tq, H)
  ehs = ehs_ref[...]              # (lk, H)
  bias = bias_ref[...].astype(f32)   # (tq, lk), precomputed -10000*(1-mask)

  # Projections (MXU, f32 accumulation). 1/sqrt(dq) is folded into Wq/bq by the wrapper.
  q = jnp.dot(hs, wq_ref[...], preferred_element_type=f32) + bq_ref[...]    # (tq, H/4)
  k = jnp.dot(ehs, wk_ref[...], preferred_element_type=f32) + bk_ref[...]   # (lk, H/4)
  v = jnp.dot(ehs, wv_ref[...], preferred_element_type=f32) + bv_ref[...]   # (lk, H)

  # Split heads out of the feature dim into a leading batch dim (static lane slices;
  # no block-diagonal packing, no mask multiplies, no replicated concats).
  qh = jnp.stack([q[:, h * dq:(h + 1) * dq] for h in range(NH)], axis=0).astype(cdt)
  kh = jnp.stack([k[:, h * dq:(h + 1) * dq] for h in range(NH)], axis=0).astype(cdt)
  vh = jnp.stack([v[:, h * dv:(h + 1) * dv] for h in range(NH)], axis=0).astype(cdt)

  # All heads' QK^T in one batched MXU op (same pattern as the flash-attention kernel).
  s = jnp.einsum('hqd,hkd->hqk', qh, kh, preferred_element_type=f32)        # (NH, tq, lk)
  s = s + bias[None]

  # Per-head softmax in f32: exact per-head max (no cross-head underflow risk), exact
  # segmented row-sum, exact reciprocal (review correctness notes).
  m = jnp.max(s, axis=-1, keepdims=True)
  e = jnp.exp(s - m)
  denom = jnp.sum(e, axis=-1, keepdims=True)
  p = e * pl.reciprocal(denom, approx=False)
  # NOTE: attention-prob dropout is identity in eval mode.

  # All heads' P@V in one batched MXU op, then concat heads back into the feature dim.
  ctx_h = jnp.einsum('hqk,hkd->hqd', p.astype(cdt), vh, preferred_element_type=f32)
  context = jnp.concatenate([ctx_h[h] for h in range(NH)], axis=-1)         # (tq, H)

  # Output projection (Dropout inside Output is identity at eval).
  context = (jnp.dot(context.astype(cdt), wo_ref[...], preferred_element_type=f32)
             + bo_ref[...])

  # Gate: sigmoid([hs, context] @ Wg + bg) == hs @ Wg_hs + context @ Wg_ctx + bg.
  gate = jax.nn.sigmoid(
      jnp.dot(hs, wg_hs_ref[...], preferred_element_type=f32)
      + jnp.dot(context.astype(cdt), wg_ctx_ref[...], preferred_element_type=f32)
      + bg_ref[...])

  mixed = gate * context + (1.0 - gate) * hs.astype(f32)

  # LayerNorm over the last dim, kept in f32 (eps=1e-12 is below bf16 resolution).
  mean = jnp.mean(mixed, axis=-1, keepdims=True)
  var = jnp.mean(jnp.square(mixed - mean), axis=-1, keepdims=True)
  normed = (mixed - mean) * lax.rsqrt(var + layer_norm_eps)
  out_ref[...] = (normed * gamma_ref[...] + beta_ref[...]).astype(out_ref.dtype)


def cross_attention(hidden_states, encoder_hidden_states, cross_struct_mask, params,
                    *, layer_norm_eps=1e-12, compute_dtype=jnp.bfloat16,
                    q_block=None, single_buffer_weights=True, vmem_limit_bytes=None):
  B, Lq, H = hidden_states.shape
  Lk = encoder_hidden_states.shape[1]
  assert H % (NUM_HEADS * NUM_HEADS) == 0, "hidden_size must be divisible by 16"
  dq = (H // NUM_HEADS) // NUM_HEADS
  f32 = jnp.float32
  cdt = compute_dtype

  # Query-length tiling: keeps the per-step working set inside v7x's 64 MiB VMEM at
  # production shapes and gives the pipeline several steps to hide DMA.
  if q_block is None:
    q_block = Lq if Lq <= 256 else 256
  tq = q_block
  assert Lq % tq == 0, "Lq must be divisible by q_block"
  assert tq == Lq or tq % 8 == 0, "q_block must be sublane-aligned"
  n_qt = Lq // tq
  # TODO(synk): when n_qt > 1 the K/V projections are recomputed per query tile; hoist
  # them into a separate projection kernel (or keep K/V resident) for very long Lq.
  # TODO(synk): for H < 128 a lane-dense (B, Lq*H) output layout would avoid masked
  # partial stores; skipped here to keep the (8,128) block constraints trivially satisfied.

  (wq, bq, wk, bk, wv, bv, wo, bo, wg, bg, gamma, beta) = params
  scale = 1.0 / math.sqrt(dq)

  # bf16 operands for every MXU matmul (halves HBM traffic / VMEM footprint); biases,
  # LayerNorm params and all statistics stay f32.
  hs_c = hidden_states.astype(cdt)
  ehs_c = encoder_hidden_states.astype(cdt)
  # Precompute the additive mask bias once (also shrinks the streamed mask bytes when
  # compute_dtype is bf16) and fold 1/sqrt(dq) into the query projection.
  attn_bias = ((1.0 - cross_struct_mask) * -10000.0).astype(cdt)
  wq_c = (wq * scale).astype(cdt)
  bq_s = (bq * scale).astype(f32)
  wk_c = wk.astype(cdt)
  wv_c = wv.astype(cdt)
  wo_c = wo.astype(cdt)
  # Split the (2H, H) gate weight in the wrapper so the kernel never slices a loaded tensor.
  wg_hs_c = wg[:H, :].astype(cdt)
  wg_ctx_c = wg[H:, :].astype(cdt)

  if vmem_limit_bytes is None:
    cbytes = jnp.dtype(cdt).itemsize
    weight_bytes = (2 * H * (H // 4) + 3 * H * H) * cbytes + 8 * H * 4
    block_bytes = (tq * H + Lk * H + tq * Lk) * cbytes + tq * H * 4
    interm_bytes = (3 * NUM_HEADS * tq * Lk + 8 * tq * H + 2 * Lk * H) * 4
    vmem_limit_bytes = int(min(48 * 2**20,
                               max(8 * 2**20,
                                   weight_bytes + 4 * block_bytes + interm_bytes)))

  kernel = functools.partial(cross_attention_kernel, hidden_size=H,
                             layer_norm_eps=layer_norm_eps)

  def build_call(buffer_weights_once):
    w_kwargs = {}
    if buffer_weights_once:
      # Constant-index weight/bias blocks: single-buffer them — no pipelining benefit,
      # and double-buffered weights would eat a large slice of v7x's 64 MiB VMEM.
      w_kwargs = dict(pipeline_mode=pl.Buffered(1))

    def w_spec(shape):
      nd = len(shape)
      return pl.BlockSpec(shape, lambda b, i, _nd=nd: (0,) * _nd, **w_kwargs)

    in_specs = [
        pl.BlockSpec((None, tq, H), lambda b, i: (b, i, 0)),    # hidden_states tile
        pl.BlockSpec((None, Lk, H), lambda b, i: (b, 0, 0)),    # encoder_hidden_states
        pl.BlockSpec((None, tq, Lk), lambda b, i: (b, i, 0)),   # additive attention bias
        w_spec((H, H // 4)), w_spec((1, H // 4)),               # Wq (pre-scaled), bq
        w_spec((H, H // 4)), w_spec((1, H // 4)),               # Wk, bk
        w_spec((H, H)), w_spec((1, H)),                         # Wv, bv
        w_spec((H, H)), w_spec((1, H)),                         # Wo, bo
        w_spec((H, H)), w_spec((H, H)), w_spec((1, H)),         # Wg_hs, Wg_ctx, bg
        w_spec((1, H)), w_spec((1, H)),                         # LN gamma, beta
    ]
    out_spec = pl.BlockSpec((None, tq, H), lambda b, i: (b, i, 0))

    return pl.pallas_call(
        kernel,
        out_shape=jax.ShapeDtypeStruct((B, Lq, H), hidden_states.dtype),
        grid_spec=pltpu.PrefetchScalarGridSpec(
            num_scalar_prefetch=0, grid=(B, n_qt),
            in_specs=in_specs, out_specs=out_spec),
        compiler_params=pltpu.CompilerParams(
            dimension_semantics=("parallel", "parallel"),
            vmem_limit_bytes=vmem_limit_bytes),
    )

  args = (hs_c, ehs_c, attn_bias, wq_c, bq_s, wk_c, bk, wv_c, bv,
          wo_c, bo, wg_hs_c, wg_ctx_c, bg, gamma, beta)

  if single_buffer_weights:
    try:
      return build_call(True)(*args)
    except Exception:
      pass  # fall back to default (double-buffered) weight blocks
  return build_call(False)(*args)


def init_params(key, H):
  ks = jax.random.split(key, 5)
  s = 0.05
  wq = s * jax.random.normal(ks[0], (H, H // 4), jnp.float32)
  bq = jnp.zeros((1, H // 4), jnp.float32)
  wk = s * jax.random.normal(ks[1], (H, H // 4), jnp.float32)
  bk = jnp.zeros((1, H // 4), jnp.float32)
  wv = s * jax.random.normal(ks[2], (H, H), jnp.float32)
  bv = jnp.zeros((1, H), jnp.float32)
  wo = s * jax.random.normal(ks[3], (H, H), jnp.float32)
  bo = jnp.zeros((1, H), jnp.float32)
  wg = s * jax.random.normal(ks[4], (2 * H, H), jnp.float32)
  bg = jnp.full((1, H), -1.0, jnp.float32)      # Gate bias fill_(-1.0)
  gamma = jnp.ones((1, H), jnp.float32)
  beta = jnp.zeros((1, H), jnp.float32)
  return (wq, bq, wk, bk, wv, bv, wo, bo, wg, bg, gamma, beta)


def reference(hs, ehs, mask, params, eps):
  (wq, bq, wk, bk, wv, bv, wo, bo, wg, bg, gamma, beta) = params
  B, Lq, H = hs.shape
  dq = (H // NUM_HEADS) // NUM_HEADS
  dv = H // NUM_HEADS

  def split(x, d):
    b, l, _ = x.shape
    return x.reshape(b, l, NUM_HEADS, d).transpose(0, 2, 1, 3)

  q = split(hs @ wq + bq[0], dq)
  k = split(ehs @ wk + bk[0], dq)
  v = split(ehs @ wv + bv[0], dv)
  scores = jnp.einsum('bhqd,bhkd->bhqk', q, k) / math.sqrt(dq)
  scores = scores + ((1.0 - mask) * -10000.0)[:, None, :, :]
  probs = jax.nn.softmax(scores, axis=-1)
  ctx = jnp.einsum('bhqk,bhkd->bhqd', probs, v).transpose(0, 2, 1, 3).reshape(B, Lq, H)
  ctx = ctx @ wo + bo[0]
  gate = jax.nn.sigmoid(jnp.concatenate([hs, ctx], -1) @ wg + bg[0])
  mixed = gate * ctx + (1.0 - gate) * hs
  mean = mixed.mean(-1, keepdims=True)
  var = ((mixed - mean) ** 2).mean(-1, keepdims=True)
  return (mixed - mean) / jnp.sqrt(var + eps) * gamma[0] + beta[0]


if __name__ == "__main__":
  B, Lq, Lk, H = 2, 8, 8, 32   # config.hidden_size = 32
  eps = 1e-12

  key = jax.random.PRNGKey(0)
  k_hs, k_ehs, k_mask, k_params = jax.random.split(key, 4)

  hidden_states = jax.random.normal(k_hs, (B, Lq, H), jnp.float32)
  encoder_hidden_states = jax.random.normal(k_ehs, (B, Lk, H), jnp.float32)
  cross_struct_mask = (jax.random.uniform(k_mask, (B, Lq, Lk)) > 0.3).astype(jnp.float32)
  params = init_params(k_params, H)

  ref = reference(hidden_states, encoder_hidden_states, cross_struct_mask, params, eps)

  # f32 compute path: validates the kernel math against the pure-JAX reference.
  out_f32 = cross_attention(hidden_states, encoder_hidden_states, cross_struct_mask,
                            params, layer_norm_eps=eps, compute_dtype=jnp.float32)
  out_f32 = jax.block_until_ready(out_f32)
  assert out_f32.shape == (B, Lq, H)
  assert jnp.max(jnp.abs(out_f32 - ref)) < 1e-2, "mismatch (f32) vs. reference"

  # bf16 compute path (production configuration: bf16 MXU operands, f32 stats).
  out_bf16 = cross_attention(hidden_states, encoder_hidden_states, cross_struct_mask,
                             params, layer_norm_eps=eps, compute_dtype=jnp.bfloat16)
  out_bf16 = jax.block_until_ready(out_bf16)
  assert out_bf16.shape == (B, Lq, H)
  assert jnp.max(jnp.abs(out_bf16 - ref)) < 5e-2, "mismatch (bf16) vs. reference"

  print("KERNEL_OK")
</pallas_src>

<mosaic_0001>
module attributes {stable_mosaic.version = 11 : i64} {
  func.func @cross_attention_kernel(%arg0: i32, %arg1: i32, %arg2: memref<1x8x32xf32, #tpu.memory_space<vmem>>, %arg3: memref<1x8x32xf32, #tpu.memory_space<vmem>>, %arg4: memref<1x8x8xf32, #tpu.memory_space<vmem>>, %arg5: memref<32x8xf32, #tpu.memory_space<vmem>>, %arg6: memref<1x8xf32, #tpu.memory_space<vmem>>, %arg7: memref<32x8xf32, #tpu.memory_space<vmem>>, %arg8: memref<1x8xf32, #tpu.memory_space<vmem>>, %arg9: memref<32x32xf32, #tpu.memory_space<vmem>>, %arg10: memref<1x32xf32, #tpu.memory_space<vmem>>, %arg11: memref<32x32xf32, #tpu.memory_space<vmem>>, %arg12: memref<1x32xf32, #tpu.memory_space<vmem>>, %arg13: memref<32x32xf32, #tpu.memory_space<vmem>>, %arg14: memref<32x32xf32, #tpu.memory_space<vmem>>, %arg15: memref<1x32xf32, #tpu.memory_space<vmem>>, %arg16: memref<1x32xf32, #tpu.memory_space<vmem>>, %arg17: memref<1x32xf32, #tpu.memory_space<vmem>>, %arg18: memref<1x8x32xf32, #tpu.memory_space<vmem>>) attributes {dimension_semantics = [#tpu.dimension_semantics<parallel>, #tpu.dimension_semantics<parallel>], iteration_bounds = array<i64: 2, 1>, scalar_prefetch = 0 : i64, scratch_operands = 0 : i64, tpu.core_type = #tpu.core_type<tc>, window_params = [{transform_indices = @transform_0, window_bounds = array<i64: 1, 8, 32>}, {transform_indices = @transform_1, window_bounds = array<i64: 1, 8, 32>}, {transform_indices = @transform_2, window_bounds = array<i64: 1, 8, 8>}, {pipeline_mode = #tpu.pipeline_mode<synchronous>, transform_indices = @transform_3, window_bounds = array<i64: 32, 8>}, {pipeline_mode = #tpu.pipeline_mode<synchronous>, transform_indices = @transform_4, window_bounds = array<i64: 1, 8>}, {pipeline_mode = #tpu.pipeline_mode<synchronous>, transform_indices = @transform_5, window_bounds = array<i64: 32, 8>}, {pipeline_mode = #tpu.pipeline_mode<synchronous>, transform_indices = @transform_6, window_bounds = array<i64: 1, 8>}, {pipeline_mode = #tpu.pipeline_mode<synchronous>, transform_indices = @transform_7, window_bounds = array<i64: 32, 32>}, {pipeline_mode = #tpu.pipeline_mode<synchronous>, transform_indices = @transform_8, window_bounds = array<i64: 1, 32>}, {pipeline_mode = #tpu.pipeline_mode<synchronous>, transform_indices = @transform_9, window_bounds = array<i64: 32, 32>}, {pipeline_mode = #tpu.pipeline_mode<synchronous>, transform_indices = @transform_10, window_bounds = array<i64: 1, 32>}, {pipeline_mode = #tpu.pipeline_mode<synchronous>, transform_indices = @transform_11, window_bounds = array<i64: 32, 32>}, {pipeline_mode = #tpu.pipeline_mode<synchronous>, transform_indices = @transform_12, window_bounds = array<i64: 32, 32>}, {pipeline_mode = #tpu.pipeline_mode<synchronous>, transform_indices = @transform_13, window_bounds = array<i64: 1, 32>}, {pipeline_mode = #tpu.pipeline_mode<synchronous>, transform_indices = @transform_14, window_bounds = array<i64: 1, 32>}, {pipeline_mode = #tpu.pipeline_mode<synchronous>, transform_indices = @transform_15, window_bounds = array<i64: 1, 32>}, {transform_indices = @transform_16, window_bounds = array<i64: 1, 8, 32>}]} {
    %c0 = arith.constant 0 : index
    %c0_0 = arith.constant 0 : index
    %c0_1 = arith.constant 0 : index
    %0 = vector.load %arg2[%c0, %c0_0, %c0_1] : memref<1x8x32xf32, #tpu.memory_space<vmem>>, vector<1x8x32xf32>
    %1 = vector.shape_cast %0 : vector<1x8x32xf32> to vector<8x32xf32>
    %c0_2 = arith.constant 0 : index
    %c0_3 = arith.constant 0 : index
    %c0_4 = arith.constant 0 : index
    %2 = vector.load %arg3[%c0_2, %c0_3, %c0_4] : memref<1x8x32xf32, #tpu.memory_space<vmem>>, vector<1x8x32xf32>
    %3 = vector.shape_cast %2 : vector<1x8x32xf32> to vector<8x32xf32>
    %c0_5 = arith.constant 0 : index
    %c0_6 = arith.constant 0 : index
    %c0_7 = arith.constant 0 : index
    %4 = vector.load %arg4[%c0_5, %c0_6, %c0_7] : memref<1x8x8xf32, #tpu.memory_space<vmem>>, vector<1x8x8xf32>
    %5 = vector.shape_cast %4 : vector<1x8x8xf32> to vector<8x8xf32>
    %c0_8 = arith.constant 0 : index
    %c0_9 = arith.constant 0 : index
    %6 = vector.load %arg5[%c0_8, %c0_9] : memref<32x8xf32, #tpu.memory_space<vmem>>, vector<32x8xf32>
    %cst = arith.constant dense<0.000000e+00> : vector<8x8xf32>
    %7 = tpu.matmul %1, %6, %cst {dimension_numbers = #tpu.dot_dimension_numbers<[1], [0], [0], [1], [0, 0, 1, 1], [], []>} : vector<8x32xf32>, vector<32x8xf32>, vector<8x8xf32> -> vector<8x8xf32>
    %c0_10 = arith.constant 0 : index
    %c0_11 = arith.constant 0 : index
    %8 = vector.load %arg6[%c0_10, %c0_11] : memref<1x8xf32, #tpu.memory_space<vmem>>, vector<1x8xf32>
    %9 = vector.broadcast %8 : vector<1x8xf32> to vector<8x8xf32>
    %10 = arith.addf %7, %9 : vector<8x8xf32>
    %c0_12 = arith.constant 0 : index
    %c0_13 = arith.constant 0 : index
    %11 = vector.load %arg7[%c0_12, %c0_13] : memref<32x8xf32, #tpu.memory_space<vmem>>, vector<32x8xf32>
    %cst_14 = arith.constant dense<0.000000e+00> : vector<8x8xf32>
    %12 = tpu.matmul %3, %11, %cst_14 {dimension_numbers = #tpu.dot_dimension_numbers<[1], [0], [0], [1], [0, 0, 1, 1], [], []>} : vector<8x32xf32>, vector<32x8xf32>, vector<8x8xf32> -> vector<8x8xf32>
    %c0_15 = arith.constant 0 : index
    %c0_16 = arith.constant 0 : index
    %13 = vector.load %arg8[%c0_15, %c0_16] : memref<1x8xf32, #tpu.memory_space<vmem>>, vector<1x8xf32>
    %14 = vector.broadcast %13 : vector<1x8xf32> to vector<8x8xf32>
    %15 = arith.addf %12, %14 : vector<8x8xf32>
    %c0_17 = arith.constant 0 : index
    %c0_18 = arith.constant 0 : index
    %16 = vector.load %arg9[%c0_17, %c0_18] : memref<32x32xf32, #tpu.memory_space<vmem>>, vector<32x32xf32>
    %cst_19 = arith.constant dense<0.000000e+00> : vector<8x32xf32>
    %17 = tpu.matmul %3, %16, %cst_19 {dimension_numbers = #tpu.dot_dimension_numbers<[1], [0], [0], [1], [0, 0, 1, 1], [], []>} : vector<8x32xf32>, vector<32x32xf32>, vector<8x32xf32> -> vector<8x32xf32>
    %c0_20 = arith.constant 0 : index
    %c0_21 = arith.constant 0 : index
    %18 = vector.load %arg10[%c0_20, %c0_21] : memref<1x32xf32, #tpu.memory_space<vmem>>, vector<1x32xf32>
    %19 = vector.broadcast %18 : vector<1x32xf32> to vector<8x32xf32>
    %20 = arith.addf %17, %19 : vector<8x32xf32>
    %21 = vector.extract_strided_slice %10 {offsets = [0, 0], sizes = [8, 2], strides = [1, 1]} : vector<8x8xf32> to vector<8x2xf32>
    %22 = vector.extract_strided_slice %10 {offsets = [0, 2], sizes = [8, 2], strides = [1, 1]} : vector<8x8xf32> to vector<8x2xf32>
    %23 = vector.extract_strided_slice %10 {offsets = [0, 4], sizes = [8, 2], strides = [1, 1]} : vector<8x8xf32> to vector<8x2xf32>
    %24 = vector.extract_strided_slice %10 {offsets = [0, 6], sizes = [8, 2], strides = [1, 1]} : vector<8x8xf32> to vector<8x2xf32>
    %25 = vector.shape_cast %21 : vector<8x2xf32> to vector<1x8x2xf32>
    %26 = vector.shape_cast %22 : vector<8x2xf32> to vector<1x8x2xf32>
    %27 = vector.shape_cast %23 : vector<8x2xf32> to vector<1x8x2xf32>
    %28 = vector.shape_cast %24 : vector<8x2xf32> to vector<1x8x2xf32>
    %29 = tpu.concatenate %25, %26, %27, %28 in 0 : vector<1x8x2xf32>, vector<1x8x2xf32>, vector<1x8x2xf32>, vector<1x8x2xf32> -> vector<4x8x2xf32>
    %30 = vector.extract_strided_slice %15 {offsets = [0, 0], sizes = [8, 2], strides = [1, 1]} : vector<8x8xf32> to vector<8x2xf32>
    %31 = vector.extract_strided_slice %15 {offsets = [0, 2], sizes = [8, 2], strides = [1, 1]} : vector<8x8xf32> to vector<8x2xf32>
    %32 = vector.extract_strided_slice %15 {offsets = [0, 4], sizes = [8, 2], strides = [1, 1]} : vector<8x8xf32> to vector<8x2xf32>
    %33 = vector.extract_strided_slice %15 {offsets = [0, 6], sizes = [8, 2], strides = [1, 1]} : vector<8x8xf32> to vector<8x2xf32>
    %34 = vector.shape_cast %30 : vector<8x2xf32> to vector<1x8x2xf32>
    %35 = vector.shape_cast %31 : vector<8x2xf32> to vector<1x8x2xf32>
    %36 = vector.shape_cast %32 : vector<8x2xf32> to vector<1x8x2xf32>
    %37 = vector.shape_cast %33 : vector<8x2xf32> to vector<1x8x2xf32>
    %38 = tpu.concatenate %34, %35, %36, %37 in 0 : vector<1x8x2xf32>, vector<1x8x2xf32>, vector<1x8x2xf32>, vector<1x8x2xf32> -> vector<4x8x2xf32>
    %39 = vector.extract_strided_slice %20 {offsets = [0, 0], sizes = [8, 8], strides = [1, 1]} : vector<8x32xf32> to vector<8x8xf32>
    %40 = vector.extract_strided_slice %20 {offsets = [0, 8], sizes = [8, 8], strides = [1, 1]} : vector<8x32xf32> to vector<8x8xf32>
    %41 = vector.extract_strided_slice %20 {offsets = [0, 16], sizes = [8, 8], strides = [1, 1]} : vector<8x32xf32> to vector<8x8xf32>
    %42 = vector.extract_strided_slice %20 {offsets = [0, 24], sizes = [8, 8], strides = [1, 1]} : vector<8x32xf32> to vector<8x8xf32>
    %43 = vector.shape_cast %39 : vector<8x8xf32> to vector<1x8x8xf32>
    %44 = vector.shape_cast %40 : vector<8x8xf32> to vector<1x8x8xf32>
    %45 = vector.shape_cast %41 : vector<8x8xf32> to vector<1x8x8xf32>
    %46 = vector.shape_cast %42 : vector<8x8xf32> to vector<1x8x8xf32>
    %47 = tpu.concatenate %43, %44, %45, %46 in 0 : vector<1x8x8xf32>, vector<1x8x8xf32>, vector<1x8x8xf32>, vector<1x8x8xf32> -> vector<4x8x8xf32>
    "tpu.trace_start"() <{level = 10 : i32, message = "hqd,hkd->hqk"}> : () -> ()
    %cst_22 = arith.constant dense<0.000000e+00> : vector<4x8x8xf32>
    %48 = tpu.matmul %29, %38, %cst_22 {dimension_numbers = #tpu.dot_dimension_numbers<[2], [2], [1], [1], [0, 0, 0, 1, 1, 1], [0], [0]>} : vector<4x8x2xf32>, vector<4x8x2xf32>, vector<4x8x8xf32> -> vector<4x8x8xf32>
    "tpu.trace_stop"() : () -> ()
    %49 = vector.shape_cast %5 : vector<8x8xf32> to vector<1x8x8xf32>
    %50 = vector.broadcast %49 : vector<1x8x8xf32> to vector<4x8x8xf32>
    %51 = arith.addf %48, %50 : vector<4x8x8xf32>
    %cst_23 = arith.constant dense<0xFF800000> : vector<4x8xf32>
    %52 = vector.multi_reduction <maximumf>, %51, %cst_23 [2] : vector<4x8x8xf32> to vector<4x8xf32>
    %53 = vector.shape_cast %52 : vector<4x8xf32> to vector<4x8x1xf32>
    %54 = vector.broadcast %53 : vector<4x8x1xf32> to vector<4x8x8xf32>
    %55 = arith.subf %51, %54 : vector<4x8x8xf32>
    %56 = math.exp %55 : vector<4x8x8xf32>
    %cst_24 = arith.constant dense<0.000000e+00> : vector<4x8xf32>
    %57 = vector.multi_reduction <add>, %56, %cst_24 [2] : vector<4x8x8xf32> to vector<4x8xf32>
    %58 = vector.shape_cast %57 : vector<4x8xf32> to vector<4x8x1xf32>
    %59 = tpu.reciprocal %58 : vector<4x8x1xf32> -> vector<4x8x1xf32>
    %60 = vector.broadcast %59 : vector<4x8x1xf32> to vector<4x8x8xf32>
    %61 = arith.mulf %56, %60 : vector<4x8x8xf32>
    "tpu.trace_start"() <{level = 10 : i32, message = "hqk,hkd->hqd"}> : () -> ()
    %cst_25 = arith.constant dense<0.000000e+00> : vector<4x8x8xf32>
    %62 = tpu.matmul %61, %47, %cst_25 {dimension_numbers = #tpu.dot_dimension_numbers<[2], [1], [1], [2], [0, 0, 0, 1, 1, 2], [0], [0]>} : vector<4x8x8xf32>, vector<4x8x8xf32>, vector<4x8x8xf32> -> vector<4x8x8xf32>
    "tpu.trace_stop"() : () -> ()
    %63 = vector.extract_strided_slice %62 {offsets = [0, 0, 0], sizes = [1, 8, 8], strides = [1, 1, 1]} : vector<4x8x8xf32> to vector<1x8x8xf32>
    %64 = vector.shape_cast %63 : vector<1x8x8xf32> to vector<8x8xf32>
    %65 = vector.extract_strided_slice %62 {offsets = [1, 0, 0], sizes = [1, 8, 8], strides = [1, 1, 1]} : vector<4x8x8xf32> to vector<1x8x8xf32>
    %66 = vector.shape_cast %65 : vector<1x8x8xf32> to vector<8x8xf32>
    %67 = vector.extract_strided_slice %62 {offsets = [2, 0, 0], sizes = [1, 8, 8], strides = [1, 1, 1]} : vector<4x8x8xf32> to vector<1x8x8xf32>
    %68 = vector.shape_cast %67 : vector<1x8x8xf32> to vector<8x8xf32>
    %69 = vector.extract_strided_slice %62 {offsets = [3, 0, 0], sizes = [1, 8, 8], strides = [1, 1, 1]} : vector<4x8x8xf32> to vector<1x8x8xf32>
    %70 = vector.shape_cast %69 : vector<1x8x8xf32> to vector<8x8xf32>
    %71 = tpu.concatenate %64, %66, %68, %70 in 1 : vector<8x8xf32>, vector<8x8xf32>, vector<8x8xf32>, vector<8x8xf32> -> vector<8x32xf32>
    %c0_26 = arith.constant 0 : index
    %c0_27 = arith.constant 0 : index
    %72 = vector.load %arg11[%c0_26, %c0_27] : memref<32x32xf32, #tpu.memory_space<vmem>>, vector<32x32xf32>
    %cst_28 = arith.constant dense<0.000000e+00> : vector<8x32xf32>
    %73 = tpu.matmul %71, %72, %cst_28 {dimension_numbers = #tpu.dot_dimension_numbers<[1], [0], [0], [1], [0, 0, 1, 1], [], []>} : vector<8x32xf32>, vector<32x32xf32>, vector<8x32xf32> -> vector<8x32xf32>
    %c0_29 = arith.constant 0 : index
    %c0_30 = arith.constant 0 : index
    %74 = vector.load %arg12[%c0_29, %c0_30] : memref<1x32xf32, #tpu.memory_space<vmem>>, vector<1x32xf32>
    %75 = vector.broadcast %74 : vector<1x32xf32> to vector<8x32xf32>
    %76 = arith.addf %73, %75 : vector<8x32xf32>
    %c0_31 = arith.constant 0 : index
    %c0_32 = arith.constant 0 : index
    %77 = vector.load %arg13[%c0_31, %c0_32] : memref<32x32xf32, #tpu.memory_space<vmem>>, vector<32x32xf32>
    %cst_33 = arith.constant dense<0.000000e+00> : vector<8x32xf32>
    %78 = tpu.matmul %1, %77, %cst_33 {dimension_numbers = #tpu.dot_dimension_numbers<[1], [0], [0], [1], [0, 0, 1, 1], [], []>} : vector<8x32xf32>, vector<32x32xf32>, vector<8x32xf32> -> vector<8x32xf32>
    %c0_34 = arith.constant 0 : index
    %c0_35 = arith.constant 0 : index
    %79 = vector.load %arg14[%c0_34, %c0_35] : memref<32x32xf32, #tpu.memory_space<vmem>>, vector<32x32xf32>
    %cst_36 = arith.constant dense<0.000000e+00> : vector<8x32xf32>
    %80 = tpu.matmul %76, %79, %cst_36 {dimension_numbers = #tpu.dot_dimension_numbers<[1], [0], [0], [1], [0, 0, 1, 1], [], []>} : vector<8x32xf32>, vector<32x32xf32>, vector<8x32xf32> -> vector<8x32xf32>
    %81 = arith.addf %78, %80 : vector<8x32xf32>
    %c0_37 = arith.constant 0 : index
    %c0_38 = arith.constant 0 : index
    %82 = vector.load %arg15[%c0_37, %c0_38] : memref<1x32xf32, #tpu.memory_space<vmem>>, vector<1x32xf32>
    %83 = vector.broadcast %82 : vector<1x32xf32> to vector<8x32xf32>
    %84 = arith.addf %81, %83 : vector<8x32xf32>
    %85 = arith.negf %84 : vector<8x32xf32>
    %86 = math.exp %85 : vector<8x32xf32>
    %cst_39 = arith.constant 1.000000e+00 : f32
    %87 = vector.broadcast %cst_39 : f32 to vector<8x32xf32>
    %88 = arith.addf %87, %86 : vector<8x32xf32>
    %89 = arith.divf %87, %88 : vector<8x32xf32>
    %90 = arith.mulf %89, %76 : vector<8x32xf32>
    %cst_40 = arith.constant 1.000000e+00 : f32
    %91 = vector.broadcast %cst_40 : f32 to vector<8x32xf32>
    %92 = arith.subf %91, %89 : vector<8x32xf32>
    %93 = arith.mulf %92, %1 : vector<8x32xf32>
    %94 = arith.addf %90, %93 : vector<8x32xf32>
    %cst_41 = arith.constant dense<0.000000e+00> : vector<8xf32>
    %95 = vector.multi_reduction <add>, %94, %cst_41 [1] : vector<8x32xf32> to vector<8xf32>
    %96 = vector.shape_cast %95 : vector<8xf32> to vector<8x1xf32>
    %cst_42 = arith.constant 3.200000e+01 : f32
    %97 = vector.broadcast %cst_42 : f32 to vector<8x1xf32>
    %98 = arith.divf %96, %97 : vector<8x1xf32>
    %99 = vector.broadcast %98 : vector<8x1xf32> to vector<8x32xf32>
    %100 = arith.subf %94, %99 : vector<8x32xf32>
    %101 = arith.mulf %100, %100 : vector<8x32xf32>
    %cst_43 = arith.constant dense<0.000000e+00> : vector<8xf32>
    %102 = vector.multi_reduction <add>, %101, %cst_43 [1] : vector<8x32xf32> to vector<8xf32>
    %103 = vector.shape_cast %102 : vector<8xf32> to vector<8x1xf32>
    %cst_44 = arith.constant 3.200000e+01 : f32
    %104 = vector.broadcast %cst_44 : f32 to vector<8x1xf32>
    %105 = arith.divf %103, %104 : vector<8x1xf32>
    %106 = vector.broadcast %98 : vector<8x1xf32> to vector<8x32xf32>
    %107 = arith.subf %94, %106 : vector<8x32xf32>
    %cst_45 = arith.constant 9.99999996E-13 : f32
    %108 = vector.broadcast %cst_45 : f32 to vector<8x1xf32>
    %109 = arith.addf %105, %108 : vector<8x1xf32>
    %110 = math.rsqrt %109 : vector<8x1xf32>
    %111 = vector.broadcast %110 : vector<8x1xf32> to vector<8x32xf32>
    %112 = arith.mulf %107, %111 : vector<8x32xf32>
    %c0_46 = arith.constant 0 : index
    %c0_47 = arith.constant 0 : index
    %113 = vector.load %arg16[%c0_46, %c0_47] : memref<1x32xf32, #tpu.memory_space<vmem>>, vector<1x32xf32>
    %114 = vector.broadcast %113 : vector<1x32xf32> to vector<8x32xf32>
    %115 = arith.mulf %112, %114 : vector<8x32xf32>
    %c0_48 = arith.constant 0 : index
    %c0_49 = arith.constant 0 : index
    %116 = vector.load %arg17[%c0_48, %c0_49] : memref<1x32xf32, #tpu.memory_space<vmem>>, vector<1x32xf32>
    %117 = vector.broadcast %116 : vector<1x32xf32> to vector<8x32xf32>
    %118 = arith.addf %115, %117 : vector<8x32xf32>
    %c0_50 = arith.constant 0 : index
    %c0_51 = arith.constant 0 : index
    %c0_52 = arith.constant 0 : index
    %119 = vector.load %arg18[%c0_50, %c0_51, %c0_52] : memref<1x8x32xf32, #tpu.memory_space<vmem>>, vector<1x8x32xf32>
    %120 = vector.shape_cast %119 : vector<1x8x32xf32> to vector<8x32xf32>
    %121 = vector.shape_cast %118 : vector<8x32xf32> to vector<1x8x32xf32>
    tpu.vector_store %arg18[%c0_50, %c0_51, %c0_52], %121 {strides = array<i32>} : memref<1x8x32xf32, #tpu.memory_space<vmem>>, vector<1x8x32xf32>,
    return
  }
  func.func @transform_0(%arg0: i32, %arg1: i32) -> (i32, i32, i32) {
    %c0_i32 = arith.constant 0 : i32
    %c0_i32_0 = arith.constant 0 : i32
    return %arg0, %arg1, %c0_i32 : i32, i32, i32
  }
  func.func @transform_1(%arg0: i32, %arg1: i32) -> (i32, i32, i32) {
    %c0_i32 = arith.constant 0 : i32
    %c0_i32_0 = arith.constant 0 : i32
    %c0_i32_1 = arith.constant 0 : i32
    return %arg0, %c0_i32, %c0_i32_0 : i32, i32, i32
  }
  func.func @transform_2(%arg0: i32, %arg1: i32) -> (i32, i32, i32) {
    %c0_i32 = arith.constant 0 : i32
    %c0_i32_0 = arith.constant 0 : i32
    return %arg0, %arg1, %c0_i32 : i32, i32, i32
  }
  func.func @transform_3(%arg0: i32, %arg1: i32) -> (i32, i32) {
    %c0_i32 = arith.constant 0 : i32
    %c0_i32_0 = arith.constant 0 : i32
    %c0_i32_1 = arith.constant 0 : i32
    return %c0_i32, %c0_i32_0 : i32, i32
  }
  func.func @transform_4(%arg0: i32, %arg1: i32) -> (i32, i32) {
    %c0_i32 = arith.constant 0 : i32
    %c0_i32_0 = arith.constant 0 : i32
    %c0_i32_1 = arith.constant 0 : i32
    return %c0_i32, %c0_i32_0 : i32, i32
  }
  func.func @transform_5(%arg0: i32, %arg1: i32) -> (i32, i32) {
    %c0_i32 = arith.constant 0 : i32
    %c0_i32_0 = arith.constant 0 : i32
    %c0_i32_1 = arith.constant 0 : i32
    return %c0_i32, %c0_i32_0 : i32, i32
  }
  func.func @transform_6(%arg0: i32, %arg1: i32) -> (i32, i32) {
    %c0_i32 = arith.constant 0 : i32
    %c0_i32_0 = arith.constant 0 : i32
    %c0_i32_1 = arith.constant 0 : i32
    return %c0_i32, %c0_i32_0 : i32, i32
  }
  func.func @transform_7(%arg0: i32, %arg1: i32) -> (i32, i32) {
    %c0_i32 = arith.constant 0 : i32
    %c0_i32_0 = arith.constant 0 : i32
    %c0_i32_1 = arith.constant 0 : i32
    return %c0_i32, %c0_i32_0 : i32, i32
  }
  func.func @transform_8(%arg0: i32, %arg1: i32) -> (i32, i32) {
    %c0_i32 = arith.constant 0 : i32
    %c0_i32_0 = arith.constant 0 : i32
    %c0_i32_1 = arith.constant 0 : i32
    return %c0_i32, %c0_i32_0 : i32, i32
  }
  func.func @transform_9(%arg0: i32, %arg1: i32) -> (i32, i32) {
    %c0_i32 = arith.constant 0 : i32
    %c0_i32_0 = arith.constant 0 : i32
    %c0_i32_1 = arith.constant 0 : i32
    return %c0_i32, %c0_i32_0 : i32, i32
  }
  func.func @transform_10(%arg0: i32, %arg1: i32) -> (i32, i32) {
    %c0_i32 = arith.constant 0 : i32
    %c0_i32_0 = arith.constant 0 : i32
    %c0_i32_1 = arith.constant 0 : i32
    return %c0_i32, %c0_i32_0 : i32, i32
  }
  func.func @transform_11(%arg0: i32, %arg1: i32) -> (i32, i32) {
    %c0_i32 = arith.constant 0 : i32
    %c0_i32_0 = arith.constant 0 : i32
    %c0_i32_1 = arith.constant 0 : i32
    return %c0_i32, %c0_i32_0 : i32, i32
  }
  func.func @transform_12(%arg0: i32, %arg1: i32) -> (i32, i32) {
    %c0_i32 = arith.constant 0 : i32
    %c0_i32_0 = arith.constant 0 : i32
    %c0_i32_1 = arith.constant 0 : i32
    return %c0_i32, %c0_i32_0 : i32, i32
  }
  func.func @transform_13(%arg0: i32, %arg1: i32) -> (i32, i32) {
    %c0_i32 = arith.constant 0 : i32
    %c0_i32_0 = arith.constant 0 : i32
    %c0_i32_1 = arith.constant 0 : i32
    return %c0_i32, %c0_i32_0 : i32, i32
  }
  func.func @transform_14(%arg0: i32, %arg1: i32) -> (i32, i32) {
    %c0_i32 = arith.constant 0 : i32
    %c0_i32_0 = arith.constant 0 : i32
    %c0_i32_1 = arith.constant 0 : i32
    return %c0_i32, %c0_i32_0 : i32, i32
  }
  func.func @transform_15(%arg0: i32, %arg1: i32) -> (i32, i32) {
    %c0_i32 = arith.constant 0 : i32
    %c0_i32_0 = arith.constant 0 : i32
    %c0_i32_1 = arith.constant 0 : i32
    return %c0_i32, %c0_i32_0 : i32, i32
  }
  func.func @transform_16(%arg0: i32, %arg1: i32) -> (i32, i32, i32) {
    %c0_i32 = arith.constant 0 : i32
    %c0_i32_0 = arith.constant 0 : i32
    return %arg0, %arg1, %c0_i32 : i32, i32, i32
  }
}

module attributes {stable_mosaic.version = 11 : i64} {
  func.func @cross_attention_kernel(%arg0: i32, %arg1: i32, %arg2: memref<1x8x32xf32, #tpu.memory_space<vmem>>, %arg3: memref<1x8x32xf32, #tpu.memory_space<vmem>>, %arg4: memref<1x8x8xf32, #tpu.memory_space<vmem>>, %arg5: memref<32x8xf32, #tpu.memory_space<vmem>>, %arg6: memref<1x8xf32, #tpu.memory_space<vmem>>, %arg7: memref<32x8xf32, #tpu.memory_space<vmem>>, %arg8: memref<1x8xf32, #tpu.memory_space<vmem>>, %arg9: memref<32x32xf32, #tpu.memory_space<vmem>>, %arg10: memref<1x32xf32, #tpu.memory_space<vmem>>, %arg11: memref<32x32xf32, #tpu.memory_space<vmem>>, %arg12: memref<1x32xf32, #tpu.memory_space<vmem>>, %arg13: memref<32x32xf32, #tpu.memory_space<vmem>>, %arg14: memref<32x32xf32, #tpu.memory_space<vmem>>, %arg15: memref<1x32xf32, #tpu.memory_space<vmem>>, %arg16: memref<1x32xf32, #tpu.memory_space<vmem>>, %arg17: memref<1x32xf32, #tpu.memory_space<vmem>>, %arg18: memref<1x8x32xf32, #tpu.memory_space<vmem>>) attributes {dimension_semantics = [#tpu.dimension_semantics<parallel>, #tpu.dimension_semantics<parallel>], iteration_bounds = array<i64: 2, 1>, scalar_prefetch = 0 : i64, scratch_operands = 0 : i64, tpu.core_type = #tpu.core_type<tc>, window_params = [{transform_indices = @transform_0, window_bounds = array<i64: 1, 8, 32>}, {transform_indices = @transform_1, window_bounds = array<i64: 1, 8, 32>}, {transform_indices = @transform_2, window_bounds = array<i64: 1, 8, 8>}, {pipeline_mode = #tpu.pipeline_mode<synchronous>, transform_indices = @transform_3, window_bounds = array<i64: 32, 8>}, {pipeline_mode = #tpu.pipeline_mode<synchronous>, transform_indices = @transform_4, window_bounds = array<i64: 1, 8>}, {pipeline_mode = #tpu.pipeline_mode<synchronous>, transform_indices = @transform_5, window_bounds = array<i64: 32, 8>}, {pipeline_mode = #tpu.pipeline_mode<synchronous>, transform_indices = @transform_6, window_bounds = array<i64: 1, 8>}, {pipeline_mode = #tpu.pipeline_mode<synchronous>, transform_indices = @transform_7, window_bounds = array<i64: 32, 32>}, {pipeline_mode = #tpu.pipeline_mode<synchronous>, transform_indices = @transform_8, window_bounds = array<i64: 1, 32>}, {pipeline_mode = #tpu.pipeline_mode<synchronous>, transform_indices = @transform_9, window_bounds = array<i64: 32, 32>}, {pipeline_mode = #tpu.pipeline_mode<synchronous>, transform_indices = @transform_10, window_bounds = array<i64: 1, 32>}, {pipeline_mode = #tpu.pipeline_mode<synchronous>, transform_indices = @transform_11, window_bounds = array<i64: 32, 32>}, {pipeline_mode = #tpu.pipeline_mode<synchronous>, transform_indices = @transform_12, window_bounds = array<i64: 32, 32>}, {pipeline_mode = #tpu.pipeline_mode<synchronous>, transform_indices = @transform_13, window_bounds = array<i64: 1, 32>}, {pipeline_mode = #tpu.pipeline_mode<synchronous>, transform_indices = @transform_14, window_bounds = array<i64: 1, 32>}, {pipeline_mode = #tpu.pipeline_mode<synchronous>, transform_indices = @transform_15, window_bounds = array<i64: 1, 32>}, {transform_indices = @transform_16, window_bounds = array<i64: 1, 8, 32>}]} {
    %c0 = arith.constant 0 : index
    %c0_0 = arith.constant 0 : index
    %c0_1 = arith.constant 0 : index
    %0 = vector.load %arg2[%c0, %c0_0, %c0_1] : memref<1x8x32xf32, #tpu.memory_space<vmem>>, vector<1x8x32xf32>
    %1 = vector.shape_cast %0 : vector<1x8x32xf32> to vector<8x32xf32>
    %c0_2 = arith.constant 0 : index
    %c0_3 = arith.constant 0 : index
    %c0_4 = arith.constant 0 : index
    %2 = vector.load %arg3[%c0_2, %c0_3, %c0_4] : memref<1x8x32xf32, #tpu.memory_space<vmem>>, vector<1x8x32xf32>
    %3 = vector.shape_cast %2 : vector<1x8x32xf32> to vector<8x32xf32>
    %c0_5 = arith.constant 0 : index
    %c0_6 = arith.constant 0 : index
    %c0_7 = arith.constant 0 : index
    %4 = vector.load %arg4[%c0_5, %c0_6, %c0_7] : memref<1x8x8xf32, #tpu.memory_space<vmem>>, vector<1x8x8xf32>
    %5 = vector.shape_cast %4 : vector<1x8x8xf32> to vector<8x8xf32>
    %c0_8 = arith.constant 0 : index
    %c0_9 = arith.constant 0 : index
    %6 = vector.load %arg5[%c0_8, %c0_9] : memref<32x8xf32, #tpu.memory_space<vmem>>, vector<32x8xf32>
    %cst = arith.constant dense<0.000000e+00> : vector<8x8xf32>
    %7 = tpu.matmul %1, %6, %cst {dimension_numbers = #tpu.dot_dimension_numbers<[1], [0], [0], [1], [0, 0, 1, 1], [], []>} : vector<8x32xf32>, vector<32x8xf32>, vector<8x8xf32> -> vector<8x8xf32>
    %c0_10 = arith.constant 0 : index
    %c0_11 = arith.constant 0 : index
    %8 = vector.load %arg6[%c0_10, %c0_11] : memref<1x8xf32, #tpu.memory_space<vmem>>, vector<1x8xf32>
    %9 = vector.broadcast %8 : vector<1x8xf32> to vector<8x8xf32>
    %10 = arith.addf %7, %9 : vector<8x8xf32>
    %c0_12 = arith.constant 0 : index
    %c0_13 = arith.constant 0 : index
    %11 = vector.load %arg7[%c0_12, %c0_13] : memref<32x8xf32, #tpu.memory_space<vmem>>, vector<32x8xf32>
    %cst_14 = arith.constant dense<0.000000e+00> : vector<8x8xf32>
    %12 = tpu.matmul %3, %11, %cst_14 {dimension_numbers = #tpu.dot_dimension_numbers<[1], [0], [0], [1], [0, 0, 1, 1], [], []>} : vector<8x32xf32>, vector<32x8xf32>, vector<8x8xf32> -> vector<8x8xf32>
    %c0_15 = arith.constant 0 : index
    %c0_16 = arith.constant 0 : index
    %13 = vector.load %arg8[%c0_15, %c0_16] : memref<1x8xf32, #tpu.memory_space<vmem>>, vector<1x8xf32>
    %14 = vector.broadcast %13 : vector<1x8xf32> to vector<8x8xf32>
    %15 = arith.addf %12, %14 : vector<8x8xf32>
    %c0_17 = arith.constant 0 : index
    %c0_18 = arith.constant 0 : index
    %16 = vector.load %arg9[%c0_17, %c0_18] : memref<32x32xf32, #tpu.memory_space<vmem>>, vector<32x32xf32>
    %cst_19 = arith.constant dense<0.000000e+00> : vector<8x32xf32>
    %17 = tpu.matmul %3, %16, %cst_19 {dimension_numbers = #tpu.dot_dimension_numbers<[1], [0], [0], [1], [0, 0, 1, 1], [], []>} : vector<8x32xf32>, vector<32x32xf32>, vector<8x32xf32> -> vector<8x32xf32>
    %c0_20 = arith.constant 0 : index
    %c0_21 = arith.constant 0 : index
    %18 = vector.load %arg10[%c0_20, %c0_21] : memref<1x32xf32, #tpu.memory_space<vmem>>, vector<1x32xf32>
    %19 = vector.broadcast %18 : vector<1x32xf32> to vector<8x32xf32>
    %20 = arith.addf %17, %19 : vector<8x32xf32>
    %21 = vector.extract_strided_slice %10 {offsets = [0, 0], sizes = [8, 2], strides = [1, 1]} : vector<8x8xf32> to vector<8x2xf32>
    %22 = vector.extract_strided_slice %10 {offsets = [0, 2], sizes = [8, 2], strides = [1, 1]} : vector<8x8xf32> to vector<8x2xf32>
    %23 = vector.extract_strided_slice %10 {offsets = [0, 4], sizes = [8, 2], strides = [1, 1]} : vector<8x8xf32> to vector<8x2xf32>
    %24 = vector.extract_strided_slice %10 {offsets = [0, 6], sizes = [8, 2], strides = [1, 1]} : vector<8x8xf32> to vector<8x2xf32>
    %25 = vector.shape_cast %21 : vector<8x2xf32> to vector<1x8x2xf32>
    %26 = vector.shape_cast %22 : vector<8x2xf32> to vector<1x8x2xf32>
    %27 = vector.shape_cast %23 : vector<8x2xf32> to vector<1x8x2xf32>
    %28 = vector.shape_cast %24 : vector<8x2xf32> to vector<1x8x2xf32>
    %29 = tpu.concatenate %25, %26, %27, %28 in 0 : vector<1x8x2xf32>, vector<1x8x2xf32>, vector<1x8x2xf32>, vector<1x8x2xf32> -> vector<4x8x2xf32>
    %30 = vector.extract_strided_slice %15 {offsets = [0, 0], sizes = [8, 2], strides = [1, 1]} : vector<8x8xf32> to vector<8x2xf32>
    %31 = vector.extract_strided_slice %15 {offsets = [0, 2], sizes = [8, 2], strides = [1, 1]} : vector<8x8xf32> to vector<8x2xf32>
    %32 = vector.extract_strided_slice %15 {offsets = [0, 4], sizes = [8, 2], strides = [1, 1]} : vector<8x8xf32> to vector<8x2xf32>
    %33 = vector.extract_strided_slice %15 {offsets = [0, 6], sizes = [8, 2], strides = [1, 1]} : vector<8x8xf32> to vector<8x2xf32>
    %34 = vector.shape_cast %30 : vector<8x2xf32> to vector<1x8x2xf32>
    %35 = vector.shape_cast %31 : vector<8x2xf32> to vector<1x8x2xf32>
    %36 = vector.shape_cast %32 : vector<8x2xf32> to vector<1x8x2xf32>
    %37 = vector.shape_cast %33 : vector<8x2xf32> to vector<1x8x2xf32>
    %38 = tpu.concatenate %34, %35, %36, %37 in 0 : vector<1x8x2xf32>, vector<1x8x2xf32>, vector<1x8x2xf32>, vector<1x8x2xf32> -> vector<4x8x2xf32>
    %39 = vector.extract_strided_slice %20 {offsets = [0, 0], sizes = [8, 8], strides = [1, 1]} : vector<8x32xf32> to vector<8x8xf32>
    %40 = vector.extract_strided_slice %20 {offsets = [0, 8], sizes = [8, 8], strides = [1, 1]} : vector<8x32xf32> to vector<8x8xf32>
    %41 = vector.extract_strided_slice %20 {offsets = [0, 16], sizes = [8, 8], strides = [1, 1]} : vector<8x32xf32> to vector<8x8xf32>
    %42 = vector.extract_strided_slice %20 {offsets = [0, 24], sizes = [8, 8], strides = [1, 1]} : vector<8x32xf32> to vector<8x8xf32>
    %43 = vector.shape_cast %39 : vector<8x8xf32> to vector<1x8x8xf32>
    %44 = vector.shape_cast %40 : vector<8x8xf32> to vector<1x8x8xf32>
    %45 = vector.shape_cast %41 : vector<8x8xf32> to vector<1x8x8xf32>
    %46 = vector.shape_cast %42 : vector<8x8xf32> to vector<1x8x8xf32>
    %47 = tpu.concatenate %43, %44, %45, %46 in 0 : vector<1x8x8xf32>, vector<1x8x8xf32>, vector<1x8x8xf32>, vector<1x8x8xf32> -> vector<4x8x8xf32>
    "tpu.trace_start"() <{level = 10 : i32, message = "hqd,hkd->hqk"}> : () -> ()
    %cst_22 = arith.constant dense<0.000000e+00> : vector<4x8x8xf32>
    %48 = tpu.matmul %29, %38, %cst_22 {dimension_numbers = #tpu.dot_dimension_numbers<[2], [2], [1], [1], [0, 0, 0, 1, 1, 1], [0], [0]>} : vector<4x8x2xf32>, vector<4x8x2xf32>, vector<4x8x8xf32> -> vector<4x8x8xf32>
    "tpu.trace_stop"() : () -> ()
    %49 = vector.shape_cast %5 : vector<8x8xf32> to vector<1x8x8xf32>
    %50 = vector.broadcast %49 : vector<1x8x8xf32> to vector<4x8x8xf32>
    %51 = arith.addf %48, %50 : vector<4x8x8xf32>
    %cst_23 = arith.constant dense<0xFF800000> : vector<4x8xf32>
    %52 = vector.multi_reduction <maximumf>, %51, %cst_23 [2] : vector<4x8x8xf32> to vector<4x8xf32>
    %53 = vector.shape_cast %52 : vector<4x8xf32> to vector<4x8x1xf32>
    %54 = vector.broadcast %53 : vector<4x8x1xf32> to vector<4x8x8xf32>
    %55 = arith.subf %51, %54 : vector<4x8x8xf32>
    %56 = math.exp %55 : vector<4x8x8xf32>
    %cst_24 = arith.constant dense<0.000000e+00> : vector<4x8xf32>
    %57 = vector.multi_reduction <add>, %56, %cst_24 [2] : vector<4x8x8xf32> to vector<4x8xf32>
    %58 = vector.shape_cast %57 : vector<4x8xf32> to vector<4x8x1xf32>
    %59 = tpu.reciprocal %58 : vector<4x8x1xf32> -> vector<4x8x1xf32>
    %60 = vector.broadcast %59 : vector<4x8x1xf32> to vector<4x8x8xf32>
    %61 = arith.mulf %56, %60 : vector<4x8x8xf32>
    "tpu.trace_start"() <{level = 10 : i32, message = "hqk,hkd->hqd"}> : () -> ()
    %cst_25 = arith.constant dense<0.000000e+00> : vector<4x8x8xf32>
    %62 = tpu.matmul %61, %47, %cst_25 {dimension_numbers = #tpu.dot_dimension_numbers<[2], [1], [1], [2], [0, 0, 0, 1, 1, 2], [0], [0]>} : vector<4x8x8xf32>, vector<4x8x8xf32>, vector<4x8x8xf32> -> vector<4x8x8xf32>
    "tpu.trace_stop"() : () -> ()
    %63 = vector.extract_strided_slice %62 {offsets = [0, 0, 0], sizes = [1, 8, 8], strides = [1, 1, 1]} : vector<4x8x8xf32> to vector<1x8x8xf32>
    %64 = vector.shape_cast %63 : vector<1x8x8xf32> to vector<8x8xf32>
    %65 = vector.extract_strided_slice %62 {offsets = [1, 0, 0], sizes = [1, 8, 8], strides = [1, 1, 1]} : vector<4x8x8xf32> to vector<1x8x8xf32>
    %66 = vector.shape_cast %65 : vector<1x8x8xf32> to vector<8x8xf32>
    %67 = vector.extract_strided_slice %62 {offsets = [2, 0, 0], sizes = [1, 8, 8], strides = [1, 1, 1]} : vector<4x8x8xf32> to vector<1x8x8xf32>
    %68 = vector.shape_cast %67 : vector<1x8x8xf32> to vector<8x8xf32>
    %69 = vector.extract_strided_slice %62 {offsets = [3, 0, 0], sizes = [1, 8, 8], strides = [1, 1, 1]} : vector<4x8x8xf32> to vector<1x8x8xf32>
    %70 = vector.shape_cast %69 : vector<1x8x8xf32> to vector<8x8xf32>
    %71 = tpu.concatenate %64, %66, %68, %70 in 1 : vector<8x8xf32>, vector<8x8xf32>, vector<8x8xf32>, vector<8x8xf32> -> vector<8x32xf32>
    %c0_26 = arith.constant 0 : index
    %c0_27 = arith.constant 0 : index
    %72 = vector.load %arg11[%c0_26, %c0_27] : memref<32x32xf32, #tpu.memory_space<vmem>>, vector<32x32xf32>
    %cst_28 = arith.constant dense<0.000000e+00> : vector<8x32xf32>
    %73 = tpu.matmul %71, %72, %cst_28 {dimension_numbers = #tpu.dot_dimension_numbers<[1], [0], [0], [1], [0, 0, 1, 1], [], []>} : vector<8x32xf32>, vector<32x32xf32>, vector<8x32xf32> -> vector<8x32xf32>
    %c0_29 = arith.constant 0 : index
    %c0_30 = arith.constant 0 : index
    %74 = vector.load %arg12[%c0_29, %c0_30] : memref<1x32xf32, #tpu.memory_space<vmem>>, vector<1x32xf32>
    %75 = vector.broadcast %74 : vector<1x32xf32> to vector<8x32xf32>
    %76 = arith.addf %73, %75 : vector<8x32xf32>
    %c0_31 = arith.constant 0 : index
    %c0_32 = arith.constant 0 : index
    %77 = vector.load %arg13[%c0_31, %c0_32] : memref<32x32xf32, #tpu.memory_space<vmem>>, vector<32x32xf32>
    %cst_33 = arith.constant dense<0.000000e+00> : vector<8x32xf32>
    %78 = tpu.matmul %1, %77, %cst_33 {dimension_numbers = #tpu.dot_dimension_numbers<[1], [0], [0], [1], [0, 0, 1, 1], [], []>} : vector<8x32xf32>, vector<32x32xf32>, vector<8x32xf32> -> vector<8x32xf32>
    %c0_34 = arith.constant 0 : index
    %c0_35 = arith.constant 0 : index
    %79 = vector.load %arg14[%c0_34, %c0_35] : memref<32x32xf32, #tpu.memory_space<vmem>>, vector<32x32xf32>
    %cst_36 = arith.constant dense<0.000000e+00> : vector<8x32xf32>
    %80 = tpu.matmul %76, %79, %cst_36 {dimension_numbers = #tpu.dot_dimension_numbers<[1], [0], [0], [1], [0, 0, 1, 1], [], []>} : vector<8x32xf32>, vector<32x32xf32>, vector<8x32xf32> -> vector<8x32xf32>
    %81 = arith.addf %78, %80 : vector<8x32xf32>
    %c0_37 = arith.constant 0 : index
    %c0_38 = arith.constant 0 : index
    %82 = vector.load %arg15[%c0_37, %c0_38] : memref<1x32xf32, #tpu.memory_space<vmem>>, vector<1x32xf32>
    %83 = vector.broadcast %82 : vector<1x32xf32> to vector<8x32xf32>
    %84 = arith.addf %81, %83 : vector<8x32xf32>
    %85 = arith.negf %84 : vector<8x32xf32>
    %86 = math.exp %85 : vector<8x32xf32>
    %cst_39 = arith.constant 1.000000e+00 : f32
    %87 = vector.broadcast %cst_39 : f32 to vector<8x32xf32>
    %88 = arith.addf %87, %86 : vector<8x32xf32>
    %89 = arith.divf %87, %88 : vector<8x32xf32>
    %90 = arith.mulf %89, %76 : vector<8x32xf32>
    %cst_40 = arith.constant 1.000000e+00 : f32
    %91 = vector.broadcast %cst_40 : f32 to vector<8x32xf32>
    %92 = arith.subf %91, %89 : vector<8x32xf32>
    %93 = arith.mulf %92, %1 : vector<8x32xf32>
    %94 = arith.addf %90, %93 : vector<8x32xf32>
    %cst_41 = arith.constant dense<0.000000e+00> : vector<8xf32>
    %95 = vector.multi_reduction <add>, %94, %cst_41 [1] : vector<8x32xf32> to vector<8xf32>
    %96 = vector.shape_cast %95 : vector<8xf32> to vector<8x1xf32>
    %cst_42 = arith.constant 3.200000e+01 : f32
    %97 = vector.broadcast %cst_42 : f32 to vector<8x1xf32>
    %98 = arith.divf %96, %97 : vector<8x1xf32>
    %99 = vector.broadcast %98 : vector<8x1xf32> to vector<8x32xf32>
    %100 = arith.subf %94, %99 : vector<8x32xf32>
    %101 = arith.mulf %100, %100 : vector<8x32xf32>
    %cst_43 = arith.constant dense<0.000000e+00> : vector<8xf32>
    %102 = vector.multi_reduction <add>, %101, %cst_43 [1] : vector<8x32xf32> to vector<8xf32>
    %103 = vector.shape_cast %102 : vector<8xf32> to vector<8x1xf32>
    %cst_44 = arith.constant 3.200000e+01 : f32
    %104 = vector.broadcast %cst_44 : f32 to vector<8x1xf32>
    %105 = arith.divf %103, %104 : vector<8x1xf32>
    %106 = vector.broadcast %98 : vector<8x1xf32> to vector<8x32xf32>
    %107 = arith.subf %94, %106 : vector<8x32xf32>
    %cst_45 = arith.constant 9.99999996E-13 : f32
    %108 = vector.broadcast %cst_45 : f32 to vector<8x1xf32>
    %109 = arith.addf %105, %108 : vector<8x1xf32>
    %110 = math.rsqrt %109 : vector<8x1xf32>
    %111 = vector.broadcast %110 : vector<8x1xf32> to vector<8x32xf32>
    %112 = arith.mulf %107, %111 : vector<8x32xf32>
    %c0_46 = arith.constant 0 : index
    %c0_47 = arith.constant 0 : index
    %113 = vector.load %arg16[%c0_46, %c0_47] : memref<1x32xf32, #tpu.memory_space<vmem>>, vector<1x32xf32>
    %114 = vector.broadcast %113 : vector<1x32xf32> to vector<8x32xf32>
    %115 = arith.mulf %112, %114 : vector<8x32xf32>
    %c0_48 = arith.constant 0 : index
    %c0_49 = arith.constant 0 : index
    %116 = vector.load %arg17[%c0_48, %c0_49] : memref<1x32xf32, #tpu.memory_space<vmem>>, vector<1x32xf32>
    %117 = vector.broadcast %116 : vector<1x32xf32> to vector<8x32xf32>
    %118 = arith.addf %115, %117 : vector<8x32xf32>
    %c0_50 = arith.constant 0 : index
    %c0_51 = arith.constant 0 : index
    %c0_52 = arith.constant 0 : index
    %119 = vector.load %arg18[%c0_50, %c0_51, %c0_52] : memref<1x8x32xf32, #tpu.memory_space<vmem>>, vector<1x8x32xf32>
    %120 = vector.shape_cast %119 : vector<1x8x32xf32> to vector<8x32xf32>
    %121 = vector.shape_cast %118 : vector<8x32xf32> to vector<1x8x32xf32>
    tpu.vector_store %arg18[%c0_50, %c0_51, %c0_52], %121 {strides = array<i32>} : memref<1x8x32xf32, #tpu.memory_space<vmem>>, vector<1x8x32xf32>,
    return
  }
  func.func @transform_0(%arg0: i32, %arg1: i32) -> (i32, i32, i32) {
    %c0_i32 = arith.constant 0 : i32
    %c0_i32_0 = arith.constant 0 : i32
    return %arg0, %arg1, %c0_i32 : i32, i32, i32
  }
  func.func @transform_1(%arg0: i32, %arg1: i32) -> (i32, i32, i32) {
    %c0_i32 = arith.constant 0 : i32
    %c0_i32_0 = arith.constant 0 : i32
    %c0_i32_1 = arith.constant 0 : i32
    return %arg0, %c0_i32, %c0_i32_0 : i32, i32, i32
  }
  func.func @transform_2(%arg0: i32, %arg1: i32) -> (i32, i32, i32) {
    %c0_i32 = arith.constant 0 : i32
    %c0_i32_0 = arith.constant 0 : i32
    return %arg0, %arg1, %c0_i32 : i32, i32, i32
  }
  func.func @transform_3(%arg0: i32, %arg1: i32) -> (i32, i32) {
    %c0_i32 = arith.constant 0 : i32
    %c0_i32_0 = arith.constant 0 : i32
    %c0_i32_1 = arith.constant 0 : i32
    return %c0_i32, %c0_i32_0 : i32, i32
  }
  func.func @transform_4(%arg0: i32, %arg1: i32) -> (i32, i32) {
    %c0_i32 = arith.constant 0 : i32
    %c0_i32_0 = arith.constant 0 : i32
    %c0_i32_1 = arith.constant 0 : i32
    return %c0_i32, %c0_i32_0 : i32, i32
  }
  func.func @transform_5(%arg0: i32, %arg1: i32) -> (i32, i32) {
    %c0_i32 = arith.constant 0 : i32
    %c0_i32_0 = arith.constant 0 : i32
    %c0_i32_1 = arith.constant 0 : i32
    return %c0_i32, %c0_i32_0 : i32, i32
  }
  func.func @transform_6(%arg0: i32, %arg1: i32) -> (i32, i32) {
    %c0_i32 = arith.constant 0 : i32
    %c0_i32_0 = arith.constant 0 : i32
    %c0_i32_1 = arith.constant 0 : i32
    return %c0_i32, %c0_i32_0 : i32, i32
  }
  func.func @transform_7(%arg0: i32, %arg1: i32) -> (i32, i32) {
    %c0_i32 = arith.constant 0 : i32
    %c0_i32_0 = arith.constant 0 : i32
    %c0_i32_1 = arith.constant 0 : i32
    return %c0_i32, %c0_i32_0 : i32, i32
  }
  func.func @transform_8(%arg0: i32, %arg1: i32) -> (i32, i32) {
    %c0_i32 = arith.constant 0 : i32
    %c0_i32_0 = arith.constant 0 : i32
    %c0_i32_1 = arith.constant 0 : i32
    return %c0_i32, %c0_i32_0 : i32, i32
  }
  func.func @transform_9(%arg0: i32, %arg1: i32) -> (i32, i32) {
    %c0_i32 = arith.constant 0 : i32
    %c0_i32_0 = arith.constant 0 : i32
    %c0_i32_1 = arith.constant 0 : i32
    return %c0_i32, %c0_i32_0 : i32, i32
  }
  func.func @transform_10(%arg0: i32, %arg1: i32) -> (i32, i32) {
    %c0_i32 = arith.constant 0 : i32
    %c0_i32_0 = arith.constant 0 : i32
    %c0_i32_1 = arith.constant 0 : i32
    return %c0_i32, %c0_i32_0 : i32, i32
  }
  func.func @transform_11(%arg0: i32, %arg1: i32) -> (i32, i32) {
    %c0_i32 = arith.constant 0 : i32
    %c0_i32_0 = arith.constant 0 : i32
    %c0_i32_1 = arith.constant 0 : i32
    return %c0_i32, %c0_i32_0 : i32, i32
  }
  func.func @transform_12(%arg0: i32, %arg1: i32) -> (i32, i32) {
    %c0_i32 = arith.constant 0 : i32
    %c0_i32_0 = arith.constant 0 : i32
    %c0_i32_1 = arith.constant 0 : i32
    return %c0_i32, %c0_i32_0 : i32, i32
  }
  func.func @transform_13(%arg0: i32, %arg1: i32) -> (i32, i32) {
    %c0_i32 = arith.constant 0 : i32
    %c0_i32_0 = arith.constant 0 : i32
    %c0_i32_1 = arith.constant 0 : i32
    return %c0_i32, %c0_i32_0 : i32, i32
  }
  func.func @transform_14(%arg0: i32, %arg1: i32) -> (i32, i32) {
    %c0_i32 = arith.constant 0 : i32
    %c0_i32_0 = arith.constant 0 : i32
    %c0_i32_1 = arith.constant 0 : i32
    return %c0_i32, %c0_i32_0 : i32, i32
  }
  func.func @transform_15(%arg0: i32, %arg1: i32) -> (i32, i32) {
    %c0_i32 = arith.constant 0 : i32
    %c0_i32_0 = arith.constant 0 : i32
    %c0_i32_1 = arith.constant 0 : i32
    return %c0_i32, %c0_i32_0 : i32, i32
  }
  func.func @transform_16(%arg0: i32, %arg1: i32) -> (i32, i32, i32) {
    %c0_i32 = arith.constant 0 : i32
    %c0_i32_0 = arith.constant 0 : i32
    return %arg0, %arg1, %c0_i32 : i32, i32, i32
  }
}

</mosaic_0001>

<llo_original>
// kernel: tpu_custom_call.1
$region0: #{tpu_custom_call.1}
  #allocation0 [shape = 'u32[]', space=smem, size = 0x4, offset = 0x4, fixed_abs, tag = 'smem constant byte address 0x4 - core index']
  #allocation1 [shape = 'u32[144,128]{1,0:T(1,128)}', space=vmem, size = 0x12000, scoped, tag = 'internal scratch']
  %s0 = inlined_call_operand.hbm [shape: f32[2,8,32], index: 0, kind: input, shape index: {}]
  %s1 = inlined_call_operand.hbm [shape: f32[2,8,32], index: 1, kind: input, shape index: {}]
  %s2 = inlined_call_operand.hbm [shape: f32[2,8,8], index: 2, kind: input, shape index: {}]
  %s3 = inlined_call_operand.vmem [shape: f32[32,8], index: 3, kind: input, shape index: {}]
  %s4 = inlined_call_operand.hbm [shape: f32[1,8], index: 4, kind: input, shape index: {}]
  %s5 = inlined_call_operand.vmem [shape: f32[32,8], index: 5, kind: input, shape index: {}]
  %s6 = inlined_call_operand.hbm [shape: f32[1,8], index: 6, kind: input, shape index: {}]
  %s7 = inlined_call_operand.vmem [shape: f32[32,32], index: 7, kind: input, shape index: {}]
  %s8 = inlined_call_operand.hbm [shape: f32[1,32], index: 8, kind: input, shape index: {}]
  %s9 = inlined_call_operand.vmem [shape: f32[32,32], index: 9, kind: input, shape index: {}]
  %s10 = inlined_call_operand.vmem [shape: f32[1,32], index: 10, kind: input, shape index: {}]
  %s11 = inlined_call_operand.vmem [shape: f32[32,32], index: 11, kind: input, shape index: {}]
  %s12 = inlined_call_operand.hbm [shape: f32[32,32], index: 12, kind: input, shape index: {}]
  %s13 = inlined_call_operand.vmem [shape: f32[1,32], index: 13, kind: input, shape index: {}]
  %s14 = inlined_call_operand.vmem [shape: f32[1,32], index: 14, kind: input, shape index: {}]
  %s15 = inlined_call_operand.vmem [shape: f32[1,32], index: 15, kind: input, shape index: {}]
  %s16 = inlined_call_operand.hbm [shape: f32[2,8,32], index: 16, kind: output, shape index: {}]
  %s17 = sld [smem:[#allocation0]]
  $region125: #{tpu_custom_call.1} parent=0
    _
  %s19 = ssub.s32 1, %s17
  %s20 = scalar_select 0, %s19, %s17
  $region1: #{tpu_custom_call.1} parent=0
    #allocation2 [shape = 'u8[8192]{0}', space=vmem, size = 0x2000, scoped, tag = 'input window, operand 0']
    #allocation3 [shape = 's32[2]{0}', space=sflag, size = 0x8, scoped, tag = 'scoped memory for tpu_custom_call.1']
    #allocation4 [shape = 's32[2]{0}', space=sflag, size = 0x8, scoped, tag = 'scoped memory for tpu_custom_call.1']
    #allocation5 [shape = 'u8[8192]{0}', space=vmem, size = 0x2000, scoped, tag = 'input window, operand 1']
    #allocation6 [shape = 's32[2]{0}', space=sflag, size = 0x8, scoped, tag = 'scoped memory for tpu_custom_call.1']
    #allocation7 [shape = 'u8[8192]{0}', space=vmem, size = 0x2000, scoped, tag = 'input window, operand 2']
    #allocation8 [shape = 'u8[512]{0}', space=vmem, size = 0x400, scoped, tag = 'input window, operand 4, single buffered']
    #allocation9 [shape = 's32[1]{0}', space=sflag, size = 0x4, scoped, tag = 'scoped memory for tpu_custom_call.1']
    #allocation10 [shape = 'u8[512]{0}', space=vmem, size = 0x400, scoped, tag = 'input window, operand 6, single buffered']
    #allocation11 [shape = 'u8[512]{0}', space=vmem, size = 0x400, scoped, tag = 'input window, operand 8, single buffered']
    #allocation12 [shape = 's32[1]{0}', space=sflag, size = 0x4, scoped, tag = 'scoped memory for tpu_custom_call.1']
    #allocation13 [shape = 'u8[16384]{0}', space=vmem, size = 0x4000, scoped, tag = 'input window, operand 12, single buffered']
    #allocation14 [shape = 'u8[8192]{0}', space=vmem, size = 0x2000, scoped, tag = 'output window, operand 0']
    %21 = vsyncpa [#allocation3], 0
    %s22 = scalar_lea.sflag [#allocation3], 1
    %23 = vsyncpa %s22, 0
    %24 = vsyncpa [#allocation6], 0
    %s25 = scalar_lea.sflag [#allocation6], 1
    %26 = vsyncpa %s25, 0
    %27 = vsyncpa [#allocation9], 0
    %28 = vsyncpa [#allocation12], 0
    %29 = vsyncpa [#allocation4], 0
    %s30 = scalar_lea.sflag [#allocation4], 1
    %31 = vsyncpa %s30, 0
    loop: start=0, step=1, limit=4
    $region2: #{tpu_custom_call.1} parent=1 // loop_pre_header
      _
    $region3: #{tpu_custom_call.1} parent=1 // loop_header
      %s33 = sphi 0, %s37
      %p34 = scmp.ge.s32.totalorder %s33, 4
      %s40 = sphi 0, %s52
      %s41 = sphi 0, %s48
      %s42 = sphi 0, %s40
      %s43 = sphi 0, %s41
      %s44 = sphi 0, %s42
      %s45 = sphi 0, %s43
      %s57 = sphi 0, %s59
      %s60 = sphi 0, %s57
      %s61 = sphi 0, %s60
      %s77 = sphi 0, %s61
      %s83 = sphi 0, %s85
      %s86 = sphi 0, %s83
      %s87 = sphi 0, %s86
      %s103 = sphi 0, %s87
      %s111 = sphi 0, %s113
      %s114 = sphi 0, %s111
      %s115 = sphi 0, %s114
      %s131 = sphi 0, %s115
      %s135 = sphi 0, %s135
      %s137 = sphi 0, %s135
      %s138 = sphi 0, %s137
      %s152 = sphi 0, %s138
      %s156 = sphi 0, %s156
      %s158 = sphi 0, %s156
      %s159 = sphi 0, %s158
      %s173 = sphi 0, %s159
      %s177 = sphi 0, %s177
      %s179 = sphi 0, %s177
      %s180 = sphi 0, %s179
      %s194 = sphi 0, %s180
      %s198 = sphi 0, %s198
      %s200 = sphi 0, %s198
      %s201 = sphi 0, %s200
      %s215 = sphi 0, %s201
      %s219 = sphi 0, %s219
      %s221 = sphi 0, %s219
      %s222 = sphi 0, %s221
      %s236 = sphi 0, %s222
      %s240 = sphi 0, %s240
      %s242 = sphi 0, %s240
      %s243 = sphi 0, %s242
      %s257 = sphi 0, %s243
      %s261 = sphi 0, %s261
      %s263 = sphi 0, %s261
      %s264 = sphi 0, %s263
      %s278 = sphi 0, %s264
      %s282 = sphi 0, %s282
      %s284 = sphi 0, %s282
      %s285 = sphi 0, %s284
      %s299 = sphi 0, %s285
      %s303 = sphi 0, %s303
      %s305 = sphi 0, %s303
      %s306 = sphi 0, %s305
      %s320 = sphi 0, %s306
      %s324 = sphi 0, %s324
      %s326 = sphi 0, %s324
      %s327 = sphi 0, %s326
      %s341 = sphi 0, %s327
      %s345 = sphi 0, %s345
      %s347 = sphi 0, %s345
      %s348 = sphi 0, %s347
      %s362 = sphi 0, %s348
      %s366 = sphi 0, %s366
      %s368 = sphi 0, %s366
      %s369 = sphi 0, %s368
      %s383 = sphi 0, %s369
      %s387 = sphi 0, %s387
      %s389 = sphi 0, %s387
      %s390 = sphi 0, %s389
      %s404 = sphi 0, %s390
      %s412 = sphi 0, %s414
      %s415 = sphi 0, %s412
      %s416 = sphi 0, %s415
      %s432 = sphi 0, %s416
    $region4: #{tpu_custom_call.1} parent=1 // loop_header_branch
      %36 = sbr.rel (%p34) target = $region8
    $region5: #{tpu_custom_call.1} parent=1 // loop_body
      %s38 = ssub.s32 %s33, 1
      %s39 = ssub.s32 %s33, 2
      %s46 = sadd.s32 1, %s41
      %p47 = scmp.ge.s32.totalorder %s46, 1
      %s48 = scalar_select %p47, 0, %s46
      %s49 = sadd.s32 1, %s40
      %s50 = scalar_select %p47, %s49, %s40
      %p51 = scmp.ge.s32.totalorder %s50, 2
      %s52 = scalar_select %p51, 0, %s50
      %s53 = ssub.s32 %s40, %s52
      %s54 = ssub.s32 %s41, %s48
      %s55 = sor.u32 %s53, %s54
      %p56 = scmp.eq.s32.totalorder %s55, 0
      %s58 = sadd.s32 %s57, 1
      %s59 = scalar_select %p56, %s57, %s58
      %p62 = pneg %p56
      %p63 = scmp.eq.s32.totalorder %s33, 1
      %p64 = por %p62, %p63
      %p65 = scmp.ne.s32.totalorder %s57, %s60
      %p66 = scmp.eq.s32.totalorder %s33, 0
      %p67 = por %p65, %p66
      %p68 = scmp.ne.s32.totalorder %s57, %s60
      %p69 = scmp.eq.s32.totalorder %s38, 1
      %p70 = por %p68, %p69
      %p71 = scmp.ne.s32.totalorder %s60, %s61
      %p72 = scmp.eq.s32.totalorder %s38, 0
      %p73 = por %p71, %p72
      %p74 = scmp.ne.s32.totalorder %s60, %s61
      %p75 = scmp.eq.s32.totalorder %s39, 1
      %p76 = por %p74, %p75
      %p78 = scmp.ne.s32.totalorder %s61, %s77
      %p79 = scmp.eq.s32.totalorder %s39, 0
      %p80 = por %p78, %p79
      %s81 = ssub.s32 %s40, %s52
      %p82 = scmp.eq.s32.totalorder %s81, 0
      %s84 = sadd.s32 %s83, 1
      %s85 = scalar_select %p82, %s83, %s84
      %p88 = pneg %p82
      %p89 = scmp.eq.s32.totalorder %s33, 1
      %p90 = por %p88, %p89
      %p91 = scmp.ne.s32.totalorder %s83, %s86
      %p92 = scmp.eq.s32.totalorder %s33, 0
      %p93 = por %p91, %p92
      %p94 = scmp.ne.s32.totalorder %s83, %s86
      %p95 = scmp.eq.s32.totalorder %s38, 1
      %p96 = por %p94, %p95
      %p97 = scmp.ne.s32.totalorder %s86, %s87
      %p98 = scmp.eq.s32.totalorder %s38, 0
      %p99 = por %p97, %p98
      %p100 = scmp.ne.s32.totalorder %s86, %s87
      %p101 = scmp.eq.s32.totalorder %s39, 1
      %p102 = por %p100, %p101
      %p104 = scmp.ne.s32.totalorder %s87, %s103
      %p105 = scmp.eq.s32.totalorder %s39, 0
      %p106 = por %p104, %p105
      %s107 = ssub.s32 %s40, %s52
      %s108 = ssub.s32 %s41, %s48
      %s109 = sor.u32 %s107, %s108
      %p110 = scmp.eq.s32.totalorder %s109, 0
      %s112 = sadd.s32 %s111, 1
      %s113 = scalar_select %p110, %s111, %s112
      %p116 = pneg %p110
      %p117 = scmp.eq.s32.totalorder %s33, 1
      %p118 = por %p116, %p117
      %p119 = scmp.ne.s32.totalorder %s111, %s114
      %p120 = scmp.eq.s32.totalorder %s33, 0
      %p121 = por %p119, %p120
      %p122 = scmp.ne.s32.totalorder %s111, %s114
      %p123 = scmp.eq.s32.totalorder %s38, 1
      %p124 = por %p122, %p123
      %p125 = scmp.ne.s32.totalorder %s114, %s115
      %p126 = scmp.eq.s32.totalorder %s38, 0
      %p127 = por %p125, %p126
      %p128 = scmp.ne.s32.totalorder %s114, %s115
      %p129 = scmp.eq.s32.totalorder %s39, 1
      %p130 = por %p128, %p129
      %p132 = scmp.ne.s32.totalorder %s115, %s131
      %p133 = scmp.eq.s32.totalorder %s39, 0
      %p134 = por %p132, %p133
      %s136 = sadd.s32 %s135, 1
      %p139 = scmp.eq.s32.totalorder %s33, 1
      %p140 = scmp.ne.s32.totalorder %s135, %s137
      %p141 = scmp.eq.s32.totalorder %s33, 0
      %p142 = por %p140, %p141
      %p143 = scmp.ne.s32.totalorder %s135, %s137
      %p144 = scmp.eq.s32.totalorder %s38, 1
      %p145 = por %p143, %p144
      %p146 = scmp.ne.s32.totalorder %s137, %s138
      %p147 = scmp.eq.s32.totalorder %s38, 0
      %p148 = por %p146, %p147
      %p149 = scmp.ne.s32.totalorder %s137, %s138
      %p150 = scmp.eq.s32.totalorder %s39, 1
      %p151 = por %p149, %p150
      %p153 = scmp.ne.s32.totalorder %s138, %s152
      %p154 = scmp.eq.s32.totalorder %s39, 0
      %p155 = por %p153, %p154
      %s157 = sadd.s32 %s156, 1
      %p160 = scmp.eq.s32.totalorder %s33, 1
      %p161 = scmp.ne.s32.totalorder %s156, %s158
      %p162 = scmp.eq.s32.totalorder %s33, 0
      %p163 = por %p161, %p162
      %p164 = scmp.ne.s32.totalorder %s156, %s158
      %p165 = scmp.eq.s32.totalorder %s38, 1
      %p166 = por %p164, %p165
      %p167 = scmp.ne.s32.totalorder %s158, %s159
      %p168 = scmp.eq.s32.totalorder %s38, 0
      %p169 = por %p167, %p168
      %p170 = scmp.ne.s32.totalorder %s158, %s159
      %p171 = scmp.eq.s32.totalorder %s39, 1
      %p172 = por %p170, %p171
      %p174 = scmp.ne.s32.totalorder %s159, %s173
      %p175 = scmp.eq.s32.totalorder %s39, 0
      %p176 = por %p174, %p175
      %s178 = sadd.s32 %s177, 1
      %p181 = scmp.eq.s32.totalorder %s33, 1
      %p182 = scmp.ne.s32.totalorder %s177, %s179
      %p183 = scmp.eq.s32.totalorder %s33, 0
      %p184 = por %p182, %p183
      %p185 = scmp.ne.s32.totalorder %s177, %s179
      %p186 = scmp.eq.s32.totalorder %s38, 1
      %p187 = por %p185, %p186
      %p188 = scmp.ne.s32.totalorder %s179, %s180
      %p189 = scmp.eq.s32.totalorder %s38, 0
      %p190 = por %p188, %p189
      %p191 = scmp.ne.s32.totalorder %s179, %s180
      %p192 = scmp.eq.s32.totalorder %s39, 1
      %p193 = por %p191, %p192
      %p195 = scmp.ne.s32.totalorder %s180, %s194
      %p196 = scmp.eq.s32.totalorder %s39, 0
      %p197 = por %p195, %p196
      %s199 = sadd.s32 %s198, 1
      %p202 = scmp.eq.s32.totalorder %s33, 1
      %p203 = scmp.ne.s32.totalorder %s198, %s200
      %p204 = scmp.eq.s32.totalorder %s33, 0
      %p205 = por %p203, %p204
      %p206 = scmp.ne.s32.totalorder %s198, %s200
      %p207 = scmp.eq.s32.totalorder %s38, 1
      %p208 = por %p206, %p207
      %p209 = scmp.ne.s32.totalorder %s200, %s201
      %p210 = scmp.eq.s32.totalorder %s38, 0
      %p211 = por %p209, %p210
      %p212 = scmp.ne.s32.totalorder %s200, %s201
      %p213 = scmp.eq.s32.totalorder %s39, 1
      %p214 = por %p212, %p213
      %p216 = scmp.ne.s32.totalorder %s201, %s215
      %p217 = scmp.eq.s32.totalorder %s39, 0
      %p218 = por %p216, %p217
      %s220 = sadd.s32 %s219, 1
      %p223 = scmp.eq.s32.totalorder %s33, 1
      %p224 = scmp.ne.s32.totalorder %s219, %s221
      %p225 = scmp.eq.s32.totalorder %s33, 0
      %p226 = por %p224, %p225
      %p227 = scmp.ne.s32.totalorder %s219, %s221
      %p228 = scmp.eq.s32.totalorder %s38, 1
      %p229 = por %p227, %p228
      %p230 = scmp.ne.s32.totalorder %s221, %s222
      %p231 = scmp.eq.s32.totalorder %s38, 0
      %p232 = por %p230, %p231
      %p233 = scmp.ne.s32.totalorder %s221, %s222
      %p234 = scmp.eq.s32.totalorder %s39, 1
      %p235 = por %p233, %p234
      %p237 = scmp.ne.s32.totalorder %s222, %s236
      %p238 = scmp.eq.s32.totalorder %s39, 0
      %p239 = por %p237, %p238
      %s241 = sadd.s32 %s240, 1
      %p244 = scmp.eq.s32.totalorder %s33, 1
      %p245 = scmp.ne.s32.totalorder %s240, %s242
      %p246 = scmp.eq.s32.totalorder %s33, 0
      %p247 = por %p245, %p246
      %p248 = scmp.ne.s32.totalorder %s240, %s242
      %p249 = scmp.eq.s32.totalorder %s38, 1
      %p250 = por %p248, %p249
      %p251 = scmp.ne.s32.totalorder %s242, %s243
      %p252 = scmp.eq.s32.totalorder %s38, 0
      %p253 = por %p251, %p252
      %p254 = scmp.ne.s32.totalorder %s242, %s243
      %p255 = scmp.eq.s32.totalorder %s39, 1
      %p256 = por %p254, %p255
      %p258 = scmp.ne.s32.totalorder %s243, %s257
      %p259 = scmp.eq.s32.totalorder %s39, 0
      %p260 = por %p258, %p259
      %s262 = sadd.s32 %s261, 1
      %p265 = scmp.eq.s32.totalorder %s33, 1
      %p266 = scmp.ne.s32.totalorder %s261, %s263
      %p267 = scmp.eq.s32.totalorder %s33, 0
      %p268 = por %p266, %p267
      %p269 = scmp.ne.s32.totalorder %s261, %s263
      %p270 = scmp.eq.s32.totalorder %s38, 1
      %p271 = por %p269, %p270
      %p272 = scmp.ne.s32.totalorder %s263, %s264
      %p273 = scmp.eq.s32.totalorder %s38, 0
      %p274 = por %p272, %p273
      %p275 = scmp.ne.s32.totalorder %s263, %s264
      %p276 = scmp.eq.s32.totalorder %s39, 1
      %p277 = por %p275, %p276
      %p279 = scmp.ne.s32.totalorder %s264, %s278
      %p280 = scmp.eq.s32.totalorder %s39, 0
      %p281 = por %p279, %p280
      %s283 = sadd.s32 %s282, 1
      %p286 = scmp.eq.s32.totalorder %s33, 1
      %p287 = scmp.ne.s32.totalorder %s282, %s284
      %p288 = scmp.eq.s32.totalorder %s33, 0
      %p289 = por %p287, %p288
      %p290 = scmp.ne.s32.totalorder %s282, %s284
      %p291 = scmp.eq.s32.totalorder %s38, 1
      %p292 = por %p290, %p291
      %p293 = scmp.ne.s32.totalorder %s284, %s285
      %p294 = scmp.eq.s32.totalorder %s38, 0
      %p295 = por %p293, %p294
      %p296 = scmp.ne.s32.totalorder %s284, %s285
      %p297 = scmp.eq.s32.totalorder %s39, 1
      %p298 = por %p296, %p297
      %p300 = scmp.ne.s32.totalorder %s285, %s299
      %p301 = scmp.eq.s32.totalorder %s39, 0
      %p302 = por %p300, %p301
      %s304 = sadd.s32 %s303, 1
      %p307 = scmp.eq.s32.totalorder %s33, 1
      %p308 = scmp.ne.s32.totalorder %s303, %s305
      %p309 = scmp.eq.s32.totalorder %s33, 0
      %p310 = por %p308, %p309
      %p311 = scmp.ne.s32.totalorder %s303, %s305
      %p312 = scmp.eq.s32.totalorder %s38, 1
      %p313 = por %p311, %p312
      %p314 = scmp.ne.s32.totalorder %s305, %s306
      %p315 = scmp.eq.s32.totalorder %s38, 0
      %p316 = por %p314, %p315
      %p317 = scmp.ne.s32.totalorder %s305, %s306
      %p318 = scmp.eq.s32.totalorder %s39, 1
      %p319 = por %p317, %p318
      %p321 = scmp.ne.s32.totalorder %s306, %s320
      %p322 = scmp.eq.s32.totalorder %s39, 0
      %p323 = por %p321, %p322
      %s325 = sadd.s32 %s324, 1
      %p328 = scmp.eq.s32.totalorder %s33, 1
      %p329 = scmp.ne.s32.totalorder %s324, %s326
      %p330 = scmp.eq.s32.totalorder %s33, 0
      %p331 = por %p329, %p330
      %p332 = scmp.ne.s32.totalorder %s324, %s326
      %p333 = scmp.eq.s32.totalorder %s38, 1
      %p334 = por %p332, %p333
      %p335 = scmp.ne.s32.totalorder %s326, %s327
      %p336 = scmp.eq.s32.totalorder %s38, 0
      %p337 = por %p335, %p336
      %p338 = scmp.ne.s32.totalorder %s326, %s327
      %p339 = scmp.eq.s32.totalorder %s39, 1
      %p340 = por %p338, %p339
      %p342 = scmp.ne.s32.totalorder %s327, %s341
      %p343 = scmp.eq.s32.totalorder %s39, 0
      %p344 = por %p342, %p343
      %s346 = sadd.s32 %s345, 1
      %p349 = scmp.eq.s32.totalorder %s33, 1
      %p350 = scmp.ne.s32.totalorder %s345, %s347
      %p351 = scmp.eq.s32.totalorder %s33, 0
      %p352 = por %p350, %p351
      %p353 = scmp.ne.s32.totalorder %s345, %s347
      %p354 = scmp.eq.s32.totalorder %s38, 1
      %p355 = por %p353, %p354
      %p356 = scmp.ne.s32.totalorder %s347, %s348
      %p357 = scmp.eq.s32.totalorder %s38, 0
      %p358 = por %p356, %p357
      %p359 = scmp.ne.s32.totalorder %s347, %s348
      %p360 = scmp.eq.s32.totalorder %s39, 1
      %p361 = por %p359, %p360
      %p363 = scmp.ne.s32.totalorder %s348, %s362
      %p364 = scmp.eq.s32.totalorder %s39, 0
      %p365 = por %p363, %p364
      %s367 = sadd.s32 %s366, 1
      %p370 = scmp.eq.s32.totalorder %s33, 1
      %p371 = scmp.ne.s32.totalorder %s366, %s368
      %p372 = scmp.eq.s32.totalorder %s33, 0
      %p373 = por %p371, %p372
      %p374 = scmp.ne.s32.totalorder %s366, %s368
      %p375 = scmp.eq.s32.totalorder %s38, 1
      %p376 = por %p374, %p375
      %p377 = scmp.ne.s32.totalorder %s368, %s369
      %p378 = scmp.eq.s32.totalorder %s38, 0
      %p379 = por %p377, %p378
      %p380 = scmp.ne.s32.totalorder %s368, %s369
      %p381 = scmp.eq.s32.totalorder %s39, 1
      %p382 = por %p380, %p381
      %p384 = scmp.ne.s32.totalorder %s369, %s383
      %p385 = scmp.eq.s32.totalorder %s39, 0
      %p386 = por %p384, %p385
      %s388 = sadd.s32 %s387, 1
      %p391 = scmp.eq.s32.totalorder %s33, 1
      %p392 = scmp.ne.s32.totalorder %s387, %s389
      %p393 = scmp.eq.s32.totalorder %s33, 0
      %p394 = por %p392, %p393
      %p395 = scmp.ne.s32.totalorder %s387, %s389
      %p396 = scmp.eq.s32.totalorder %s38, 1
      %p397 = por %p395, %p396
      %p398 = scmp.ne.s32.totalorder %s389, %s390
      %p399 = scmp.eq.s32.totalorder %s38, 0
      %p400 = por %p398, %p399
      %p401 = scmp.ne.s32.totalorder %s389, %s390
      %p402 = scmp.eq.s32.totalorder %s39, 1
      %p403 = por %p401, %p402
      %p405 = scmp.ne.s32.totalorder %s390, %s404
      %p406 = scmp.eq.s32.totalorder %s39, 0
      %p407 = por %p405, %p406
      %s408 = ssub.s32 %s40, %s52
      %s409 = ssub.s32 %s41, %s48
      %s410 = sor.u32 %s408, %s409
      %p411 = scmp.eq.s32.totalorder %s410, 0
      %s413 = sadd.s32 %s412, 1
      %s414 = scalar_select %p411, %s412, %s413
      %p417 = pneg %p411
      %p418 = scmp.eq.s32.totalorder %s33, 1
      %p419 = por %p417, %p418
      %p420 = scmp.ne.s32.totalorder %s412, %s415
      %p421 = scmp.eq.s32.totalorder %s33, 0
      %p422 = por %p420, %p421
      %p423 = scmp.ne.s32.totalorder %s412, %s415
      %p424 = scmp.eq.s32.totalorder %s38, 1
      %p425 = por %p423, %p424
      %p426 = scmp.ne.s32.totalorder %s415, %s416
      %p427 = scmp.eq.s32.totalorder %s38, 0
      %p428 = por %p426, %p427
      %p429 = scmp.ne.s32.totalorder %s415, %s416
      %p430 = scmp.eq.s32.totalorder %s39, 1
      %p431 = por %p429, %p430
      %p433 = scmp.ne.s32.totalorder %s416, %s432
      %p434 = scmp.eq.s32.totalorder %s39, 0
      %p435 = por %p433, %p434
      %p436 = scmp.le.s32.totalorder 1, %s33
      %p437 = scmp.lt.s32.totalorder %s33, 3
      %p438 = pnand %p436, %p437
      %p439 = pneg %p438
      // Predicated region
      $region9: #{tpu_custom_call.1} parent=5 // pred_check
        _
      $region10: #{tpu_custom_call.1} parent=5 // pred_check_branch
        %441 = sbr.rel (%p438) target = $region12
      $region11: #{tpu_custom_call.1} parent=5 // pred_region
        %s442 = ssub.s32 %s33, 1
        // Predicated region
        $region13: #{tpu_custom_call.1} parent=11 // pred_check
          %p443 = pneg %p148
        $region14: #{tpu_custom_call.1} parent=11 // pred_check_branch
          %445 = sbr.rel (%p443) target = $region16
        $region15: #{tpu_custom_call.1} parent=11 // pred_region
          _
        $region16: #{tpu_custom_call.1} parent=11 // pred_fallthru
          _
        // Predicated region
        $region17: #{tpu_custom_call.1} parent=11 // pred_check
          %p446 = pneg %p169
        $region18: #{tpu_custom_call.1} parent=11 // pred_check_branch
          %448 = sbr.rel (%p446) target = $region20
        $region19: #{tpu_custom_call.1} parent=11 // pred_region
          %s450 = ssub.s32 16, 16
          %451 = vsyncadd [#allocation9], %s450
          %s453 = sshll.u32 [#allocation8], 4
          %s454 = int_to_ptr.vmem [resolvable:$true] %s453
          %456 = dma.hbm_to_vmem [thread:$0]  %s4, 16, %s454, [#allocation9]
        $region20: #{tpu_custom_call.1} parent=11 // pred_fallthru
          _
        // Predicated region
        $region21: #{tpu_custom_call.1} parent=11 // pred_check
          %p457 = pneg %p190
        $region22: #{tpu_custom_call.1} parent=11 // pred_check_branch
          %459 = sbr.rel (%p457) target = $region24
        $region23: #{tpu_custom_call.1} parent=11 // pred_region
          _
        $region24: #{tpu_custom_call.1} parent=11 // pred_fallthru
          _
        // Predicated region
        $region25: #{tpu_custom_call.1} parent=11 // pred_check
          %p460 = pneg %p211
        $region26: #{tpu_custom_call.1} parent=11 // pred_check_branch
          %462 = sbr.rel (%p460) target = $region28
        $region27: #{tpu_custom_call.1} parent=11 // pred_region
          %s464 = ssub.s32 16, 16
          %465 = vsyncadd [#allocation9], %s464
          %s467 = sshll.u32 [#allocation10], 4
          %s468 = int_to_ptr.vmem [resolvable:$true] %s467
          %470 = dma.hbm_to_vmem [thread:$0]  %s6, 16, %s468, [#allocation9]
        $region28: #{tpu_custom_call.1} parent=11 // pred_fallthru
          _
        // Predicated region
        $region29: #{tpu_custom_call.1} parent=11 // pred_check
          %p471 = pneg %p232
        $region30: #{tpu_custom_call.1} parent=11 // pred_check_branch
          %473 = sbr.rel (%p471) target = $region32
        $region31: #{tpu_custom_call.1} parent=11 // pred_region
          _
        $region32: #{tpu_custom_call.1} parent=11 // pred_fallthru
          _
        // Predicated region
        $region33: #{tpu_custom_call.1} parent=11 // pred_check
          %p474 = pneg %p253
        $region34: #{tpu_custom_call.1} parent=11 // pred_check_branch
          %476 = sbr.rel (%p474) target = $region36
        $region35: #{tpu_custom_call.1} parent=11 // pred_region
          %s478 = ssub.s32 16, 16
          %479 = vsyncadd [#allocation12], %s478
          %s481 = sshll.u32 [#allocation11], 4
          %s482 = int_to_ptr.vmem [resolvable:$true] %s481
          %484 = dma.hbm_to_vmem [thread:$0]  %s8, 16, %s482, [#allocation12]
        $region36: #{tpu_custom_call.1} parent=11 // pred_fallthru
          _
        // Predicated region
        $region37: #{tpu_custom_call.1} parent=11 // pred_check
          %p485 = pneg %p274
        $region38: #{tpu_custom_call.1} parent=11 // pred_check_branch
          %487 = sbr.rel (%p485) target = $region40
        $region39: #{tpu_custom_call.1} parent=11 // pred_region
          _
        $region40: #{tpu_custom_call.1} parent=11 // pred_fallthru
          _
        // Predicated region
        $region41: #{tpu_custom_call.1} parent=11 // pred_check
          %p488 = pneg %p295
        $region42: #{tpu_custom_call.1} parent=11 // pred_check_branch
          %490 = sbr.rel (%p488) target = $region44
        $region43: #{tpu_custom_call.1} parent=11 // pred_region
          _
        $region44: #{tpu_custom_call.1} parent=11 // pred_fallthru
          _
        // Predicated region
        $region45: #{tpu_custom_call.1} parent=11 // pred_check
          %p491 = pneg %p316
        $region46: #{tpu_custom_call.1} parent=11 // pred_check_branch
          %493 = sbr.rel (%p491) target = $region48
        $region47: #{tpu_custom_call.1} parent=11 // pred_region
          _
        $region48: #{tpu_custom_call.1} parent=11 // pred_fallthru
          _
        // Predicated region
        $region49: #{tpu_custom_call.1} parent=11 // pred_check
          %p494 = pneg %p337
        $region50: #{tpu_custom_call.1} parent=11 // pred_check_branch
          %496 = sbr.rel (%p494) target = $region52
        $region51: #{tpu_custom_call.1} parent=11 // pred_region
          %s498 = ssub.s32 512, 512
          %499 = vsyncadd [#allocation12], %s498
          %s500 = sshll.u32 [#allocation13], 4
          %s501 = int_to_ptr.vmem [resolvable:$true] %s500
          %506 = dma.hbm_to_vmem [thread:$0]  %s12, 512, %s501, [#allocation12], 128, 128, 8
        $region52: #{tpu_custom_call.1} parent=11 // pred_fallthru
          _
        // Predicated region
        $region53: #{tpu_custom_call.1} parent=11 // pred_check
          %p507 = pneg %p358
        $region54: #{tpu_custom_call.1} parent=11 // pred_check_branch
          %509 = sbr.rel (%p507) target = $region56
        $region55: #{tpu_custom_call.1} parent=11 // pred_region
          _
        $region56: #{tpu_custom_call.1} parent=11 // pred_fallthru
          _
        // Predicated region
        $region57: #{tpu_custom_call.1} parent=11 // pred_check
          %p510 = pneg %p379
        $region58: #{tpu_custom_call.1} parent=11 // pred_check_branch
          %512 = sbr.rel (%p510) target = $region60
        $region59: #{tpu_custom_call.1} parent=11 // pred_region
          _
        $region60: #{tpu_custom_call.1} parent=11 // pred_fallthru
          _
        // Predicated region
        $region61: #{tpu_custom_call.1} parent=11 // pred_check
          %p513 = pneg %p400
        $region62: #{tpu_custom_call.1} parent=11 // pred_check_branch
          %515 = sbr.rel (%p513) target = $region64
        $region63: #{tpu_custom_call.1} parent=11 // pred_region
          _
        $region64: #{tpu_custom_call.1} parent=11 // pred_fallthru
          _
      $region12: #{tpu_custom_call.1} parent=5 // pred_fallthru
        _
      %p516 = scmp.lt.s32.totalorder %s33, 2
      // Predicated region
      $region65: #{tpu_custom_call.1} parent=5 // pred_check
        %p517 = pneg %p516
      $region66: #{tpu_custom_call.1} parent=5 // pred_check_branch
        %519 = sbr.rel (%p517) target = $region68
      $region67: #{tpu_custom_call.1} parent=5 // pred_region
        // Predicated region
        $region69: #{tpu_custom_call.1} parent=67 // pred_check
          %p520 = pneg %p67
        $region70: #{tpu_custom_call.1} parent=67 // pred_check_branch
          %522 = sbr.rel (%p520) target = $region72
        $region71: #{tpu_custom_call.1} parent=67 // pred_region
          %s523 = sand.u32 %s57, 1
          %s524 = scalar_lea.sflag [#allocation3], %s523
          %s525 = sand.u32 %s57, 1
          %s526 = smul.addr %s525, 8
          %s527 = scalar_lea.vmem [#allocation2], %s526
          %s529 = ssub.s32 128, 128
          %530 = vsyncadd %s524, %s529
          %s531 = sadd.s32 %s41, %s40
          %s532 = smul.addr %s531, 128
          %s533 = scalar_lea.hbm %s0, %s532
          %s535 = sshll.u32 %s527, 4
          %s536 = int_to_ptr.vmem [resolvable:$true] %s535
          %538 = dma.hbm_to_vmem [thread:$0]  %s533, 128, %s536, %s524
        $region72: #{tpu_custom_call.1} parent=67 // pred_fallthru
          _
        // Predicated region
        $region73: #{tpu_custom_call.1} parent=67 // pred_check
          %p539 = pneg %p93
        $region74: #{tpu_custom_call.1} parent=67 // pred_check_branch
          %541 = sbr.rel (%p539) target = $region76
        $region75: #{tpu_custom_call.1} parent=67 // pred_region
          %s542 = sand.u32 %s33, 1
          %s543 = scalar_lea.sflag [#allocation6], %s542
          %s544 = sand.u32 %s83, 1
          %s545 = smul.addr %s544, 8
          %s546 = scalar_lea.vmem [#allocation5], %s545
          %s548 = ssub.s32 128, 128
          %549 = vsyncadd %s543, %s548
          %s550 = smul.addr %s40, 128
          %s551 = scalar_lea.hbm %s1, %s550
          %s553 = sshll.u32 %s546, 4
          %s554 = int_to_ptr.vmem [resolvable:$true] %s553
          %556 = dma.hbm_to_vmem [thread:$0]  %s551, 128, %s554, %s543
        $region76: #{tpu_custom_call.1} parent=67 // pred_fallthru
          _
        // Predicated region
        $region77: #{tpu_custom_call.1} parent=67 // pred_check
          %p557 = pneg %p121
        $region78: #{tpu_custom_call.1} parent=67 // pred_check_branch
          %559 = sbr.rel (%p557) target = $region80
        $region79: #{tpu_custom_call.1} parent=67 // pred_region
          %s560 = sand.u32 %s33, 1
          %s561 = scalar_lea.sflag [#allocation6], %s560
          %s562 = sand.u32 %s111, 1
          %s563 = smul.addr %s562, 8
          %s564 = scalar_lea.vmem [#allocation7], %s563
          %s566 = ssub.s32 128, 128
          %567 = vsyncadd %s561, %s566
          %s568 = sadd.s32 %s41, %s40
          %s569 = smul.addr %s568, 128
          %s570 = scalar_lea.hbm %s2, %s569
          %s572 = sshll.u32 %s564, 4
          %s573 = int_to_ptr.vmem [resolvable:$true] %s572
          %575 = dma.hbm_to_vmem [thread:$0]  %s570, 128, %s573, %s561
        $region80: #{tpu_custom_call.1} parent=67 // pred_fallthru
          _
      $region68: #{tpu_custom_call.1} parent=5 // pred_fallthru
        _
      %p576 = scmp.le.s32.totalorder 1, %s33
      %p577 = scmp.lt.s32.totalorder %s33, 3
      %p578 = pnand %p576, %p577
      %p579 = pneg %p578
      // Predicated region
      $region81: #{tpu_custom_call.1} parent=5 // pred_check
        _
      $region82: #{tpu_custom_call.1} parent=5 // pred_check_branch
        %581 = sbr.rel (%p578) target = $region84
      $region83: #{tpu_custom_call.1} parent=5 // pred_region
        %s582 = ssub.s32 %s33, 1
        %s583 = sand.u32 %s60, 1
        %s584 = scalar_lea.sflag [#allocation3], %s583
        %s585 = sand.u32 %s60, 1
        %s586 = smul.addr %s585, 8
        %s587 = scalar_lea.vmem [#allocation2], %s586
        // Predicated region
        $region85: #{tpu_custom_call.1} parent=83 // pred_check
          %p588 = pneg %p73
        $region86: #{tpu_custom_call.1} parent=83 // pred_check_branch
          %590 = sbr.rel (%p588) target = $region88
        $region87: #{tpu_custom_call.1} parent=83 // pred_region
          %591 = dma.done %s584, 128
        $region88: #{tpu_custom_call.1} parent=83 // pred_fallthru
          _
        %s592 = sand.u32 %s38, 1
        %s593 = scalar_lea.sflag [#allocation6], %s592
        %s594 = sand.u32 %s86, 1
        %s595 = smul.addr %s594, 8
        %s596 = scalar_lea.vmem [#allocation5], %s595
        // Predicated region
        $region89: #{tpu_custom_call.1} parent=83 // pred_check
          %p597 = pneg %p99
        $region90: #{tpu_custom_call.1} parent=83 // pred_check_branch
          %599 = sbr.rel (%p597) target = $region92
        $region91: #{tpu_custom_call.1} parent=83 // pred_region
          %600 = dma.done %s593, 128
        $region92: #{tpu_custom_call.1} parent=83 // pred_fallthru
          _
        %s601 = sand.u32 %s38, 1
        %s602 = scalar_lea.sflag [#allocation6], %s601
        %s603 = sand.u32 %s114, 1
        %s604 = smul.addr %s603, 8
        %s605 = scalar_lea.vmem [#allocation7], %s604
        // Predicated region
        $region93: #{tpu_custom_call.1} parent=83 // pred_check
          %p606 = pneg %p127
        $region94: #{tpu_custom_call.1} parent=83 // pred_check_branch
          %608 = sbr.rel (%p606) target = $region96
        $region95: #{tpu_custom_call.1} parent=83 // pred_region
          %609 = dma.done %s602, 128
        $region96: #{tpu_custom_call.1} parent=83 // pred_fallthru
          _
        // Predicated region
        $region97: #{tpu_custom_call.1} parent=83 // pred_check
          %p610 = pneg %p169
        $region98: #{tpu_custom_call.1} parent=83 // pred_check_branch
          %612 = sbr.rel (%p610) target = $region100
        $region99: #{tpu_custom_call.1} parent=83 // pred_region
          %613 = dma.done [#allocation9], 16
        $region100: #{tpu_custom_call.1} parent=83 // pred_fallthru
          _
        // Predicated region
        $region101: #{tpu_custom_call.1} parent=83 // pred_check
          %p614 = pneg %p211
        $region102: #{tpu_custom_call.1} parent=83 // pred_check_branch
          %616 = sbr.rel (%p614) target = $region104
        $region103: #{tpu_custom_call.1} parent=83 // pred_region
          %617 = dma.done [#allocation9], 16
        $region104: #{tpu_custom_call.1} parent=83 // pred_fallthru
          _
        // Predicated region
        $region105: #{tpu_custom_call.1} parent=83 // pred_check
          %p618 = pneg %p253
        $region106: #{tpu_custom_call.1} parent=83 // pred_check_branch
          %620 = sbr.rel (%p618) target = $region108
        $region107: #{tpu_custom_call.1} parent=83 // pred_region
          %621 = dma.done [#allocation12], 16
        $region108: #{tpu_custom_call.1} parent=83 // pred_fallthru
          _
        // Predicated region
        $region109: #{tpu_custom_call.1} parent=83 // pred_check
          %p622 = pneg %p337
        $region110: #{tpu_custom_call.1} parent=83 // pred_check_branch
          %624 = sbr.rel (%p622) target = $region112
        $region111: #{tpu_custom_call.1} parent=83 // pred_region
          %625 = dma.done [#allocation12], 512
        $region112: #{tpu_custom_call.1} parent=83 // pred_fallthru
          _
        %s626 = sand.u32 %s60, 1
        %s627 = scalar_lea.sflag [#allocation3], %s626
        %s628 = sand.u32 %s60, 1
        %s629 = smul.addr %s628, 8
        %s630 = scalar_lea.vmem [#allocation2], %s629
        %p631 = pneg %p73
        %p632 = pneg %p70
        %s633 = sand.u32 %s38, 1
        %s634 = scalar_lea.sflag [#allocation6], %s633
        %s635 = sand.u32 %s86, 1
        %s636 = smul.addr %s635, 8
        %s637 = scalar_lea.vmem [#allocation5], %s636
        %p638 = pneg %p99
        %p639 = pneg %p96
        %s640 = sand.u32 %s38, 1
        %s641 = scalar_lea.sflag [#allocation6], %s640
        %s642 = sand.u32 %s114, 1
        %s643 = smul.addr %s642, 8
        %s644 = scalar_lea.vmem [#allocation7], %s643
        %p645 = pneg %p127
        %p646 = pneg %p124
        %p647 = pneg %p148
        %p648 = pneg %p145
        %p649 = pneg %p169
        %p650 = pneg %p166
        %p651 = pneg %p190
        %p652 = pneg %p187
        %p653 = pneg %p211
        %p654 = pneg %p208
        %p655 = pneg %p232
        %p656 = pneg %p229
        %p657 = pneg %p253
        %p658 = pneg %p250
        %p659 = pneg %p274
        %p660 = pneg %p271
        %p661 = pneg %p295
        %p662 = pneg %p292
        %p663 = pneg %p316
        %p664 = pneg %p313
        %p665 = pneg %p337
        %p666 = pneg %p334
        %p667 = pneg %p358
        %p668 = pneg %p355
        %p669 = pneg %p379
        %p670 = pneg %p376
        %p671 = pneg %p400
        %p672 = pneg %p397
        %p673 = pneg %p428
        %p674 = pneg %p425
        %s675 = sand.u32 %s415, 1
        %s676 = scalar_lea.sflag [#allocation4], %s675
        %s677 = sand.u32 %s415, 1
        %s678 = smul.addr %s677, 8
        %s679 = scalar_lea.vmem [#allocation14], %s678
        %v680 = vld [vmem:[%s587] sm:$0xff]
        %v681 = vld [vmem:[%s596] sm:$0xff]
        %v682 = vld [vmem:[%s605] sm:$0xff]
        %v683 = vld [vmem:[%s3] sm:$0xff]
        %v684 = vld [vmem:[%s3 + $0x8] sm:$0xff]
        %v685 = vld [vmem:[%s3 + $0x10] sm:$0xff]
        %v686 = vld [vmem:[%s3 + $0x18] sm:$0xff]
        %v687 = vld [vmem:[#allocation8] sm:$0x1]
        %v689 = vlaneseq
        %v690 = vshrl.u32 %v689, 7
        %v691 = vsub.s32 0, %v690
        %v692 = vrot.slane %v687, %v691
        %vm694 = vcmask 261120
        %v696 = vsel %vm694, %v680, 0
        %698 = vmatprep.subr.mxu0 0.0
        %699 = vmatpush1.msra.mxu0 0.0
        %700 = vmatprep.subr.mxu0 0.0
        %701 = vmatpush1.msra.mxu0 0.0
        %702 = vmatprep.subr.mxu0 0.0
        %703 = vmatpush1.msra.mxu0 0.0
        %704 = vmatprep.subr.mxu0 0.0
        %705 = vmatpush1.msra.mxu0 0.0
        %706 = vmatprep.subr.mxu0 0.0
        %707 = vmatpush1.msra.mxu0 0.0
        %708 = vmatprep.subr.mxu0 0.0
        %709 = vmatpush1.msra.mxu0 0.0
        %710 = vmatprep.subr.mxu0 0.0
        %711 = vmatpush1.msra.mxu0 0.0
        %712 = vmatprep.subr.mxu0 0.0
        %713 = vmatpush1.msra.mxu0 0.0
        %714 = vmatprep.subr.mxu0 0.0
        %715 = vmatpush1.msra.mxu0 0.0
        %716 = vmatprep.subr.mxu0 0.0
        %717 = vmatpush1.msra.mxu0 0.0
        %718 = vmatprep.subr.mxu0 0.0
        %719 = vmatpush1.msra.mxu0 0.0
        %720 = vmatprep.subr.mxu0 0.0
        %721 = vmatpush1.msra.mxu0 0.0
        %722 = vmatprep.subr.mxu0 0.0
        %723 = vmatpush1.msra.mxu0 %v686
        %724 = vmatprep.subr.mxu0 0.0
        %725 = vmatpush1.msra.mxu0 %v685
        %726 = vmatprep.subr.mxu0 0.0
        %727 = vmatpush1.msra.mxu0 %v684
        %728 = vmatprep.subr.mxu0 0.0
        %729 = vmatpush1.msra.mxu0 %v683
        %730 = vmatprep.subr.mxu0 0.0
        %731 = vmatpush2.msra.mxu0 0.0
        %732 = vmatprep.subr.mxu0 0.0
        %733 = vmatpush2.msra.mxu0 0.0
        %734 = vmatprep.subr.mxu0 0.0
        %735 = vmatpush2.msra.mxu0 0.0
        %736 = vmatprep.subr.mxu0 0.0
        %737 = vmatpush2.msra.mxu0 0.0
        %738 = vmatprep.subr.mxu0 0.0
        %739 = vmatpush2.msra.mxu0 0.0
        %740 = vmatprep.subr.mxu0 0.0
        %741 = vmatpush2.msra.mxu0 0.0
        %742 = vmatprep.subr.mxu0 0.0
        %743 = vmatpush2.msra.mxu0 0.0
        %744 = vmatprep.subr.mxu0 0.0
        %745 = vmatpush2.msra.mxu0 0.0
        %746 = vmatprep.subr.mxu0 0.0
        %747 = vmatpush2.msra.mxu0 0.0
        %748 = vmatprep.subr.mxu0 0.0
        %749 = vmatpush2.msra.mxu0 0.0
        %750 = vmatprep.subr.mxu0 0.0
        %751 = vmatpush2.msra.mxu0 0.0
        %752 = vmatprep.subr.mxu0 0.0
        %753 = vmatpush2.msra.mxu0 0.0
        %754 = vmatprep.subr.mxu0 0.0
        %755 = vmatpush2.msra.mxu0 0.0
        %756 = vmatprep.subr.mxu0 0.0
        %757 = vmatpush2.msra.mxu0 0.0
        %758 = vmatprep.subr.mxu0 0.0
        %759 = vmatpush2.msra.mxu0 0.0
        %760 = vmatprep.subr.mxu0 0.0
        %761 = vmatpush2.msra.mxu0 0.0
        %762 = vmatprep.mubr.f32.mxu0 0.0
        %763 = vmatmul.mubr.f32.gmra.mxu0 %v696
        %v764 = vpop.f32.mrf.mxu0
        %v765 = vadd.f32 %v692, %v764
        %v766 = vpop.f32.mrf.mxu0
        %767 = vdwg.mxu0
        %v768 = vld [vmem:[%s5] sm:$0xff]
        %v769 = vld [vmem:[%s5 + $0x8] sm:$0xff]
        %v770 = vld [vmem:[%s5 + $0x10] sm:$0xff]
        %v771 = vld [vmem:[%s5 + $0x18] sm:$0xff]
        %v772 = vld [vmem:[#allocation10] sm:$0x1]
        %v774 = vlaneseq
        %v775 = vshrl.u32 %v774, 7
        %v776 = vsub.s32 0, %v775
        %v777 = vrot.slane %v772, %v776
        %v780 = vsel %vm694, %v681, 0
        %782 = vmatprep.subr.mxu0 0.0
        %783 = vmatpush1.msra.mxu0 0.0
        %784 = vmatprep.subr.mxu0 0.0
        %785 = vmatpush1.msra.mxu0 0.0
        %786 = vmatprep.subr.mxu0 0.0
        %787 = vmatpush1.msra.mxu0 0.0
        %788 = vmatprep.subr.mxu0 0.0
        %789 = vmatpush1.msra.mxu0 0.0
        %790 = vmatprep.subr.mxu0 0.0
        %791 = vmatpush1.msra.mxu0 0.0
        %792 = vmatprep.subr.mxu0 0.0
        %793 = vmatpush1.msra.mxu0 0.0
        %794 = vmatprep.subr.mxu0 0.0
        %795 = vmatpush1.msra.mxu0 0.0
        %796 = vmatprep.subr.mxu0 0.0
        %797 = vmatpush1.msra.mxu0 0.0
        %798 = vmatprep.subr.mxu0 0.0
        %799 = vmatpush1.msra.mxu0 0.0
        %800 = vmatprep.subr.mxu0 0.0
        %801 = vmatpush1.msra.mxu0 0.0
        %802 = vmatprep.subr.mxu0 0.0
        %803 = vmatpush1.msra.mxu0 0.0
        %804 = vmatprep.subr.mxu0 0.0
        %805 = vmatpush1.msra.mxu0 0.0
        %806 = vmatprep.subr.mxu0 0.0
        %807 = vmatpush1.msra.mxu0 %v771
        %808 = vmatprep.subr.mxu0 0.0
        %809 = vmatpush1.msra.mxu0 %v770
        %810 = vmatprep.subr.mxu0 0.0
        %811 = vmatpush1.msra.mxu0 %v769
        %812 = vmatprep.subr.mxu0 0.0
        %813 = vmatpush1.msra.mxu0 %v768
        %814 = vmatprep.subr.mxu0 0.0
        %815 = vmatpush2.msra.mxu0 0.0
        %816 = vmatprep.subr.mxu0 0.0
        %817 = vmatpush2.msra.mxu0 0.0
        %818 = vmatprep.subr.mxu0 0.0
        %819 = vmatpush2.msra.mxu0 0.0
        %820 = vmatprep.subr.mxu0 0.0
        %821 = vmatpush2.msra.mxu0 0.0
        %822 = vmatprep.subr.mxu0 0.0
        %823 = vmatpush2.msra.mxu0 0.0
        %824 = vmatprep.subr.mxu0 0.0
        %825 = vmatpush2.msra.mxu0 0.0
        %826 = vmatprep.subr.mxu0 0.0
        %827 = vmatpush2.msra.mxu0 0.0
        %828 = vmatprep.subr.mxu0 0.0
        %829 = vmatpush2.msra.mxu0 0.0
        %830 = vmatprep.subr.mxu0 0.0
        %831 = vmatpush2.msra.mxu0 0.0
        %832 = vmatprep.subr.mxu0 0.0
        %833 = vmatpush2.msra.mxu0 0.0
        %834 = vmatprep.subr.mxu0 0.0
        %835 = vmatpush2.msra.mxu0 0.0
        %836 = vmatprep.subr.mxu0 0.0
        %837 = vmatpush2.msra.mxu0 0.0
        %838 = vmatprep.subr.mxu0 0.0
        %839 = vmatpush2.msra.mxu0 0.0
        %840 = vmatprep.subr.mxu0 0.0
        %841 = vmatpush2.msra.mxu0 0.0
        %842 = vmatprep.subr.mxu0 0.0
        %843 = vmatpush2.msra.mxu0 0.0
        %844 = vmatprep.subr.mxu0 0.0
        %845 = vmatpush2.msra.mxu0 0.0
        %846 = vmatprep.mubr.f32.mxu0 0.0
        %847 = vmatmul.mubr.f32.gmra.mxu0 %v780
        %v848 = vpop.f32.mrf.mxu0
        %v849 = vadd.f32 %v777, %v848
        %v850 = vpop.f32.mrf.mxu0
        %851 = vdwg.mxu0
        %v852 = vld [vmem:[%s7] sm:$0xff]
        %v853 = vld [vmem:[%s7 + $0x8] sm:$0xff]
        %v854 = vld [vmem:[%s7 + $0x10] sm:$0xff]
        %v855 = vld [vmem:[%s7 + $0x18] sm:$0xff]
        %v856 = vld [vmem:[#allocation11] sm:$0x1]
        %v858 = vlaneseq
        %v859 = vshrl.u32 %v858, 7
        %v860 = vsub.s32 0, %v859
        %v861 = vrot.slane %v856, %v860
        %863 = vmatprep.subr.mxu0 0.0
        %864 = vmatpush1.msra.mxu0 0.0
        %865 = vmatprep.subr.mxu0 0.0
        %866 = vmatpush1.msra.mxu0 0.0
        %867 = vmatprep.subr.mxu0 0.0
        %868 = vmatpush1.msra.mxu0 0.0
        %869 = vmatprep.subr.mxu0 0.0
        %870 = vmatpush1.msra.mxu0 0.0
        %871 = vmatprep.subr.mxu0 0.0
        %872 = vmatpush1.msra.mxu0 0.0
        %873 = vmatprep.subr.mxu0 0.0
        %874 = vmatpush1.msra.mxu0 0.0
        %875 = vmatprep.subr.mxu0 0.0
        %876 = vmatpush1.msra.mxu0 0.0
        %877 = vmatprep.subr.mxu0 0.0
        %878 = vmatpush1.msra.mxu0 0.0
        %879 = vmatprep.subr.mxu0 0.0
        %880 = vmatpush1.msra.mxu0 0.0
        %881 = vmatprep.subr.mxu0 0.0
        %882 = vmatpush1.msra.mxu0 0.0
        %883 = vmatprep.subr.mxu0 0.0
        %884 = vmatpush1.msra.mxu0 0.0
        %885 = vmatprep.subr.mxu0 0.0
        %886 = vmatpush1.msra.mxu0 0.0
        %887 = vmatprep.subr.mxu0 0.0
        %888 = vmatpush1.msra.mxu0 %v855
        %889 = vmatprep.subr.mxu0 0.0
        %890 = vmatpush1.msra.mxu0 %v854
        %891 = vmatprep.subr.mxu0 0.0
        %892 = vmatpush1.msra.mxu0 %v853
        %893 = vmatprep.subr.mxu0 0.0
        %894 = vmatpush1.msra.mxu0 %v852
        %895 = vmatprep.subr.mxu0 0.0
        %896 = vmatpush2.msra.mxu0 0.0
        %897 = vmatprep.subr.mxu0 0.0
        %898 = vmatpush2.msra.mxu0 0.0
        %899 = vmatprep.subr.mxu0 0.0
        %900 = vmatpush2.msra.mxu0 0.0
        %901 = vmatprep.subr.mxu0 0.0
        %902 = vmatpush2.msra.mxu0 0.0
        %903 = vmatprep.subr.mxu0 0.0
        %904 = vmatpush2.msra.mxu0 0.0
        %905 = vmatprep.subr.mxu0 0.0
        %906 = vmatpush2.msra.mxu0 0.0
        %907 = vmatprep.subr.mxu0 0.0
        %908 = vmatpush2.msra.mxu0 0.0
        %909 = vmatprep.subr.mxu0 0.0
        %910 = vmatpush2.msra.mxu0 0.0
        %911 = vmatprep.subr.mxu0 0.0
        %912 = vmatpush2.msra.mxu0 0.0
        %913 = vmatprep.subr.mxu0 0.0
        %914 = vmatpush2.msra.mxu0 0.0
        %915 = vmatprep.subr.mxu0 0.0
        %916 = vmatpush2.msra.mxu0 0.0
        %917 = vmatprep.subr.mxu0 0.0
        %918 = vmatpush2.msra.mxu0 0.0
        %919 = vmatprep.subr.mxu0 0.0
        %920 = vmatpush2.msra.mxu0 0.0
        %921 = vmatprep.subr.mxu0 0.0
        %922 = vmatpush2.msra.mxu0 0.0
        %923 = vmatprep.subr.mxu0 0.0
        %924 = vmatpush2.msra.mxu0 0.0
        %925 = vmatprep.subr.mxu0 0.0
        %926 = vmatpush2.msra.mxu0 0.0
        %927 = vmatprep.mubr.f32.mxu0 0.0
        %928 = vmatmul.mubr.f32.gmra.mxu0 %v780
        %v929 = vpop.f32.mrf.mxu0
        %v930 = vadd.f32 %v861, %v929
        %v931 = vpop.f32.mrf.mxu0
        %932 = vdwg.mxu0
        %934 = vrot.lane.b32.xlu0 %v765, 126
        %v935 = vpop.permute.xlu0 %934
        %936 = vrot.lane.b32.xlu0 %v765, 124
        %v937 = vpop.permute.xlu0 %936
        %938 = vrot.lane.b32.xlu0 %v765, 122
        %v939 = vpop.permute.xlu0 %938
        %941 = vrot.lane.b32.xlu0 %v849, 126
        %v942 = vpop.permute.xlu0 %941
        %943 = vrot.lane.b32.xlu0 %v849, 124
        %v944 = vpop.permute.xlu0 %943
        %945 = vrot.lane.b32.xlu0 %v849, 122
        %v946 = vpop.permute.xlu0 %945
        %948 = vrot.lane.b32.xlu0 %v930, 120
        %v949 = vpop.permute.xlu0 %948
        %951 = vrot.lane.b32.xlu0 %v930, 112
        %v952 = vpop.permute.xlu0 %951
        %954 = vrot.lane.b32.xlu0 %v930, 104
        %v955 = vpop.permute.xlu0 %954
        %vm957 = vcmask 15360
        %v958 = vsel %vm957, %v765, 0
        %v960 = vsel %vm957, %v849, 0
        %962 = vmatprep.subr.mxu0 0.0
        %963 = vmatpush1.xpose.msra.mxu0 0.0
        %964 = vmatprep.subr.mxu0 0.0
        %965 = vmatpush1.xpose.msra.mxu0 0.0
        %966 = vmatprep.subr.mxu0 0.0
        %967 = vmatpush1.xpose.msra.mxu0 0.0
        %968 = vmatprep.subr.mxu0 0.0
        %969 = vmatpush1.xpose.msra.mxu0 0.0
        %970 = vmatprep.subr.mxu0 0.0
        %971 = vmatpush1.xpose.msra.mxu0 0.0
        %972 = vmatprep.subr.mxu0 0.0
        %973 = vmatpush1.xpose.msra.mxu0 0.0
        %974 = vmatprep.subr.mxu0 0.0
        %975 = vmatpush1.xpose.msra.mxu0 0.0
        %976 = vmatprep.subr.mxu0 0.0
        %977 = vmatpush1.xpose.msra.mxu0 0.0
        %978 = vmatprep.subr.mxu0 0.0
        %979 = vmatpush1.xpose.msra.mxu0 0.0
        %980 = vmatprep.subr.mxu0 0.0
        %981 = vmatpush1.xpose.msra.mxu0 0.0
        %982 = vmatprep.subr.mxu0 0.0
        %983 = vmatpush1.xpose.msra.mxu0 0.0
        %984 = vmatprep.subr.mxu0 0.0
        %985 = vmatpush1.xpose.msra.mxu0 0.0
        %986 = vmatprep.subr.mxu0 0.0
        %987 = vmatpush1.xpose.msra.mxu0 0.0
        %988 = vmatprep.subr.mxu0 0.0
        %989 = vmatpush1.xpose.msra.mxu0 0.0
        %990 = vmatprep.subr.mxu0 0.0
        %991 = vmatpush1.xpose.msra.mxu0 0.0
        %992 = vmatprep.subr.mxu0 0.0
        %993 = vmatpush1.xpose.msra.mxu0 %v960
        %994 = vmatprep.subr.mxu0 0.0
        %995 = vmatpush2.xpose.msra.mxu0 0.0
        %996 = vmatprep.subr.mxu0 0.0
        %997 = vmatpush2.xpose.msra.mxu0 0.0
        %998 = vmatprep.subr.mxu0 0.0
        %999 = vmatpush2.xpose.msra.mxu0 0.0
        %1000 = vmatprep.subr.mxu0 0.0
        %1001 = vmatpush2.xpose.msra.mxu0 0.0
        %1002 = vmatprep.subr.mxu0 0.0
        %1003 = vmatpush2.xpose.msra.mxu0 0.0
        %1004 = vmatprep.subr.mxu0 0.0
        %1005 = vmatpush2.xpose.msra.mxu0 0.0
        %1006 = vmatprep.subr.mxu0 0.0
        %1007 = vmatpush2.xpose.msra.mxu0 0.0
        %1008 = vmatprep.subr.mxu0 0.0
        %1009 = vmatpush2.xpose.msra.mxu0 0.0
        %1010 = vmatprep.subr.mxu0 0.0
        %1011 = vmatpush2.xpose.msra.mxu0 0.0
        %1012 = vmatprep.subr.mxu0 0.0
        %1013 = vmatpush2.xpose.msra.mxu0 0.0
        %1014 = vmatprep.subr.mxu0 0.0
        %1015 = vmatpush2.xpose.msra.mxu0 0.0
        %1016 = vmatprep.subr.mxu0 0.0
        %1017 = vmatpush2.xpose.msra.mxu0 0.0
        %1018 = vmatprep.subr.mxu0 0.0
        %1019 = vmatpush2.xpose.msra.mxu0 0.0
        %1020 = vmatprep.subr.mxu0 0.0
        %1021 = vmatpush2.xpose.msra.mxu0 0.0
        %1022 = vmatprep.subr.mxu0 0.0
        %1023 = vmatpush2.xpose.msra.mxu0 0.0
        %1024 = vmatprep.subr.mxu0 0.0
        %1025 = vmatpush2.xpose.msra.mxu0 0.0
        %1026 = vmatprep.mubr.f32.mxu0 0.0
        %1027 = vmatmul.mubr.f32.gmra.mxu0 %v958
        %v1028 = vpop.f32.mrf.mxu0
        %v1029 = vadd.f32 %v682, %v1028
        %v1030 = vpop.f32.mrf.mxu0
        %1031 = vdwg.mxu0
        %v1032 = vsel %vm957, %v935, 0
        %v1034 = vsel %vm957, %v942, 0
        %1036 = vmatprep.subr.mxu0 0.0
        %1037 = vmatpush1.xpose.msra.mxu0 0.0
        %1038 = vmatprep.subr.mxu0 0.0
        %1039 = vmatpush1.xpose.msra.mxu0 0.0
        %1040 = vmatprep.subr.mxu0 0.0
        %1041 = vmatpush1.xpose.msra.mxu0 0.0
        %1042 = vmatprep.subr.mxu0 0.0
        %1043 = vmatpush1.xpose.msra.mxu0 0.0
        %1044 = vmatprep.subr.mxu0 0.0
        %1045 = vmatpush1.xpose.msra.mxu0 0.0
        %1046 = vmatprep.subr.mxu0 0.0
        %1047 = vmatpush1.xpose.msra.mxu0 0.0
        %1048 = vmatprep.subr.mxu0 0.0
        %1049 = vmatpush1.xpose.msra.mxu0 0.0
        %1050 = vmatprep.subr.mxu0 0.0
        %1051 = vmatpush1.xpose.msra.mxu0 0.0
        %1052 = vmatprep.subr.mxu0 0.0
        %1053 = vmatpush1.xpose.msra.mxu0 0.0
        %1054 = vmatprep.subr.mxu0 0.0
        %1055 = vmatpush1.xpose.msra.mxu0 0.0
        %1056 = vmatprep.subr.mxu0 0.0
        %1057 = vmatpush1.xpose.msra.mxu0 0.0
        %1058 = vmatprep.subr.mxu0 0.0
        %1059 = vmatpush1.xpose.msra.mxu0 0.0
        %1060 = vmatprep.subr.mxu0 0.0
        %1061 = vmatpush1.xpose.msra.mxu0 0.0
        %1062 = vmatprep.subr.mxu0 0.0
        %1063 = vmatpush1.xpose.msra.mxu0 0.0
        %1064 = vmatprep.subr.mxu0 0.0
        %1065 = vmatpush1.xpose.msra.mxu0 0.0
        %1066 = vmatprep.subr.mxu0 0.0
        %1067 = vmatpush1.xpose.msra.mxu0 %v1034
        %1068 = vmatprep.subr.mxu0 0.0
        %1069 = vmatpush2.xpose.msra.mxu0 0.0
        %1070 = vmatprep.subr.mxu0 0.0
        %1071 = vmatpush2.xpose.msra.mxu0 0.0
        %1072 = vmatprep.subr.mxu0 0.0
        %1073 = vmatpush2.xpose.msra.mxu0 0.0
        %1074 = vmatprep.subr.mxu0 0.0
        %1075 = vmatpush2.xpose.msra.mxu0 0.0
        %1076 = vmatprep.subr.mxu0 0.0
        %1077 = vmatpush2.xpose.msra.mxu0 0.0
        %1078 = vmatprep.subr.mxu0 0.0
        %1079 = vmatpush2.xpose.msra.mxu0 0.0
        %1080 = vmatprep.subr.mxu0 0.0
        %1081 = vmatpush2.xpose.msra.mxu0 0.0
        %1082 = vmatprep.subr.mxu0 0.0
        %1083 = vmatpush2.xpose.msra.mxu0 0.0
        %1084 = vmatprep.subr.mxu0 0.0
        %1085 = vmatpush2.xpose.msra.mxu0 0.0
        %1086 = vmatprep.subr.mxu0 0.0
        %1087 = vmatpush2.xpose.msra.mxu0 0.0
        %1088 = vmatprep.subr.mxu0 0.0
        %1089 = vmatpush2.xpose.msra.mxu0 0.0
        %1090 = vmatprep.subr.mxu0 0.0
        %1091 = vmatpush2.xpose.msra.mxu0 0.0
        %1092 = vmatprep.subr.mxu0 0.0
        %1093 = vmatpush2.xpose.msra.mxu0 0.0
        %1094 = vmatprep.subr.mxu0 0.0
        %1095 = vmatpush2.xpose.msra.mxu0 0.0
        %1096 = vmatprep.subr.mxu0 0.0
        %1097 = vmatpush2.xpose.msra.mxu0 0.0
        %1098 = vmatprep.subr.mxu0 0.0
        %1099 = vmatpush2.xpose.msra.mxu0 0.0
        %1100 = vmatprep.mubr.f32.mxu0 0.0
        %1101 = vmatmul.mubr.f32.gmra.mxu0 %v1032
        %v1102 = vpop.f32.mrf.mxu0
        %v1103 = vadd.f32 %v682, %v1102
        %v1104 = vpop.f32.mrf.mxu0
        %1105 = vdwg.mxu0
        %v1106 = vsel %vm957, %v937, 0
        %v1108 = vsel %vm957, %v944, 0
        %1110 = vmatprep.subr.mxu0 0.0
        %1111 = vmatpush1.xpose.msra.mxu0 0.0
        %1112 = vmatprep.subr.mxu0 0.0
        %1113 = vmatpush1.xpose.msra.mxu0 0.0
        %1114 = vmatprep.subr.mxu0 0.0
        %1115 = vmatpush1.xpose.msra.mxu0 0.0
        %1116 = vmatprep.subr.mxu0 0.0
        %1117 = vmatpush1.xpose.msra.mxu0 0.0
        %1118 = vmatprep.subr.mxu0 0.0
        %1119 = vmatpush1.xpose.msra.mxu0 0.0
        %1120 = vmatprep.subr.mxu0 0.0
        %1121 = vmatpush1.xpose.msra.mxu0 0.0
        %1122 = vmatprep.subr.mxu0 0.0
        %1123 = vmatpush1.xpose.msra.mxu0 0.0
        %1124 = vmatprep.subr.mxu0 0.0
        %1125 = vmatpush1.xpose.msra.mxu0 0.0
        %1126 = vmatprep.subr.mxu0 0.0
        %1127 = vmatpush1.xpose.msra.mxu0 0.0
        %1128 = vmatprep.subr.mxu0 0.0
        %1129 = vmatpush1.xpose.msra.mxu0 0.0
        %1130 = vmatprep.subr.mxu0 0.0
        %1131 = vmatpush1.xpose.msra.mxu0 0.0
        %1132 = vmatprep.subr.mxu0 0.0
        %1133 = vmatpush1.xpose.msra.mxu0 0.0
        %1134 = vmatprep.subr.mxu0 0.0
        %1135 = vmatpush1.xpose.msra.mxu0 0.0
        %1136 = vmatprep.subr.mxu0 0.0
        %1137 = vmatpush1.xpose.msra.mxu0 0.0
        %1138 = vmatprep.subr.mxu0 0.0
        %1139 = vmatpush1.xpose.msra.mxu0 0.0
        %1140 = vmatprep.subr.mxu0 0.0
        %1141 = vmatpush1.xpose.msra.mxu0 %v1108
        %1142 = vmatprep.subr.mxu0 0.0
        %1143 = vmatpush2.xpose.msra.mxu0 0.0
        %1144 = vmatprep.subr.mxu0 0.0
        %1145 = vmatpush2.xpose.msra.mxu0 0.0
        %1146 = vmatprep.subr.mxu0 0.0
        %1147 = vmatpush2.xpose.msra.mxu0 0.0
        %1148 = vmatprep.subr.mxu0 0.0
        %1149 = vmatpush2.xpose.msra.mxu0 0.0
        %1150 = vmatprep.subr.mxu0 0.0
        %1151 = vmatpush2.xpose.msra.mxu0 0.0
        %1152 = vmatprep.subr.mxu0 0.0
        %1153 = vmatpush2.xpose.msra.mxu0 0.0
        %1154 = vmatprep.subr.mxu0 0.0
        %1155 = vmatpush2.xpose.msra.mxu0 0.0
        %1156 = vmatprep.subr.mxu0 0.0
        %1157 = vmatpush2.xpose.msra.mxu0 0.0
        %1158 = vmatprep.subr.mxu0 0.0
        %1159 = vmatpush2.xpose.msra.mxu0 0.0
        %1160 = vmatprep.subr.mxu0 0.0
        %1161 = vmatpush2.xpose.msra.mxu0 0.0
        %1162 = vmatprep.subr.mxu0 0.0
        %1163 = vmatpush2.xpose.msra.mxu0 0.0
        %1164 = vmatprep.subr.mxu0 0.0
        %1165 = vmatpush2.xpose.msra.mxu0 0.0
        %1166 = vmatprep.subr.mxu0 0.0
        %1167 = vmatpush2.xpose.msra.mxu0 0.0
        %1168 = vmatprep.subr.mxu0 0.0
        %1169 = vmatpush2.xpose.msra.mxu0 0.0
        %1170 = vmatprep.subr.mxu0 0.0
        %1171 = vmatpush2.xpose.msra.mxu0 0.0
        %1172 = vmatprep.subr.mxu0 0.0
        %1173 = vmatpush2.xpose.msra.mxu0 0.0
        %1174 = vmatprep.mubr.f32.mxu0 0.0
        %1175 = vmatmul.mubr.f32.gmra.mxu0 %v1106
        %v1176 = vpop.f32.mrf.mxu0
        %v1177 = vadd.f32 %v682, %v1176
        %v1178 = vpop.f32.mrf.mxu0
        %1179 = vdwg.mxu0
        %v1180 = vsel %vm957, %v939, 0
        %v1182 = vsel %vm957, %v946, 0
        %1184 = vmatprep.subr.mxu0 0.0
        %1185 = vmatpush1.xpose.msra.mxu0 0.0
        %1186 = vmatprep.subr.mxu0 0.0
        %1187 = vmatpush1.xpose.msra.mxu0 0.0
        %1188 = vmatprep.subr.mxu0 0.0
        %1189 = vmatpush1.xpose.msra.mxu0 0.0
        %1190 = vmatprep.subr.mxu0 0.0
        %1191 = vmatpush1.xpose.msra.mxu0 0.0
        %1192 = vmatprep.subr.mxu0 0.0
        %1193 = vmatpush1.xpose.msra.mxu0 0.0
        %1194 = vmatprep.subr.mxu0 0.0
        %1195 = vmatpush1.xpose.msra.mxu0 0.0
        %1196 = vmatprep.subr.mxu0 0.0
        %1197 = vmatpush1.xpose.msra.mxu0 0.0
        %1198 = vmatprep.subr.mxu0 0.0
        %1199 = vmatpush1.xpose.msra.mxu0 0.0
        %1200 = vmatprep.subr.mxu0 0.0
        %1201 = vmatpush1.xpose.msra.mxu0 0.0
        %1202 = vmatprep.subr.mxu0 0.0
        %1203 = vmatpush1.xpose.msra.mxu0 0.0
        %1204 = vmatprep.subr.mxu0 0.0
        %1205 = vmatpush1.xpose.msra.mxu0 0.0
        %1206 = vmatprep.subr.mxu0 0.0
        %1207 = vmatpush1.xpose.msra.mxu0 0.0
        %1208 = vmatprep.subr.mxu0 0.0
        %1209 = vmatpush1.xpose.msra.mxu0 0.0
        %1210 = vmatprep.subr.mxu0 0.0
        %1211 = vmatpush1.xpose.msra.mxu0 0.0
        %1212 = vmatprep.subr.mxu0 0.0
        %1213 = vmatpush1.xpose.msra.mxu0 0.0
        %1214 = vmatprep.subr.mxu0 0.0
        %1215 = vmatpush1.xpose.msra.mxu0 %v1182
        %1216 = vmatprep.subr.mxu0 0.0
        %1217 = vmatpush2.xpose.msra.mxu0 0.0
        %1218 = vmatprep.subr.mxu0 0.0
        %1219 = vmatpush2.xpose.msra.mxu0 0.0
        %1220 = vmatprep.subr.mxu0 0.0
        %1221 = vmatpush2.xpose.msra.mxu0 0.0
        %1222 = vmatprep.subr.mxu0 0.0
        %1223 = vmatpush2.xpose.msra.mxu0 0.0
        %1224 = vmatprep.subr.mxu0 0.0
        %1225 = vmatpush2.xpose.msra.mxu0 0.0
        %1226 = vmatprep.subr.mxu0 0.0
        %1227 = vmatpush2.xpose.msra.mxu0 0.0
        %1228 = vmatprep.subr.mxu0 0.0
        %1229 = vmatpush2.xpose.msra.mxu0 0.0
        %1230 = vmatprep.subr.mxu0 0.0
        %1231 = vmatpush2.xpose.msra.mxu0 0.0
        %1232 = vmatprep.subr.mxu0 0.0
        %1233 = vmatpush2.xpose.msra.mxu0 0.0
        %1234 = vmatprep.subr.mxu0 0.0
        %1235 = vmatpush2.xpose.msra.mxu0 0.0
        %1236 = vmatprep.subr.mxu0 0.0
        %1237 = vmatpush2.xpose.msra.mxu0 0.0
        %1238 = vmatprep.subr.mxu0 0.0
        %1239 = vmatpush2.xpose.msra.mxu0 0.0
        %1240 = vmatprep.subr.mxu0 0.0
        %1241 = vmatpush2.xpose.msra.mxu0 0.0
        %1242 = vmatprep.subr.mxu0 0.0
        %1243 = vmatpush2.xpose.msra.mxu0 0.0
        %1244 = vmatprep.subr.mxu0 0.0
        %1245 = vmatpush2.xpose.msra.mxu0 0.0
        %1246 = vmatprep.subr.mxu0 0.0
        %1247 = vmatpush2.xpose.msra.mxu0 0.0
        %1248 = vmatprep.mubr.f32.mxu0 0.0
        %1249 = vmatmul.mubr.f32.gmra.mxu0 %v1180
        %v1250 = vpop.f32.mrf.mxu0
        %v1251 = vadd.f32 %v682, %v1250
        %v1252 = vpop.f32.mrf.mxu0
        %1253 = vdwg.mxu0
        %vm1254 = vcmask 64512
        %v1255 = vsel %vm1254, %v1029, -inf
        %1256 = vmax.xlane.f32.xlu0 %v1255
        %v1257 = vpop.xlane.xlu0 %1256
        %v1258 = vsel %vm1254, %v1103, -inf
        %1259 = vmax.xlane.f32.xlu0 %v1258
        %v1260 = vpop.xlane.xlu0 %1259
        %v1261 = vsel %vm1254, %v1177, -inf
        %1262 = vmax.xlane.f32.xlu0 %v1261
        %v1263 = vpop.xlane.xlu0 %1262
        %v1264 = vsel %vm1254, %v1251, -inf
        %1265 = vmax.xlane.f32.xlu0 %v1264
        %v1266 = vpop.xlane.xlu0 %1265
        %v1267 = vsub.f32 %v1029, %v1257
        %v1268 = vsub.f32 %v1103, %v1260
        %v1269 = vsub.f32 %v1177, %v1263
        %v1270 = vsub.f32 %v1251, %v1266
        %v1271 = vmul.f32 %v1267, 1.442695
        %v1272 = vpow.pop %v1271
        %v1273 = vmul.f32 %v1268, 1.442695
        %v1274 = vpow.pop %v1273
        %v1275 = vmul.f32 %v1269, 1.442695
        %v1276 = vpow.pop %v1275
        %v1277 = vmul.f32 %v1270, 1.442695
        %v1278 = vpow.pop %v1277
        %v1279 = vsel %vm1254, %v1272, 0.0
        %1280 = vadd.xlane.f32.xlu0 %v1279
        %v1281 = vpop.xlane.xlu0 %1280
        %v1282 = vsel %vm1254, %v1274, 0.0
        %1283 = vadd.xlane.f32.xlu0 %v1282
        %v1284 = vpop.xlane.xlu0 %1283
        %v1285 = vsel %vm1254, %v1276, 0.0
        %1286 = vadd.xlane.f32.xlu0 %v1285
        %v1287 = vpop.xlane.xlu0 %1286
        %v1288 = vsel %vm1254, %v1278, 0.0
        %1289 = vadd.xlane.f32.xlu0 %v1288
        %v1290 = vpop.xlane.xlu0 %1289
        %v1291 = vrcp.pop %v1281
        %v1292 = vrcp.pop %v1284
        %v1293 = vrcp.pop %v1287
        %v1294 = vrcp.pop %v1290
        %v1295 = vmul.f32 %v1272, %v1291
        %v1296 = vmul.f32 %v1274, %v1292
        %v1297 = vmul.f32 %v1276, %v1293
        %v1298 = vmul.f32 %v1278, %v1294
        %v1300 = vsel %vm1254, %v1295, 0
        %1302 = vmatprep.subr.mxu0 0.0
        %1303 = vmatpush1.msra.mxu0 0.0
        %1304 = vmatprep.subr.mxu0 0.0
        %1305 = vmatpush1.msra.mxu0 0.0
        %1306 = vmatprep.subr.mxu0 0.0
        %1307 = vmatpush1.msra.mxu0 0.0
        %1308 = vmatprep.subr.mxu0 0.0
        %1309 = vmatpush1.msra.mxu0 0.0
        %1310 = vmatprep.subr.mxu0 0.0
        %1311 = vmatpush1.msra.mxu0 0.0
        %1312 = vmatprep.subr.mxu0 0.0
        %1313 = vmatpush1.msra.mxu0 0.0
        %1314 = vmatprep.subr.mxu0 0.0
        %1315 = vmatpush1.msra.mxu0 0.0
        %1316 = vmatprep.subr.mxu0 0.0
        %1317 = vmatpush1.msra.mxu0 0.0
        %1318 = vmatprep.subr.mxu0 0.0
        %1319 = vmatpush1.msra.mxu0 0.0
        %1320 = vmatprep.subr.mxu0 0.0
        %1321 = vmatpush1.msra.mxu0 0.0
        %1322 = vmatprep.subr.mxu0 0.0
        %1323 = vmatpush1.msra.mxu0 0.0
        %1324 = vmatprep.subr.mxu0 0.0
        %1325 = vmatpush1.msra.mxu0 0.0
        %1326 = vmatprep.subr.mxu0 0.0
        %1327 = vmatpush1.msra.mxu0 0.0
        %1328 = vmatprep.subr.mxu0 0.0
        %1329 = vmatpush1.msra.mxu0 0.0
        %1330 = vmatprep.subr.mxu0 0.0
        %1331 = vmatpush1.msra.mxu0 0.0
        %1332 = vmatprep.subr.mxu0 0.0
        %1333 = vmatpush1.msra.mxu0 %v930
        %1334 = vmatprep.subr.mxu0 0.0
        %1335 = vmatpush2.msra.mxu0 0.0
        %1336 = vmatprep.subr.mxu0 0.0
        %1337 = vmatpush2.msra.mxu0 0.0
        %1338 = vmatprep.subr.mxu0 0.0
        %1339 = vmatpush2.msra.mxu0 0.0
        %1340 = vmatprep.subr.mxu0 0.0
        %1341 = vmatpush2.msra.mxu0 0.0
        %1342 = vmatprep.subr.mxu0 0.0
        %1343 = vmatpush2.msra.mxu0 0.0
        %1344 = vmatprep.subr.mxu0 0.0
        %1345 = vmatpush2.msra.mxu0 0.0
        %1346 = vmatprep.subr.mxu0 0.0
        %1347 = vmatpush2.msra.mxu0 0.0
        %1348 = vmatprep.subr.mxu0 0.0
        %1349 = vmatpush2.msra.mxu0 0.0
        %1350 = vmatprep.subr.mxu0 0.0
        %1351 = vmatpush2.msra.mxu0 0.0
        %1352 = vmatprep.subr.mxu0 0.0
        %1353 = vmatpush2.msra.mxu0 0.0
        %1354 = vmatprep.subr.mxu0 0.0
        %1355 = vmatpush2.msra.mxu0 0.0
        %1356 = vmatprep.subr.mxu0 0.0
        %1357 = vmatpush2.msra.mxu0 0.0
        %1358 = vmatprep.subr.mxu0 0.0
        %1359 = vmatpush2.msra.mxu0 0.0
        %1360 = vmatprep.subr.mxu0 0.0
        %1361 = vmatpush2.msra.mxu0 0.0
        %1362 = vmatprep.subr.mxu0 0.0
        %1363 = vmatpush2.msra.mxu0 0.0
        %1364 = vmatprep.subr.mxu0 0.0
        %1365 = vmatpush2.msra.mxu0 0.0
        %1366 = vmatprep.mubr.f32.mxu0 0.0
        %1367 = vmatmul.mubr.f32.gmra.mxu0 %v1300
        %v1368 = vpop.f32.mrf.mxu0
        %v1369 = vadd.f32 0.0, %v1368
        %v1370 = vpop.f32.mrf.mxu0
        %1371 = vdwg.mxu0
        %v1373 = vsel %vm1254, %v1296, 0
        %1375 = vmatprep.subr.mxu0 0.0
        %1376 = vmatpush1.msra.mxu0 0.0
        %1377 = vmatprep.subr.mxu0 0.0
        %1378 = vmatpush1.msra.mxu0 0.0
        %1379 = vmatprep.subr.mxu0 0.0
        %1380 = vmatpush1.msra.mxu0 0.0
        %1381 = vmatprep.subr.mxu0 0.0
        %1382 = vmatpush1.msra.mxu0 0.0
        %1383 = vmatprep.subr.mxu0 0.0
        %1384 = vmatpush1.msra.mxu0 0.0
        %1385 = vmatprep.subr.mxu0 0.0
        %1386 = vmatpush1.msra.mxu0 0.0
        %1387 = vmatprep.subr.mxu0 0.0
        %1388 = vmatpush1.msra.mxu0 0.0
        %1389 = vmatprep.subr.mxu0 0.0
        %1390 = vmatpush1.msra.mxu0 0.0
        %1391 = vmatprep.subr.mxu0 0.0
        %1392 = vmatpush1.msra.mxu0 0.0
        %1393 = vmatprep.subr.mxu0 0.0
        %1394 = vmatpush1.msra.mxu0 0.0
        %1395 = vmatprep.subr.mxu0 0.0
        %1396 = vmatpush1.msra.mxu0 0.0
        %1397 = vmatprep.subr.mxu0 0.0
        %1398 = vmatpush1.msra.mxu0 0.0
        %1399 = vmatprep.subr.mxu0 0.0
        %1400 = vmatpush1.msra.mxu0 0.0
        %1401 = vmatprep.subr.mxu0 0.0
        %1402 = vmatpush1.msra.mxu0 0.0
        %1403 = vmatprep.subr.mxu0 0.0
        %1404 = vmatpush1.msra.mxu0 0.0
        %1405 = vmatprep.subr.mxu0 0.0
        %1406 = vmatpush1.msra.mxu0 %v949
        %1407 = vmatprep.subr.mxu0 0.0
        %1408 = vmatpush2.msra.mxu0 0.0
        %1409 = vmatprep.subr.mxu0 0.0
        %1410 = vmatpush2.msra.mxu0 0.0
        %1411 = vmatprep.subr.mxu0 0.0
        %1412 = vmatpush2.msra.mxu0 0.0
        %1413 = vmatprep.subr.mxu0 0.0
        %1414 = vmatpush2.msra.mxu0 0.0
        %1415 = vmatprep.subr.mxu0 0.0
        %1416 = vmatpush2.msra.mxu0 0.0
        %1417 = vmatprep.subr.mxu0 0.0
        %1418 = vmatpush2.msra.mxu0 0.0
        %1419 = vmatprep.subr.mxu0 0.0
        %1420 = vmatpush2.msra.mxu0 0.0
        %1421 = vmatprep.subr.mxu0 0.0
        %1422 = vmatpush2.msra.mxu0 0.0
        %1423 = vmatprep.subr.mxu0 0.0
        %1424 = vmatpush2.msra.mxu0 0.0
        %1425 = vmatprep.subr.mxu0 0.0
        %1426 = vmatpush2.msra.mxu0 0.0
        %1427 = vmatprep.subr.mxu0 0.0
        %1428 = vmatpush2.msra.mxu0 0.0
        %1429 = vmatprep.subr.mxu0 0.0
        %1430 = vmatpush2.msra.mxu0 0.0
        %1431 = vmatprep.subr.mxu0 0.0
        %1432 = vmatpush2.msra.mxu0 0.0
        %1433 = vmatprep.subr.mxu0 0.0
        %1434 = vmatpush2.msra.mxu0 0.0
        %1435 = vmatprep.subr.mxu0 0.0
        %1436 = vmatpush2.msra.mxu0 0.0
        %1437 = vmatprep.subr.mxu0 0.0
        %1438 = vmatpush2.msra.mxu0 0.0
        %1439 = vmatprep.mubr.f32.mxu0 0.0
        %1440 = vmatmul.mubr.f32.gmra.mxu0 %v1373
        %v1441 = vpop.f32.mrf.mxu0
        %v1442 = vadd.f32 0.0, %v1441
        %v1443 = vpop.f32.mrf.mxu0
        %1444 = vdwg.mxu0
        %v1446 = vsel %vm1254, %v1297, 0
        %1448 = vmatprep.subr.mxu0 0.0
        %1449 = vmatpush1.msra.mxu0 0.0
        %1450 = vmatprep.subr.mxu0 0.0
        %1451 = vmatpush1.msra.mxu0 0.0
        %1452 = vmatprep.subr.mxu0 0.0
        %1453 = vmatpush1.msra.mxu0 0.0
        %1454 = vmatprep.subr.mxu0 0.0
        %1455 = vmatpush1.msra.mxu0 0.0
        %1456 = vmatprep.subr.mxu0 0.0
        %1457 = vmatpush1.msra.mxu0 0.0
        %1458 = vmatprep.subr.mxu0 0.0
        %1459 = vmatpush1.msra.mxu0 0.0
        %1460 = vmatprep.subr.mxu0 0.0
        %1461 = vmatpush1.msra.mxu0 0.0
        %1462 = vmatprep.subr.mxu0 0.0
        %1463 = vmatpush1.msra.mxu0 0.0
        %1464 = vmatprep.subr.mxu0 0.0
        %1465 = vmatpush1.msra.mxu0 0.0
        %1466 = vmatprep.subr.mxu0 0.0
        %1467 = vmatpush1.msra.mxu0 0.0
        %1468 = vmatprep.subr.mxu0 0.0
        %1469 = vmatpush1.msra.mxu0 0.0
        %1470 = vmatprep.subr.mxu0 0.0
        %1471 = vmatpush1.msra.mxu0 0.0
        %1472 = vmatprep.subr.mxu0 0.0
        %1473 = vmatpush1.msra.mxu0 0.0
        %1474 = vmatprep.subr.mxu0 0.0
        %1475 = vmatpush1.msra.mxu0 0.0
        %1476 = vmatprep.subr.mxu0 0.0
        %1477 = vmatpush1.msra.mxu0 0.0
        %1478 = vmatprep.subr.mxu0 0.0
        %1479 = vmatpush1.msra.mxu0 %v952
        %1480 = vmatprep.subr.mxu0 0.0
        %1481 = vmatpush2.msra.mxu0 0.0
        %1482 = vmatprep.subr.mxu0 0.0
        %1483 = vmatpush2.msra.mxu0 0.0
        %1484 = vmatprep.subr.mxu0 0.0
        %1485 = vmatpush2.msra.mxu0 0.0
        %1486 = vmatprep.subr.mxu0 0.0
        %1487 = vmatpush2.msra.mxu0 0.0
        %1488 = vmatprep.subr.mxu0 0.0
        %1489 = vmatpush2.msra.mxu0 0.0
        %1490 = vmatprep.subr.mxu0 0.0
        %1491 = vmatpush2.msra.mxu0 0.0
        %1492 = vmatprep.subr.mxu0 0.0
        %1493 = vmatpush2.msra.mxu0 0.0
        %1494 = vmatprep.subr.mxu0 0.0
        %1495 = vmatpush2.msra.mxu0 0.0
        %1496 = vmatprep.subr.mxu0 0.0
        %1497 = vmatpush2.msra.mxu0 0.0
        %1498 = vmatprep.subr.mxu0 0.0
        %1499 = vmatpush2.msra.mxu0 0.0
        %1500 = vmatprep.subr.mxu0 0.0
        %1501 = vmatpush2.msra.mxu0 0.0
        %1502 = vmatprep.subr.mxu0 0.0
        %1503 = vmatpush2.msra.mxu0 0.0
        %1504 = vmatprep.subr.mxu0 0.0
        %1505 = vmatpush2.msra.mxu0 0.0
        %1506 = vmatprep.subr.mxu0 0.0
        %1507 = vmatpush2.msra.mxu0 0.0
        %1508 = vmatprep.subr.mxu0 0.0
        %1509 = vmatpush2.msra.mxu0 0.0
        %1510 = vmatprep.subr.mxu0 0.0
        %1511 = vmatpush2.msra.mxu0 0.0
        %1512 = vmatprep.mubr.f32.mxu0 0.0
        %1513 = vmatmul.mubr.f32.gmra.mxu0 %v1446
        %v1514 = vpop.f32.mrf.mxu0
        %v1515 = vadd.f32 0.0, %v1514
        %v1516 = vpop.f32.mrf.mxu0
        %1517 = vdwg.mxu0
        %v1519 = vsel %vm1254, %v1298, 0
        %1521 = vmatprep.subr.mxu0 0.0
        %1522 = vmatpush1.msra.mxu0 0.0
        %1523 = vmatprep.subr.mxu0 0.0
        %1524 = vmatpush1.msra.mxu0 0.0
        %1525 = vmatprep.subr.mxu0 0.0
        %1526 = vmatpush1.msra.mxu0 0.0
        %1527 = vmatprep.subr.mxu0 0.0
        %1528 = vmatpush1.msra.mxu0 0.0
        %1529 = vmatprep.subr.mxu0 0.0
        %1530 = vmatpush1.msra.mxu0 0.0
        %1531 = vmatprep.subr.mxu0 0.0
        %1532 = vmatpush1.msra.mxu0 0.0
        %1533 = vmatprep.subr.mxu0 0.0
        %1534 = vmatpush1.msra.mxu0 0.0
        %1535 = vmatprep.subr.mxu0 0.0
        %1536 = vmatpush1.msra.mxu0 0.0
        %1537 = vmatprep.subr.mxu0 0.0
        %1538 = vmatpush1.msra.mxu0 0.0
        %1539 = vmatprep.subr.mxu0 0.0
        %1540 = vmatpush1.msra.mxu0 0.0
        %1541 = vmatprep.subr.mxu0 0.0
        %1542 = vmatpush1.msra.mxu0 0.0
        %1543 = vmatprep.subr.mxu0 0.0
        %1544 = vmatpush1.msra.mxu0 0.0
        %1545 = vmatprep.subr.mxu0 0.0
        %1546 = vmatpush1.msra.mxu0 0.0
        %1547 = vmatprep.subr.mxu0 0.0
        %1548 = vmatpush1.msra.mxu0 0.0
        %1549 = vmatprep.subr.mxu0 0.0
        %1550 = vmatpush1.msra.mxu0 0.0
        %1551 = vmatprep.subr.mxu0 0.0
        %1552 = vmatpush1.msra.mxu0 %v955
        %1553 = vmatprep.subr.mxu0 0.0
        %1554 = vmatpush2.msra.mxu0 0.0
        %1555 = vmatprep.subr.mxu0 0.0
        %1556 = vmatpush2.msra.mxu0 0.0
        %1557 = vmatprep.subr.mxu0 0.0
        %1558 = vmatpush2.msra.mxu0 0.0
        %1559 = vmatprep.subr.mxu0 0.0
        %1560 = vmatpush2.msra.mxu0 0.0
        %1561 = vmatprep.subr.mxu0 0.0
        %1562 = vmatpush2.msra.mxu0 0.0
        %1563 = vmatprep.subr.mxu0 0.0
        %1564 = vmatpush2.msra.mxu0 0.0
        %1565 = vmatprep.subr.mxu0 0.0
        %1566 = vmatpush2.msra.mxu0 0.0
        %1567 = vmatprep.subr.mxu0 0.0
        %1568 = vmatpush2.msra.mxu0 0.0
        %1569 = vmatprep.subr.mxu0 0.0
        %1570 = vmatpush2.msra.mxu0 0.0
        %1571 = vmatprep.subr.mxu0 0.0
        %1572 = vmatpush2.msra.mxu0 0.0
        %1573 = vmatprep.subr.mxu0 0.0
        %1574 = vmatpush2.msra.mxu0 0.0
        %1575 = vmatprep.subr.mxu0 0.0
        %1576 = vmatpush2.msra.mxu0 0.0
        %1577 = vmatprep.subr.mxu0 0.0
        %1578 = vmatpush2.msra.mxu0 0.0
        %1579 = vmatprep.subr.mxu0 0.0
        %1580 = vmatpush2.msra.mxu0 0.0
        %1581 = vmatprep.subr.mxu0 0.0
        %1582 = vmatpush2.msra.mxu0 0.0
        %1583 = vmatprep.subr.mxu0 0.0
        %1584 = vmatpush2.msra.mxu0 0.0
        %1585 = vmatprep.mubr.f32.mxu0 0.0
        %1586 = vmatmul.mubr.f32.gmra.mxu0 %v1519
        %v1587 = vpop.f32.mrf.mxu0
        %v1588 = vadd.f32 0.0, %v1587
        %v1589 = vpop.f32.mrf.mxu0
        %1590 = vdwg.mxu0
        %1592 = vrot.lane.b32.xlu0 %v1442, 8
        %v1593 = vpop.permute.xlu0 %1592
        %1596 = vrot.lane.b32.xlu0 %v1515, 16
        %v1597 = vpop.permute.xlu0 %1596
        %1600 = vrot.lane.b32.xlu0 %v1588, 24
        %v1601 = vpop.permute.xlu0 %1600
        %v1603 = vsel %vm1254, %v1369, %v1593
        %vm1604 = vcmask 130048
        %v1605 = vsel %vm1604, %v1603, %v1597
        %vm1606 = vcmask 195584
        %v1607 = vsel %vm1606, %v1605, %v1601
        %v1608 = vld [vmem:[%s9] sm:$0xff]
        %v1609 = vld [vmem:[%s9 + $0x8] sm:$0xff]
        %v1610 = vld [vmem:[%s9 + $0x10] sm:$0xff]
        %v1611 = vld [vmem:[%s9 + $0x18] sm:$0xff]
        %v1612 = vld [vmem:[%s10] sm:$0x1]
        %v1614 = vlaneseq
        %v1615 = vshrl.u32 %v1614, 7
        %v1616 = vsub.s32 0, %v1615
        %v1617 = vrot.slane %v1612, %v1616
        %v1620 = vsel %vm694, %v1607, 0
        %1622 = vmatprep.subr.mxu0 0.0
        %1623 = vmatpush1.msra.mxu0 0.0
        %1624 = vmatprep.subr.mxu0 0.0
        %1625 = vmatpush1.msra.mxu0 0.0
        %1626 = vmatprep.subr.mxu0 0.0
        %1627 = vmatpush1.msra.mxu0 0.0
        %1628 = vmatprep.subr.mxu0 0.0
        %1629 = vmatpush1.msra.mxu0 0.0
        %1630 = vmatprep.subr.mxu0 0.0
        %1631 = vmatpush1.msra.mxu0 0.0
        %1632 = vmatprep.subr.mxu0 0.0
        %1633 = vmatpush1.msra.mxu0 0.0
        %1634 = vmatprep.subr.mxu0 0.0
        %1635 = vmatpush1.msra.mxu0 0.0
        %1636 = vmatprep.subr.mxu0 0.0
        %1637 = vmatpush1.msra.mxu0 0.0
        %1638 = vmatprep.subr.mxu0 0.0
        %1639 = vmatpush1.msra.mxu0 0.0
        %1640 = vmatprep.subr.mxu0 0.0
        %1641 = vmatpush1.msra.mxu0 0.0
        %1642 = vmatprep.subr.mxu0 0.0
        %1643 = vmatpush1.msra.mxu0 0.0
        %1644 = vmatprep.subr.mxu0 0.0
        %1645 = vmatpush1.msra.mxu0 0.0
        %1646 = vmatprep.subr.mxu0 0.0
        %1647 = vmatpush1.msra.mxu0 %v1611
        %1648 = vmatprep.subr.mxu0 0.0
        %1649 = vmatpush1.msra.mxu0 %v1610
        %1650 = vmatprep.subr.mxu0 0.0
        %1651 = vmatpush1.msra.mxu0 %v1609
        %1652 = vmatprep.subr.mxu0 0.0
        %1653 = vmatpush1.msra.mxu0 %v1608
        %1654 = vmatprep.subr.mxu0 0.0
        %1655 = vmatpush2.msra.mxu0 0.0
        %1656 = vmatprep.subr.mxu0 0.0
        %1657 = vmatpush2.msra.mxu0 0.0
        %1658 = vmatprep.subr.mxu0 0.0
        %1659 = vmatpush2.msra.mxu0 0.0
        %1660 = vmatprep.subr.mxu0 0.0
        %1661 = vmatpush2.msra.mxu0 0.0
        %1662 = vmatprep.subr.mxu0 0.0
        %1663 = vmatpush2.msra.mxu0 0.0
        %1664 = vmatprep.subr.mxu0 0.0
        %1665 = vmatpush2.msra.mxu0 0.0
        %1666 = vmatprep.subr.mxu0 0.0
        %1667 = vmatpush2.msra.mxu0 0.0
        %1668 = vmatprep.subr.mxu0 0.0
        %1669 = vmatpush2.msra.mxu0 0.0
        %1670 = vmatprep.subr.mxu0 0.0
        %1671 = vmatpush2.msra.mxu0 0.0
        %1672 = vmatprep.subr.mxu0 0.0
        %1673 = vmatpush2.msra.mxu0 0.0
        %1674 = vmatprep.subr.mxu0 0.0
        %1675 = vmatpush2.msra.mxu0 0.0
        %1676 = vmatprep.subr.mxu0 0.0
        %1677 = vmatpush2.msra.mxu0 0.0
        %1678 = vmatprep.subr.mxu0 0.0
        %1679 = vmatpush2.msra.mxu0 0.0
        %1680 = vmatprep.subr.mxu0 0.0
        %1681 = vmatpush2.msra.mxu0 0.0
        %1682 = vmatprep.subr.mxu0 0.0
        %1683 = vmatpush2.msra.mxu0 0.0
        %1684 = vmatprep.subr.mxu0 0.0
        %1685 = vmatpush2.msra.mxu0 0.0
        %1686 = vmatprep.mubr.f32.mxu0 0.0
        %1687 = vmatmul.mubr.f32.gmra.mxu0 %v1620
        %v1688 = vpop.f32.mrf.mxu0
        %v1689 = vadd.f32 %v1617, %v1688
        %v1690 = vpop.f32.mrf.mxu0
        %1691 = vdwg.mxu0
        %v1692 = vld [vmem:[%s11] sm:$0xff]
        %v1693 = vld [vmem:[%s11 + $0x8] sm:$0xff]
        %v1694 = vld [vmem:[%s11 + $0x10] sm:$0xff]
        %v1695 = vld [vmem:[%s11 + $0x18] sm:$0xff]
        %v1696 = vld [vmem:[#allocation13] sm:$0xff]
        %v1697 = vld [vmem:[#allocation13 + $0x8] sm:$0xff]
        %v1698 = vld [vmem:[#allocation13 + $0x10] sm:$0xff]
        %v1699 = vld [vmem:[#allocation13 + $0x18] sm:$0xff]
        %v1701 = vsel %vm694, %v1689, 0
        %1703 = vmatprep.subr.mxu0 0.0
        %1704 = vmatpush1.msra.mxu0 0.0
        %1705 = vmatprep.subr.mxu0 0.0
        %1706 = vmatpush1.msra.mxu0 0.0
        %1707 = vmatprep.subr.mxu0 0.0
        %1708 = vmatpush1.msra.mxu0 0.0
        %1709 = vmatprep.subr.mxu0 0.0
        %1710 = vmatpush1.msra.mxu0 0.0
        %1711 = vmatprep.subr.mxu0 0.0
        %1712 = vmatpush1.msra.mxu0 0.0
        %1713 = vmatprep.subr.mxu0 0.0
        %1714 = vmatpush1.msra.mxu0 0.0
        %1715 = vmatprep.subr.mxu0 0.0
        %1716 = vmatpush1.msra.mxu0 0.0
        %1717 = vmatprep.subr.mxu0 0.0
        %1718 = vmatpush1.msra.mxu0 0.0
        %1719 = vmatprep.subr.mxu0 0.0
        %1720 = vmatpush1.msra.mxu0 0.0
        %1721 = vmatprep.subr.mxu0 0.0
        %1722 = vmatpush1.msra.mxu0 0.0
        %1723 = vmatprep.subr.mxu0 0.0
        %1724 = vmatpush1.msra.mxu0 0.0
        %1725 = vmatprep.subr.mxu0 0.0
        %1726 = vmatpush1.msra.mxu0 0.0
        %1727 = vmatprep.subr.mxu0 0.0
        %1728 = vmatpush1.msra.mxu0 %v1699
        %1729 = vmatprep.subr.mxu0 0.0
        %1730 = vmatpush1.msra.mxu0 %v1698
        %1731 = vmatprep.subr.mxu0 0.0
        %1732 = vmatpush1.msra.mxu0 %v1697
        %1733 = vmatprep.subr.mxu0 0.0
        %1734 = vmatpush1.msra.mxu0 %v1696
        %1735 = vmatprep.subr.mxu0 0.0
        %1736 = vmatpush2.msra.mxu0 0.0
        %1737 = vmatprep.subr.mxu0 0.0
        %1738 = vmatpush2.msra.mxu0 0.0
        %1739 = vmatprep.subr.mxu0 0.0
        %1740 = vmatpush2.msra.mxu0 0.0
        %1741 = vmatprep.subr.mxu0 0.0
        %1742 = vmatpush2.msra.mxu0 0.0
        %1743 = vmatprep.subr.mxu0 0.0
        %1744 = vmatpush2.msra.mxu0 0.0
        %1745 = vmatprep.subr.mxu0 0.0
        %1746 = vmatpush2.msra.mxu0 0.0
        %1747 = vmatprep.subr.mxu0 0.0
        %1748 = vmatpush2.msra.mxu0 0.0
        %1749 = vmatprep.subr.mxu0 0.0
        %1750 = vmatpush2.msra.mxu0 0.0
        %1751 = vmatprep.subr.mxu0 0.0
        %1752 = vmatpush2.msra.mxu0 0.0
        %1753 = vmatprep.subr.mxu0 0.0
        %1754 = vmatpush2.msra.mxu0 0.0
        %1755 = vmatprep.subr.mxu0 0.0
        %1756 = vmatpush2.msra.mxu0 0.0
        %1757 = vmatprep.subr.mxu0 0.0
        %1758 = vmatpush2.msra.mxu0 0.0
        %1759 = vmatprep.subr.mxu0 0.0
        %1760 = vmatpush2.msra.mxu0 0.0
        %1761 = vmatprep.subr.mxu0 0.0
        %1762 = vmatpush2.msra.mxu0 0.0
        %1763 = vmatprep.subr.mxu0 0.0
        %1764 = vmatpush2.msra.mxu0 0.0
        %1765 = vmatprep.subr.mxu0 0.0
        %1766 = vmatpush2.msra.mxu0 0.0
        %1767 = vmatprep.mubr.f32.mxu0 0.0
        %1768 = vmatmul.mubr.f32.gmra.mxu0 %v1701
        %v1769 = vpop.f32.mrf.mxu0
        %v1770 = vadd.f32 0.0, %v1769
        %v1771 = vpop.f32.mrf.mxu0
        %1772 = vdwg.mxu0
        %1773 = vmatprep.subr.mxu0 0.0
        %1774 = vmatpush1.msra.mxu0 0.0
        %1775 = vmatprep.subr.mxu0 0.0
        %1776 = vmatpush1.msra.mxu0 0.0
        %1777 = vmatprep.subr.mxu0 0.0
        %1778 = vmatpush1.msra.mxu0 0.0
        %1779 = vmatprep.subr.mxu0 0.0
        %1780 = vmatpush1.msra.mxu0 0.0
        %1781 = vmatprep.subr.mxu0 0.0
        %1782 = vmatpush1.msra.mxu0 0.0
        %1783 = vmatprep.subr.mxu0 0.0
        %1784 = vmatpush1.msra.mxu0 0.0
        %1785 = vmatprep.subr.mxu0 0.0
        %1786 = vmatpush1.msra.mxu0 0.0
        %1787 = vmatprep.subr.mxu0 0.0
        %1788 = vmatpush1.msra.mxu0 0.0
        %1789 = vmatprep.subr.mxu0 0.0
        %1790 = vmatpush1.msra.mxu0 0.0
        %1791 = vmatprep.subr.mxu0 0.0
        %1792 = vmatpush1.msra.mxu0 0.0
        %1793 = vmatprep.subr.mxu0 0.0
        %1794 = vmatpush1.msra.mxu0 0.0
        %1795 = vmatprep.subr.mxu0 0.0
        %1796 = vmatpush1.msra.mxu0 0.0
        %1797 = vmatprep.subr.mxu0 0.0
        %1798 = vmatpush1.msra.mxu0 %v1695
        %1799 = vmatprep.subr.mxu0 0.0
        %1800 = vmatpush1.msra.mxu0 %v1694
        %1801 = vmatprep.subr.mxu0 0.0
        %1802 = vmatpush1.msra.mxu0 %v1693
        %1803 = vmatprep.subr.mxu0 0.0
        %1804 = vmatpush1.msra.mxu0 %v1692
        %1805 = vmatprep.subr.mxu0 0.0
        %1806 = vmatpush2.msra.mxu0 0.0
        %1807 = vmatprep.subr.mxu0 0.0
        %1808 = vmatpush2.msra.mxu0 0.0
        %1809 = vmatprep.subr.mxu0 0.0
        %1810 = vmatpush2.msra.mxu0 0.0
        %1811 = vmatprep.subr.mxu0 0.0
        %1812 = vmatpush2.msra.mxu0 0.0
        %1813 = vmatprep.subr.mxu0 0.0
        %1814 = vmatpush2.msra.mxu0 0.0
        %1815 = vmatprep.subr.mxu0 0.0
        %1816 = vmatpush2.msra.mxu0 0.0
        %1817 = vmatprep.subr.mxu0 0.0
        %1818 = vmatpush2.msra.mxu0 0.0
        %1819 = vmatprep.subr.mxu0 0.0
        %1820 = vmatpush2.msra.mxu0 0.0
        %1821 = vmatprep.subr.mxu0 0.0
        %1822 = vmatpush2.msra.mxu0 0.0
        %1823 = vmatprep.subr.mxu0 0.0
        %1824 = vmatpush2.msra.mxu0 0.0
        %1825 = vmatprep.subr.mxu0 0.0
        %1826 = vmatpush2.msra.mxu0 0.0
        %1827 = vmatprep.subr.mxu0 0.0
        %1828 = vmatpush2.msra.mxu0 0.0
        %1829 = vmatprep.subr.mxu0 0.0
        %1830 = vmatpush2.msra.mxu0 0.0
        %1831 = vmatprep.subr.mxu0 0.0
        %1832 = vmatpush2.msra.mxu0 0.0
        %1833 = vmatprep.subr.mxu0 0.0
        %1834 = vmatpush2.msra.mxu0 0.0
        %1835 = vmatprep.subr.mxu0 0.0
        %1836 = vmatpush2.msra.mxu0 0.0
        %1837 = vmatprep.mubr.f32.mxu0 0.0
        %1838 = vmatmul.mubr.f32.gmra.mxu0 %v696
        %v1839 = vpop.f32.mrf.mxu0
        %v1840 = vadd.f32 %v1770, %v1839
        %v1841 = vpop.f32.mrf.mxu0
        %1842 = vdwg.mxu0
        %v1843 = vld [vmem:[%s13] sm:$0x1]
        %v1845 = vlaneseq
        %v1846 = vshrl.u32 %v1845, 7
        %v1847 = vsub.s32 0, %v1846
        %v1848 = vrot.slane %v1843, %v1847
        %v1850 = vadd.f32 %v1840, %v1848
        %v1851 = vxor.u32 %v1850, 2147483648
        %v1852 = vmul.f32 %v1851, 1.442695
        %v1853 = vpow.pop %v1852
        %v1854 = vadd.f32 %v1853, 1.0
        %v1855 = vrcp.pop %v1854
        %v1856 = vmul.f32 1.0, %v1855
        %v1857 = vmul.f32 %v1856, %v1689
        %v1858 = vsub.f32 1.0, %v1856
        %v1859 = vmul.f32 %v1858, %v680
        %v1860 = vadd.f32 %v1857, %v1859
        %v1861 = vsel %vm694, %v1860, 0.0
        %1862 = vadd.xlane.f32.xlu0 %v1861
        %v1863 = vpop.xlane.xlu0 %1862
        %v1864 = vrcp.pop 32.0
        %v1865 = vmul.f32 %v1863, %v1864
        %v1866 = vsub.f32 %v1860, %v1865
        %v1867 = vmul.f32 %v1866, %v1866
        %v1868 = vsel %vm694, %v1867, 0.0
        %1869 = vadd.xlane.f32.xlu0 %v1868
        %v1870 = vpop.xlane.xlu0 %1869
        %v1871 = vmul.f32 %v1870, %v1864
        %v1872 = vadd.f32 %v1871, 1e-12
        %v1873 = vrsqrt.pop %v1872
        %v1874 = vmul.f32 %v1866, %v1873
        %v1875 = vld [vmem:[%s14] sm:$0x1]
        %v1877 = vlaneseq
        %v1878 = vshrl.u32 %v1877, 7
        %v1879 = vsub.s32 0, %v1878
        %v1880 = vrot.slane %v1875, %v1879
        %v1882 = vmul.f32 %v1874, %v1880
        %v1883 = vld [vmem:[%s15] sm:$0x1]
        %v1885 = vlaneseq
        %v1886 = vshrl.u32 %v1885, 7
        %v1887 = vsub.s32 0, %v1886
        %v1888 = vrot.slane %v1883, %v1887
        %v1890 = vadd.f32 %v1882, %v1888
        %1891 = vst.msk [vmem:[%s679] sm:$0xff] %vm694, %v1890
        %s1892 = sand.u32 %s415, 1
        %s1893 = scalar_lea.sflag [#allocation4], %s1892
        %s1894 = sand.u32 %s415, 1
        %s1895 = smul.addr %s1894, 8
        %s1896 = scalar_lea.vmem [#allocation14], %s1895
        // Predicated region
        $region113: #{tpu_custom_call.1} parent=83 // pred_check
          %p1897 = pneg %p425
        $region114: #{tpu_custom_call.1} parent=83 // pred_check_branch
          %1899 = sbr.rel (%p1897) target = $region116
        $region115: #{tpu_custom_call.1} parent=83 // pred_region
          %s1901 = ssub.s32 128, 128
          %1902 = vsyncadd %s1893, %s1901
          %s1903 = sadd.s32 %s43, %s42
          %s1904 = smul.addr %s1903, 128
          %s1905 = scalar_lea.hbm %s16, %s1904
          %s1907 = sshll.u32 %s1896, 4
          %s1908 = int_to_ptr.vmem [resolvable:$true] %s1907
          %1910 = dma.vmem_to_hbm [thread:$0]  %s1908, 128, %s1905, %s1893
        $region116: #{tpu_custom_call.1} parent=83 // pred_fallthru
          _
      $region84: #{tpu_custom_call.1} parent=5 // pred_fallthru
        _
      %p1911 = scmp.le.s32.totalorder 2, %s33
      // Predicated region
      $region117: #{tpu_custom_call.1} parent=5 // pred_check
        %p1912 = pneg %p1911
      $region118: #{tpu_custom_call.1} parent=5 // pred_check_branch
        %1914 = sbr.rel (%p1912) target = $region120
      $region119: #{tpu_custom_call.1} parent=5 // pred_region
        %s1915 = ssub.s32 %s33, 2
        // Predicated region
        $region121: #{tpu_custom_call.1} parent=119 // pred_check
          %p1916 = pneg %p431
        $region122: #{tpu_custom_call.1} parent=119 // pred_check_branch
          %1918 = sbr.rel (%p1916) target = $region124
        $region123: #{tpu_custom_call.1} parent=119 // pred_region
          %s1919 = sand.u32 %s416, 1
          %s1920 = scalar_lea.sflag [#allocation4], %s1919
          %s1921 = sand.u32 %s416, 1
          %s1922 = smul.addr %s1921, 8
          %s1923 = scalar_lea.vmem [#allocation14], %s1922
          %1924 = dma.done %s1920, 128
        $region124: #{tpu_custom_call.1} parent=119 // pred_fallthru
          _
      $region120: #{tpu_custom_call.1} parent=5 // pred_fallthru
        _
    $region6: #{tpu_custom_call.1} parent=1 // loop_footer
      %s37 = sadd.s32 1, %s33
    $region7: #{tpu_custom_call.1} parent=1 // loop_footer_branch
      %32 = sbr.rel target = $region3
    $region8: #{tpu_custom_call.1} parent=1 // loop_exit
      _
    %1925 = vsyncpa [#allocation3], 1
    %s1926 = scalar_lea.sflag [#allocation3], 1
    %1927 = vsyncpa %s1926, 1
    %1928 = vsyncpa [#allocation6], 1
    %s1929 = scalar_lea.sflag [#allocation6], 1
    %1930 = vsyncpa %s1929, 1
    %1931 = vsyncpa [#allocation9], 1
    %1932 = vsyncpa [#allocation12], 1
    %1933 = vsyncpa [#allocation4], 1
    %s1934 = scalar_lea.sflag [#allocation4], 1
    %1935 = vsyncpa %s1934, 1

// kernel: tpu_custom_call.1
$region0: #{tpu_custom_call.1}
  #allocation0 [shape = 'u32[]', space=smem, size = 0x4, offset = 0x4, fixed_abs, tag = 'smem constant byte address 0x4 - core index']
  #allocation1 [shape = 'u32[144,128]{1,0:T(1,128)}', space=vmem, size = 0x12000, scoped, tag = 'internal scratch']
  %s0 = inlined_call_operand.hbm [shape: f32[2,8,32], index: 0, kind: input, shape index: {}]
  %s1 = inlined_call_operand.hbm [shape: f32[2,8,32], index: 1, kind: input, shape index: {}]
  %s2 = inlined_call_operand.hbm [shape: f32[2,8,8], index: 2, kind: input, shape index: {}]
  %s3 = inlined_call_operand.vmem [shape: f32[32,8], index: 3, kind: input, shape index: {}]
  %s4 = inlined_call_operand.hbm [shape: f32[1,8], index: 4, kind: input, shape index: {}]
  %s5 = inlined_call_operand.vmem [shape: f32[32,8], index: 5, kind: input, shape index: {}]
  %s6 = inlined_call_operand.hbm [shape: f32[1,8], index: 6, kind: input, shape index: {}]
  %s7 = inlined_call_operand.vmem [shape: f32[32,32], index: 7, kind: input, shape index: {}]
  %s8 = inlined_call_operand.hbm [shape: f32[1,32], index: 8, kind: input, shape index: {}]
  %s9 = inlined_call_operand.vmem [shape: f32[32,32], index: 9, kind: input, shape index: {}]
  %s10 = inlined_call_operand.vmem [shape: f32[1,32], index: 10, kind: input, shape index: {}]
  %s11 = inlined_call_operand.vmem [shape: f32[32,32], index: 11, kind: input, shape index: {}]
  %s12 = inlined_call_operand.hbm [shape: f32[32,32], index: 12, kind: input, shape index: {}]
  %s13 = inlined_call_operand.vmem [shape: f32[1,32], index: 13, kind: input, shape index: {}]
  %s14 = inlined_call_operand.vmem [shape: f32[1,32], index: 14, kind: input, shape index: {}]
  %s15 = inlined_call_operand.vmem [shape: f32[1,32], index: 15, kind: input, shape index: {}]
  %s16 = inlined_call_operand.hbm [shape: f32[2,8,32], index: 16, kind: output, shape index: {}]
  %s17 = sld [smem:[#allocation0]]
  $region125: #{tpu_custom_call.1} parent=0
    _
  %s19 = ssub.s32 1, %s17
  %s20 = scalar_select 0, %s19, %s17
  $region1: #{tpu_custom_call.1} parent=0
    #allocation2 [shape = 'u8[8192]{0}', space=vmem, size = 0x2000, scoped, tag = 'input window, operand 0']
    #allocation3 [shape = 's32[2]{0}', space=sflag, size = 0x8, scoped, tag = 'scoped memory for tpu_custom_call.1']
    #allocation4 [shape = 's32[2]{0}', space=sflag, size = 0x8, scoped, tag = 'scoped memory for tpu_custom_call.1']
    #allocation5 [shape = 'u8[8192]{0}', space=vmem, size = 0x2000, scoped, tag = 'input window, operand 1']
    #allocation6 [shape = 's32[2]{0}', space=sflag, size = 0x8, scoped, tag = 'scoped memory for tpu_custom_call.1']
    #allocation7 [shape = 'u8[8192]{0}', space=vmem, size = 0x2000, scoped, tag = 'input window, operand 2']
    #allocation8 [shape = 'u8[512]{0}', space=vmem, size = 0x400, scoped, tag = 'input window, operand 4, single buffered']
    #allocation9 [shape = 's32[1]{0}', space=sflag, size = 0x4, scoped, tag = 'scoped memory for tpu_custom_call.1']
    #allocation10 [shape = 'u8[512]{0}', space=vmem, size = 0x400, scoped, tag = 'input window, operand 6, single buffered']
    #allocation11 [shape = 'u8[512]{0}', space=vmem, size = 0x400, scoped, tag = 'input window, operand 8, single buffered']
    #allocation12 [shape = 's32[1]{0}', space=sflag, size = 0x4, scoped, tag = 'scoped memory for tpu_custom_call.1']
    #allocation13 [shape = 'u8[16384]{0}', space=vmem, size = 0x4000, scoped, tag = 'input window, operand 12, single buffered']
    #allocation14 [shape = 'u8[8192]{0}', space=vmem, size = 0x2000, scoped, tag = 'output window, operand 0']
    %21 = vsyncpa [#allocation3], 0
    %s22 = scalar_lea.sflag [#allocation3], 1
    %23 = vsyncpa %s22, 0
    %24 = vsyncpa [#allocation6], 0
    %s25 = scalar_lea.sflag [#allocation6], 1
    %26 = vsyncpa %s25, 0
    %27 = vsyncpa [#allocation9], 0
    %28 = vsyncpa [#allocation12], 0
    %29 = vsyncpa [#allocation4], 0
    %s30 = scalar_lea.sflag [#allocation4], 1
    %31 = vsyncpa %s30, 0
    loop: start=0, step=1, limit=4
    $region2: #{tpu_custom_call.1} parent=1 // loop_pre_header
      _
    $region3: #{tpu_custom_call.1} parent=1 // loop_header
      %s33 = sphi 0, %s37
      %p34 = scmp.ge.s32.totalorder %s33, 4
      %s40 = sphi 0, %s52
      %s41 = sphi 0, %s48
      %s42 = sphi 0, %s40
      %s43 = sphi 0, %s41
      %s44 = sphi 0, %s42
      %s45 = sphi 0, %s43
      %s57 = sphi 0, %s59
      %s60 = sphi 0, %s57
      %s61 = sphi 0, %s60
      %s77 = sphi 0, %s61
      %s83 = sphi 0, %s85
      %s86 = sphi 0, %s83
      %s87 = sphi 0, %s86
      %s103 = sphi 0, %s87
      %s111 = sphi 0, %s113
      %s114 = sphi 0, %s111
      %s115 = sphi 0, %s114
      %s131 = sphi 0, %s115
      %s135 = sphi 0, %s135
      %s137 = sphi 0, %s135
      %s138 = sphi 0, %s137
      %s152 = sphi 0, %s138
      %s156 = sphi 0, %s156
      %s158 = sphi 0, %s156
      %s159 = sphi 0, %s158
      %s173 = sphi 0, %s159
      %s177 = sphi 0, %s177
      %s179 = sphi 0, %s177
      %s180 = sphi 0, %s179
      %s194 = sphi 0, %s180
      %s198 = sphi 0, %s198
      %s200 = sphi 0, %s198
      %s201 = sphi 0, %s200
      %s215 = sphi 0, %s201
      %s219 = sphi 0, %s219
      %s221 = sphi 0, %s219
      %s222 = sphi 0, %s221
      %s236 = sphi 0, %s222
      %s240 = sphi 0, %s240
      %s242 = sphi 0, %s240
      %s243 = sphi 0, %s242
      %s257 = sphi 0, %s243
      %s261 = sphi 0, %s261
      %s263 = sphi 0, %s261
      %s264 = sphi 0, %s263
      %s278 = sphi 0, %s264
      %s282 = sphi 0, %s282
      %s284 = sphi 0, %s282
      %s285 = sphi 0, %s284
      %s299 = sphi 0, %s285
      %s303 = sphi 0, %s303
      %s305 = sphi 0, %s303
      %s306 = sphi 0, %s305
      %s320 = sphi 0, %s306
      %s324 = sphi 0, %s324
      %s326 = sphi 0, %s324
      %s327 = sphi 0, %s326
      %s341 = sphi 0, %s327
      %s345 = sphi 0, %s345
      %s347 = sphi 0, %s345
      %s348 = sphi 0, %s347
      %s362 = sphi 0, %s348
      %s366 = sphi 0, %s366
      %s368 = sphi 0, %s366
      %s369 = sphi 0, %s368
      %s383 = sphi 0, %s369
      %s387 = sphi 0, %s387
      %s389 = sphi 0, %s387
      %s390 = sphi 0, %s389
      %s404 = sphi 0, %s390
      %s412 = sphi 0, %s414
      %s415 = sphi 0, %s412
      %s416 = sphi 0, %s415
      %s432 = sphi 0, %s416
    $region4: #{tpu_custom_call.1} parent=1 // loop_header_branch
      %36 = sbr.rel (%p34) target = $region8
    $region5: #{tpu_custom_call.1} parent=1 // loop_body
      %s38 = ssub.s32 %s33, 1
      %s39 = ssub.s32 %s33, 2
      %s46 = sadd.s32 1, %s41
      %p47 = scmp.ge.s32.totalorder %s46, 1
      %s48 = scalar_select %p47, 0, %s46
      %s49 = sadd.s32 1, %s40
      %s50 = scalar_select %p47, %s49, %s40
      %p51 = scmp.ge.s32.totalorder %s50, 2
      %s52 = scalar_select %p51, 0, %s50
      %s53 = ssub.s32 %s40, %s52
      %s54 = ssub.s32 %s41, %s48
      %s55 = sor.u32 %s53, %s54
      %p56 = scmp.eq.s32.totalorder %s55, 0
      %s58 = sadd.s32 %s57, 1
      %s59 = scalar_select %p56, %s57, %s58
      %p62 = pneg %p56
      %p63 = scmp.eq.s32.totalorder %s33, 1
      %p64 = por %p62, %p63
      %p65 = scmp.ne.s32.totalorder %s57, %s60
      %p66 = scmp.eq.s32.totalorder %s33, 0
      %p67 = por %p65, %p66
      %p68 = scmp.ne.s32.totalorder %s57, %s60
      %p69 = scmp.eq.s32.totalorder %s38, 1
      %p70 = por %p68, %p69
      %p71 = scmp.ne.s32.totalorder %s60, %s61
      %p72 = scmp.eq.s32.totalorder %s38, 0
      %p73 = por %p71, %p72
      %p74 = scmp.ne.s32.totalorder %s60, %s61
      %p75 = scmp.eq.s32.totalorder %s39, 1
      %p76 = por %p74, %p75
      %p78 = scmp.ne.s32.totalorder %s61, %s77
      %p79 = scmp.eq.s32.totalorder %s39, 0
      %p80 = por %p78, %p79
      %s81 = ssub.s32 %s40, %s52
      %p82 = scmp.eq.s32.totalorder %s81, 0
      %s84 = sadd.s32 %s83, 1
      %s85 = scalar_select %p82, %s83, %s84
      %p88 = pneg %p82
      %p89 = scmp.eq.s32.totalorder %s33, 1
      %p90 = por %p88, %p89
      %p91 = scmp.ne.s32.totalorder %s83, %s86
      %p92 = scmp.eq.s32.totalorder %s33, 0
      %p93 = por %p91, %p92
      %p94 = scmp.ne.s32.totalorder %s83, %s86
      %p95 = scmp.eq.s32.totalorder %s38, 1
      %p96 = por %p94, %p95
      %p97 = scmp.ne.s32.totalorder %s86, %s87
      %p98 = scmp.eq.s32.totalorder %s38, 0
      %p99 = por %p97, %p98
      %p100 = scmp.ne.s32.totalorder %s86, %s87
      %p101 = scmp.eq.s32.totalorder %s39, 1
      %p102 = por %p100, %p101
      %p104 = scmp.ne.s32.totalorder %s87, %s103
      %p105 = scmp.eq.s32.totalorder %s39, 0
      %p106 = por %p104, %p105
      %s107 = ssub.s32 %s40, %s52
      %s108 = ssub.s32 %s41, %s48
      %s109 = sor.u32 %s107, %s108
      %p110 = scmp.eq.s32.totalorder %s109, 0
      %s112 = sadd.s32 %s111, 1
      %s113 = scalar_select %p110, %s111, %s112
      %p116 = pneg %p110
      %p117 = scmp.eq.s32.totalorder %s33, 1
      %p118 = por %p116, %p117
      %p119 = scmp.ne.s32.totalorder %s111, %s114
      %p120 = scmp.eq.s32.totalorder %s33, 0
      %p121 = por %p119, %p120
      %p122 = scmp.ne.s32.totalorder %s111, %s114
      %p123 = scmp.eq.s32.totalorder %s38, 1
      %p124 = por %p122, %p123
      %p125 = scmp.ne.s32.totalorder %s114, %s115
      %p126 = scmp.eq.s32.totalorder %s38, 0
      %p127 = por %p125, %p126
      %p128 = scmp.ne.s32.totalorder %s114, %s115
      %p129 = scmp.eq.s32.totalorder %s39, 1
      %p130 = por %p128, %p129
      %p132 = scmp.ne.s32.totalorder %s115, %s131
      %p133 = scmp.eq.s32.totalorder %s39, 0
      %p134 = por %p132, %p133
      %s136 = sadd.s32 %s135, 1
      %p139 = scmp.eq.s32.totalorder %s33, 1
      %p140 = scmp.ne.s32.totalorder %s135, %s137
      %p141 = scmp.eq.s32.totalorder %s33, 0
      %p142 = por %p140, %p141
      %p143 = scmp.ne.s32.totalorder %s135, %s137
      %p144 = scmp.eq.s32.totalorder %s38, 1
      %p145 = por %p143, %p144
      %p146 = scmp.ne.s32.totalorder %s137, %s138
      %p147 = scmp.eq.s32.totalorder %s38, 0
      %p148 = por %p146, %p147
      %p149 = scmp.ne.s32.totalorder %s137, %s138
      %p150 = scmp.eq.s32.totalorder %s39, 1
      %p151 = por %p149, %p150
      %p153 = scmp.ne.s32.totalorder %s138, %s152
      %p154 = scmp.eq.s32.totalorder %s39, 0
      %p155 = por %p153, %p154
      %s157 = sadd.s32 %s156, 1
      %p160 = scmp.eq.s32.totalorder %s33, 1
      %p161 = scmp.ne.s32.totalorder %s156, %s158
      %p162 = scmp.eq.s32.totalorder %s33, 0
      %p163 = por %p161, %p162
      %p164 = scmp.ne.s32.totalorder %s156, %s158
      %p165 = scmp.eq.s32.totalorder %s38, 1
      %p166 = por %p164, %p165
      %p167 = scmp.ne.s32.totalorder %s158, %s159
      %p168 = scmp.eq.s32.totalorder %s38, 0
      %p169 = por %p167, %p168
      %p170 = scmp.ne.s32.totalorder %s158, %s159
      %p171 = scmp.eq.s32.totalorder %s39, 1
      %p172 = por %p170, %p171
      %p174 = scmp.ne.s32.totalorder %s159, %s173
      %p175 = scmp.eq.s32.totalorder %s39, 0
      %p176 = por %p174, %p175
      %s178 = sadd.s32 %s177, 1
      %p181 = scmp.eq.s32.totalorder %s33, 1
      %p182 = scmp.ne.s32.totalorder %s177, %s179
      %p183 = scmp.eq.s32.totalorder %s33, 0
      %p184 = por %p182, %p183
      %p185 = scmp.ne.s32.totalorder %s177, %s179
      %p186 = scmp.eq.s32.totalorder %s38, 1
      %p187 = por %p185, %p186
      %p188 = scmp.ne.s32.totalorder %s179, %s180
      %p189 = scmp.eq.s32.totalorder %s38, 0
      %p190 = por %p188, %p189
      %p191 = scmp.ne.s32.totalorder %s179, %s180
      %p192 = scmp.eq.s32.totalorder %s39, 1
      %p193 = por %p191, %p192
      %p195 = scmp.ne.s32.totalorder %s180, %s194
      %p196 = scmp.eq.s32.totalorder %s39, 0
      %p197 = por %p195, %p196
      %s199 = sadd.s32 %s198, 1
      %p202 = scmp.eq.s32.totalorder %s33, 1
      %p203 = scmp.ne.s32.totalorder %s198, %s200
      %p204 = scmp.eq.s32.totalorder %s33, 0
      %p205 = por %p203, %p204
      %p206 = scmp.ne.s32.totalorder %s198, %s200
      %p207 = scmp.eq.s32.totalorder %s38, 1
      %p208 = por %p206, %p207
      %p209 = scmp.ne.s32.totalorder %s200, %s201
      %p210 = scmp.eq.s32.totalorder %s38, 0
      %p211 = por %p209, %p210
      %p212 = scmp.ne.s32.totalorder %s200, %s201
      %p213 = scmp.eq.s32.totalorder %s39, 1
      %p214 = por %p212, %p213
      %p216 = scmp.ne.s32.totalorder %s201, %s215
      %p217 = scmp.eq.s32.totalorder %s39, 0
      %p218 = por %p216, %p217
      %s220 = sadd.s32 %s219, 1
      %p223 = scmp.eq.s32.totalorder %s33, 1
      %p224 = scmp.ne.s32.totalorder %s219, %s221
      %p225 = scmp.eq.s32.totalorder %s33, 0
      %p226 = por %p224, %p225
      %p227 = scmp.ne.s32.totalorder %s219, %s221
      %p228 = scmp.eq.s32.totalorder %s38, 1
      %p229 = por %p227, %p228
      %p230 = scmp.ne.s32.totalorder %s221, %s222
      %p231 = scmp.eq.s32.totalorder %s38, 0
      %p232 = por %p230, %p231
      %p233 = scmp.ne.s32.totalorder %s221, %s222
      %p234 = scmp.eq.s32.totalorder %s39, 1
      %p235 = por %p233, %p234
      %p237 = scmp.ne.s32.totalorder %s222, %s236
      %p238 = scmp.eq.s32.totalorder %s39, 0
      %p239 = por %p237, %p238
      %s241 = sadd.s32 %s240, 1
      %p244 = scmp.eq.s32.totalorder %s33, 1
      %p245 = scmp.ne.s32.totalorder %s240, %s242
      %p246 = scmp.eq.s32.totalorder %s33, 0
      %p247 = por %p245, %p246
      %p248 = scmp.ne.s32.totalorder %s240, %s242
      %p249 = scmp.eq.s32.totalorder %s38, 1
      %p250 = por %p248, %p249
      %p251 = scmp.ne.s32.totalorder %s242, %s243
      %p252 = scmp.eq.s32.totalorder %s38, 0
      %p253 = por %p251, %p252
      %p254 = scmp.ne.s32.totalorder %s242, %s243
      %p255 = scmp.eq.s32.totalorder %s39, 1
      %p256 = por %p254, %p255
      %p258 = scmp.ne.s32.totalorder %s243, %s257
      %p259 = scmp.eq.s32.totalorder %s39, 0
      %p260 = por %p258, %p259
      %s262 = sadd.s32 %s261, 1
      %p265 = scmp.eq.s32.totalorder %s33, 1
      %p266 = scmp.ne.s32.totalorder %s261, %s263
      %p267 = scmp.eq.s32.totalorder %s33, 0
      %p268 = por %p266, %p267
      %p269 = scmp.ne.s32.totalorder %s261, %s263
      %p270 = scmp.eq.s32.totalorder %s38, 1
      %p271 = por %p269, %p270
      %p272 = scmp.ne.s32.totalorder %s263, %s264
      %p273 = scmp.eq.s32.totalorder %s38, 0
      %p274 = por %p272, %p273
      %p275 = scmp.ne.s32.totalorder %s263, %s264
      %p276 = scmp.eq.s32.totalorder %s39, 1
      %p277 = por %p275, %p276
      %p279 = scmp.ne.s32.totalorder %s264, %s278
      %p280 = scmp.eq.s32.totalorder %s39, 0
      %p281 = por %p279, %p280
      %s283 = sadd.s32 %s282, 1
      %p286 = scmp.eq.s32.totalorder %s33, 1
      %p287 = scmp.ne.s32.totalorder %s282, %s284
      %p288 = scmp.eq.s32.totalorder %s33, 0
      %p289 = por %p287, %p288
      %p290 = scmp.ne.s32.totalorder %s282, %s284
      %p291 = scmp.eq.s32.totalorder %s38, 1
      %p292 = por %p290, %p291
      %p293 = scmp.ne.s32.totalorder %s284, %s285
      %p294 = scmp.eq.s32.totalorder %s38, 0
      %p295 = por %p293, %p294
      %p296 = scmp.ne.s32.totalorder %s284, %s285
      %p297 = scmp.eq.s32.totalorder %s39, 1
      %p298 = por %p296, %p297
      %p300 = scmp.ne.s32.totalorder %s285, %s299
      %p301 = scmp.eq.s32.totalorder %s39, 0
      %p302 = por %p300, %p301
      %s304 = sadd.s32 %s303, 1
      %p307 = scmp.eq.s32.totalorder %s33, 1
      %p308 = scmp.ne.s32.totalorder %s303, %s305
      %p309 = scmp.eq.s32.totalorder %s33, 0
      %p310 = por %p308, %p309
      %p311 = scmp.ne.s32.totalorder %s303, %s305
      %p312 = scmp.eq.s32.totalorder %s38, 1
      %p313 = por %p311, %p312
      %p314 = scmp.ne.s32.totalorder %s305, %s306
      %p315 = scmp.eq.s32.totalorder %s38, 0
      %p316 = por %p314, %p315
      %p317 = scmp.ne.s32.totalorder %s305, %s306
      %p318 = scmp.eq.s32.totalorder %s39, 1
      %p319 = por %p317, %p318
      %p321 = scmp.ne.s32.totalorder %s306, %s320
      %p322 = scmp.eq.s32.totalorder %s39, 0
      %p323 = por %p321, %p322
      %s325 = sadd.s32 %s324, 1
      %p328 = scmp.eq.s32.totalorder %s33, 1
      %p329 = scmp.ne.s32.totalorder %s324, %s326
      %p330 = scmp.eq.s32.totalorder %s33, 0
      %p331 = por %p329, %p330
      %p332 = scmp.ne.s32.totalorder %s324, %s326
      %p333 = scmp.eq.s32.totalorder %s38, 1
      %p334 = por %p332, %p333
      %p335 = scmp.ne.s32.totalorder %s326, %s327
      %p336 = scmp.eq.s32.totalorder %s38, 0
      %p337 = por %p335, %p336
      %p338 = scmp.ne.s32.totalorder %s326, %s327
      %p339 = scmp.eq.s32.totalorder %s39, 1
      %p340 = por %p338, %p339
      %p342 = scmp.ne.s32.totalorder %s327, %s341
      %p343 = scmp.eq.s32.totalorder %s39, 0
      %p344 = por %p342, %p343
      %s346 = sadd.s32 %s345, 1
      %p349 = scmp.eq.s32.totalorder %s33, 1
      %p350 = scmp.ne.s32.totalorder %s345, %s347
      %p351 = scmp.eq.s32.totalorder %s33, 0
      %p352 = por %p350, %p351
      %p353 = scmp.ne.s32.totalorder %s345, %s347
      %p354 = scmp.eq.s32.totalorder %s38, 1
      %p355 = por %p353, %p354
      %p356 = scmp.ne.s32.totalorder %s347, %s348
      %p357 = scmp.eq.s32.totalorder %s38, 0
      %p358 = por %p356, %p357
      %p359 = scmp.ne.s32.totalorder %s347, %s348
      %p360 = scmp.eq.s32.totalorder %s39, 1
      %p361 = por %p359, %p360
      %p363 = scmp.ne.s32.totalorder %s348, %s362
      %p364 = scmp.eq.s32.totalorder %s39, 0
      %p365 = por %p363, %p364
      %s367 = sadd.s32 %s366, 1
      %p370 = scmp.eq.s32.totalorder %s33, 1
      %p371 = scmp.ne.s32.totalorder %s366, %s368
      %p372 = scmp.eq.s32.totalorder %s33, 0
      %p373 = por %p371, %p372
      %p374 = scmp.ne.s32.totalorder %s366, %s368
      %p375 = scmp.eq.s32.totalorder %s38, 1
      %p376 = por %p374, %p375
      %p377 = scmp.ne.s32.totalorder %s368, %s369
      %p378 = scmp.eq.s32.totalorder %s38, 0
      %p379 = por %p377, %p378
      %p380 = scmp.ne.s32.totalorder %s368, %s369
      %p381 = scmp.eq.s32.totalorder %s39, 1
      %p382 = por %p380, %p381
      %p384 = scmp.ne.s32.totalorder %s369, %s383
      %p385 = scmp.eq.s32.totalorder %s39, 0
      %p386 = por %p384, %p385
      %s388 = sadd.s32 %s387, 1
      %p391 = scmp.eq.s32.totalorder %s33, 1
      %p392 = scmp.ne.s32.totalorder %s387, %s389
      %p393 = scmp.eq.s32.totalorder %s33, 0
      %p394 = por %p392, %p393
      %p395 = scmp.ne.s32.totalorder %s387, %s389
      %p396 = scmp.eq.s32.totalorder %s38, 1
      %p397 = por %p395, %p396
      %p398 = scmp.ne.s32.totalorder %s389, %s390
      %p399 = scmp.eq.s32.totalorder %s38, 0
      %p400 = por %p398, %p399
      %p401 = scmp.ne.s32.totalorder %s389, %s390
      %p402 = scmp.eq.s32.totalorder %s39, 1
      %p403 = por %p401, %p402
      %p405 = scmp.ne.s32.totalorder %s390, %s404
      %p406 = scmp.eq.s32.totalorder %s39, 0
      %p407 = por %p405, %p406
      %s408 = ssub.s32 %s40, %s52
      %s409 = ssub.s32 %s41, %s48
      %s410 = sor.u32 %s408, %s409
      %p411 = scmp.eq.s32.totalorder %s410, 0
      %s413 = sadd.s32 %s412, 1
      %s414 = scalar_select %p411, %s412, %s413
      %p417 = pneg %p411
      %p418 = scmp.eq.s32.totalorder %s33, 1
      %p419 = por %p417, %p418
      %p420 = scmp.ne.s32.totalorder %s412, %s415
      %p421 = scmp.eq.s32.totalorder %s33, 0
      %p422 = por %p420, %p421
      %p423 = scmp.ne.s32.totalorder %s412, %s415
      %p424 = scmp.eq.s32.totalorder %s38, 1
      %p425 = por %p423, %p424
      %p426 = scmp.ne.s32.totalorder %s415, %s416
      %p427 = scmp.eq.s32.totalorder %s38, 0
      %p428 = por %p426, %p427
      %p429 = scmp.ne.s32.totalorder %s415, %s416
      %p430 = scmp.eq.s32.totalorder %s39, 1
      %p431 = por %p429, %p430
      %p433 = scmp.ne.s32.totalorder %s416, %s432
      %p434 = scmp.eq.s32.totalorder %s39, 0
      %p435 = por %p433, %p434
      %p436 = scmp.le.s32.totalorder 1, %s33
      %p437 = scmp.lt.s32.totalorder %s33, 3
      %p438 = pnand %p436, %p437
      %p439 = pneg %p438
      // Predicated region
      $region9: #{tpu_custom_call.1} parent=5 // pred_check
        _
      $region10: #{tpu_custom_call.1} parent=5 // pred_check_branch
        %441 = sbr.rel (%p438) target = $region12
      $region11: #{tpu_custom_call.1} parent=5 // pred_region
        %s442 = ssub.s32 %s33, 1
        // Predicated region
        $region13: #{tpu_custom_call.1} parent=11 // pred_check
          %p443 = pneg %p148
        $region14: #{tpu_custom_call.1} parent=11 // pred_check_branch
          %445 = sbr.rel (%p443) target = $region16
        $region15: #{tpu_custom_call.1} parent=11 // pred_region
          _
        $region16: #{tpu_custom_call.1} parent=11 // pred_fallthru
          _
        // Predicated region
        $region17: #{tpu_custom_call.1} parent=11 // pred_check
          %p446 = pneg %p169
        $region18: #{tpu_custom_call.1} parent=11 // pred_check_branch
          %448 = sbr.rel (%p446) target = $region20
        $region19: #{tpu_custom_call.1} parent=11 // pred_region
          %s450 = ssub.s32 16, 16
          %451 = vsyncadd [#allocation9], %s450
          %s453 = sshll.u32 [#allocation8], 4
          %s454 = int_to_ptr.vmem [resolvable:$true] %s453
          %456 = dma.hbm_to_vmem [thread:$0]  %s4, 16, %s454, [#allocation9]
        $region20: #{tpu_custom_call.1} parent=11 // pred_fallthru
          _
        // Predicated region
        $region21: #{tpu_custom_call.1} parent=11 // pred_check
          %p457 = pneg %p190
        $region22: #{tpu_custom_call.1} parent=11 // pred_check_branch
          %459 = sbr.rel (%p457) target = $region24
        $region23: #{tpu_custom_call.1} parent=11 // pred_region
          _
        $region24: #{tpu_custom_call.1} parent=11 // pred_fallthru
          _
        // Predicated region
        $region25: #{tpu_custom_call.1} parent=11 // pred_check
          %p460 = pneg %p211
        $region26: #{tpu_custom_call.1} parent=11 // pred_check_branch
          %462 = sbr.rel (%p460) target = $region28
        $region27: #{tpu_custom_call.1} parent=11 // pred_region
          %s464 = ssub.s32 16, 16
          %465 = vsyncadd [#allocation9], %s464
          %s467 = sshll.u32 [#allocation10], 4
          %s468 = int_to_ptr.vmem [resolvable:$true] %s467
          %470 = dma.hbm_to_vmem [thread:$0]  %s6, 16, %s468, [#allocation9]
        $region28: #{tpu_custom_call.1} parent=11 // pred_fallthru
          _
        // Predicated region
        $region29: #{tpu_custom_call.1} parent=11 // pred_check
          %p471 = pneg %p232
        $region30: #{tpu_custom_call.1} parent=11 // pred_check_branch
          %473 = sbr.rel (%p471) target = $region32
        $region31: #{tpu_custom_call.1} parent=11 // pred_region
          _
        $region32: #{tpu_custom_call.1} parent=11 // pred_fallthru
          _
        // Predicated region
        $region33: #{tpu_custom_call.1} parent=11 // pred_check
          %p474 = pneg %p253
        $region34: #{tpu_custom_call.1} parent=11 // pred_check_branch
          %476 = sbr.rel (%p474) target = $region36
        $region35: #{tpu_custom_call.1} parent=11 // pred_region
          %s478 = ssub.s32 16, 16
          %479 = vsyncadd [#allocation12], %s478
          %s481 = sshll.u32 [#allocation11], 4
          %s482 = int_to_ptr.vmem [resolvable:$true] %s481
          %484 = dma.hbm_to_vmem [thread:$0]  %s8, 16, %s482, [#allocation12]
        $region36: #{tpu_custom_call.1} parent=11 // pred_fallthru
          _
        // Predicated region
        $region37: #{tpu_custom_call.1} parent=11 // pred_check
          %p485 = pneg %p274
        $region38: #{tpu_custom_call.1} parent=11 // pred_check_branch
          %487 = sbr.rel (%p485) target = $region40
        $region39: #{tpu_custom_call.1} parent=11 // pred_region
          _
        $region40: #{tpu_custom_call.1} parent=11 // pred_fallthru
          _
        // Predicated region
        $region41: #{tpu_custom_call.1} parent=11 // pred_check
          %p488 = pneg %p295
        $region42: #{tpu_custom_call.1} parent=11 // pred_check_branch
          %490 = sbr.rel (%p488) target = $region44
        $region43: #{tpu_custom_call.1} parent=11 // pred_region
          _
        $region44: #{tpu_custom_call.1} parent=11 // pred_fallthru
          _
        // Predicated region
        $region45: #{tpu_custom_call.1} parent=11 // pred_check
          %p491 = pneg %p316
        $region46: #{tpu_custom_call.1} parent=11 // pred_check_branch
          %493 = sbr.rel (%p491) target = $region48
        $region47: #{tpu_custom_call.1} parent=11 // pred_region
          _
        $region48: #{tpu_custom_call.1} parent=11 // pred_fallthru
          _
        // Predicated region
        $region49: #{tpu_custom_call.1} parent=11 // pred_check
          %p494 = pneg %p337
        $region50: #{tpu_custom_call.1} parent=11 // pred_check_branch
          %496 = sbr.rel (%p494) target = $region52
        $region51: #{tpu_custom_call.1} parent=11 // pred_region
          %s498 = ssub.s32 512, 512
          %499 = vsyncadd [#allocation12], %s498
          %s500 = sshll.u32 [#allocation13], 4
          %s501 = int_to_ptr.vmem [resolvable:$true] %s500
          %506 = dma.hbm_to_vmem [thread:$0]  %s12, 512, %s501, [#allocation12], 128, 128, 8
        $region52: #{tpu_custom_call.1} parent=11 // pred_fallthru
          _
        // Predicated region
        $region53: #{tpu_custom_call.1} parent=11 // pred_check
          %p507 = pneg %p358
        $region54: #{tpu_custom_call.1} parent=11 // pred_check_branch
          %509 = sbr.rel (%p507) target = $region56
        $region55: #{tpu_custom_call.1} parent=11 // pred_region
          _
        $region56: #{tpu_custom_call.1} parent=11 // pred_fallthru
          _
        // Predicated region
        $region57: #{tpu_custom_call.1} parent=11 // pred_check
          %p510 = pneg %p379
        $region58: #{tpu_custom_call.1} parent=11 // pred_check_branch
          %512 = sbr.rel (%p510) target = $region60
        $region59: #{tpu_custom_call.1} parent=11 // pred_region
          _
        $region60: #{tpu_custom_call.1} parent=11 // pred_fallthru
          _
        // Predicated region
        $region61: #{tpu_custom_call.1} parent=11 // pred_check
          %p513 = pneg %p400
        $region62: #{tpu_custom_call.1} parent=11 // pred_check_branch
          %515 = sbr.rel (%p513) target = $region64
        $region63: #{tpu_custom_call.1} parent=11 // pred_region
          _
        $region64: #{tpu_custom_call.1} parent=11 // pred_fallthru
          _
      $region12: #{tpu_custom_call.1} parent=5 // pred_fallthru
        _
      %p516 = scmp.lt.s32.totalorder %s33, 2
      // Predicated region
      $region65: #{tpu_custom_call.1} parent=5 // pred_check
        %p517 = pneg %p516
      $region66: #{tpu_custom_call.1} parent=5 // pred_check_branch
        %519 = sbr.rel (%p517) target = $region68
      $region67: #{tpu_custom_call.1} parent=5 // pred_region
        // Predicated region
        $region69: #{tpu_custom_call.1} parent=67 // pred_check
          %p520 = pneg %p67
        $region70: #{tpu_custom_call.1} parent=67 // pred_check_branch
          %522 = sbr.rel (%p520) target = $region72
        $region71: #{tpu_custom_call.1} parent=67 // pred_region
          %s523 = sand.u32 %s57, 1
          %s524 = scalar_lea.sflag [#allocation3], %s523
          %s525 = sand.u32 %s57, 1
          %s526 = smul.addr %s525, 8
          %s527 = scalar_lea.vmem [#allocation2], %s526
          %s529 = ssub.s32 128, 128
          %530 = vsyncadd %s524, %s529
          %s531 = sadd.s32 %s41, %s40
          %s532 = smul.addr %s531, 128
          %s533 = scalar_lea.hbm %s0, %s532
          %s535 = sshll.u32 %s527, 4
          %s536 = int_to_ptr.vmem [resolvable:$true] %s535
          %538 = dma.hbm_to_vmem [thread:$0]  %s533, 128, %s536, %s524
        $region72: #{tpu_custom_call.1} parent=67 // pred_fallthru
          _
        // Predicated region
        $region73: #{tpu_custom_call.1} parent=67 // pred_check
          %p539 = pneg %p93
        $region74: #{tpu_custom_call.1} parent=67 // pred_check_branch
          %541 = sbr.rel (%p539) target = $region76
        $region75: #{tpu_custom_call.1} parent=67 // pred_region
          %s542 = sand.u32 %s33, 1
          %s543 = scalar_lea.sflag [#allocation6], %s542
          %s544 = sand.u32 %s83, 1
          %s545 = smul.addr %s544, 8
          %s546 = scalar_lea.vmem [#allocation5], %s545
          %s548 = ssub.s32 128, 128
          %549 = vsyncadd %s543, %s548
          %s550 = smul.addr %s40, 128
          %s551 = scalar_lea.hbm %s1, %s550
          %s553 = sshll.u32 %s546, 4
          %s554 = int_to_ptr.vmem [resolvable:$true] %s553
          %556 = dma.hbm_to_vmem [thread:$0]  %s551, 128, %s554, %s543
        $region76: #{tpu_custom_call.1} parent=67 // pred_fallthru
          _
        // Predicated region
        $region77: #{tpu_custom_call.1} parent=67 // pred_check
          %p557 = pneg %p121
        $region78: #{tpu_custom_call.1} parent=67 // pred_check_branch
          %559 = sbr.rel (%p557) target = $region80
        $region79: #{tpu_custom_call.1} parent=67 // pred_region
          %s560 = sand.u32 %s33, 1
          %s561 = scalar_lea.sflag [#allocation6], %s560
          %s562 = sand.u32 %s111, 1
          %s563 = smul.addr %s562, 8
          %s564 = scalar_lea.vmem [#allocation7], %s563
          %s566 = ssub.s32 128, 128
          %567 = vsyncadd %s561, %s566
          %s568 = sadd.s32 %s41, %s40
          %s569 = smul.addr %s568, 128
          %s570 = scalar_lea.hbm %s2, %s569
          %s572 = sshll.u32 %s564, 4
          %s573 = int_to_ptr.vmem [resolvable:$true] %s572
          %575 = dma.hbm_to_vmem [thread:$0]  %s570, 128, %s573, %s561
        $region80: #{tpu_custom_call.1} parent=67 // pred_fallthru
          _
      $region68: #{tpu_custom_call.1} parent=5 // pred_fallthru
        _
      %p576 = scmp.le.s32.totalorder 1, %s33
      %p577 = scmp.lt.s32.totalorder %s33, 3
      %p578 = pnand %p576, %p577
      %p579 = pneg %p578
      // Predicated region
      $region81: #{tpu_custom_call.1} parent=5 // pred_check
        _
      $region82: #{tpu_custom_call.1} parent=5 // pred_check_branch
        %581 = sbr.rel (%p578) target = $region84
      $region83: #{tpu_custom_call.1} parent=5 // pred_region
        %s582 = ssub.s32 %s33, 1
        %s583 = sand.u32 %s60, 1
        %s584 = scalar_lea.sflag [#allocation3], %s583
        %s585 = sand.u32 %s60, 1
        %s586 = smul.addr %s585, 8
        %s587 = scalar_lea.vmem [#allocation2], %s586
        // Predicated region
        $region85: #{tpu_custom_call.1} parent=83 // pred_check
          %p588 = pneg %p73
        $region86: #{tpu_custom_call.1} parent=83 // pred_check_branch
          %590 = sbr.rel (%p588) target = $region88
        $region87: #{tpu_custom_call.1} parent=83 // pred_region
          %591 = dma.done %s584, 128
        $region88: #{tpu_custom_call.1} parent=83 // pred_fallthru
          _
        %s592 = sand.u32 %s38, 1
        %s593 = scalar_lea.sflag [#allocation6], %s592
        %s594 = sand.u32 %s86, 1
        %s595 = smul.addr %s594, 8
        %s596 = scalar_lea.vmem [#allocation5], %s595
        // Predicated region
        $region89: #{tpu_custom_call.1} parent=83 // pred_check
          %p597 = pneg %p99
        $region90: #{tpu_custom_call.1} parent=83 // pred_check_branch
          %599 = sbr.rel (%p597) target = $region92
        $region91: #{tpu_custom_call.1} parent=83 // pred_region
          %600 = dma.done %s593, 128
        $region92: #{tpu_custom_call.1} parent=83 // pred_fallthru
          _
        %s601 = sand.u32 %s38, 1
        %s602 = scalar_lea.sflag [#allocation6], %s601
        %s603 = sand.u32 %s114, 1
        %s604 = smul.addr %s603, 8
        %s605 = scalar_lea.vmem [#allocation7], %s604
        // Predicated region
        $region93: #{tpu_custom_call.1} parent=83 // pred_check
          %p606 = pneg %p127
        $region94: #{tpu_custom_call.1} parent=83 // pred_check_branch
          %608 = sbr.rel (%p606) target = $region96
        $region95: #{tpu_custom_call.1} parent=83 // pred_region
          %609 = dma.done %s602, 128
        $region96: #{tpu_custom_call.1} parent=83 // pred_fallthru
          _
        // Predicated region
        $region97: #{tpu_custom_call.1} parent=83 // pred_check
          %p610 = pneg %p169
        $region98: #{tpu_custom_call.1} parent=83 // pred_check_branch
          %612 = sbr.rel (%p610) target = $region100
        $region99: #{tpu_custom_call.1} parent=83 // pred_region
          %613 = dma.done [#allocation9], 16
        $region100: #{tpu_custom_call.1} parent=83 // pred_fallthru
          _
        // Predicated region
        $region101: #{tpu_custom_call.1} parent=83 // pred_check
          %p614 = pneg %p211
        $region102: #{tpu_custom_call.1} parent=83 // pred_check_branch
          %616 = sbr.rel (%p614) target = $region104
        $region103: #{tpu_custom_call.1} parent=83 // pred_region
          %617 = dma.done [#allocation9], 16
        $region104: #{tpu_custom_call.1} parent=83 // pred_fallthru
          _
        // Predicated region
        $region105: #{tpu_custom_call.1} parent=83 // pred_check
          %p618 = pneg %p253
        $region106: #{tpu_custom_call.1} parent=83 // pred_check_branch
          %620 = sbr.rel (%p618) target = $region108
        $region107: #{tpu_custom_call.1} parent=83 // pred_region
          %621 = dma.done [#allocation12], 16
        $region108: #{tpu_custom_call.1} parent=83 // pred_fallthru
          _
        // Predicated region
        $region109: #{tpu_custom_call.1} parent=83 // pred_check
          %p622 = pneg %p337
        $region110: #{tpu_custom_call.1} parent=83 // pred_check_branch
          %624 = sbr.rel (%p622) target = $region112
        $region111: #{tpu_custom_call.1} parent=83 // pred_region
          %625 = dma.done [#allocation12], 512
        $region112: #{tpu_custom_call.1} parent=83 // pred_fallthru
          _
        %s626 = sand.u32 %s60, 1
        %s627 = scalar_lea.sflag [#allocation3], %s626
        %s628 = sand.u32 %s60, 1
        %s629 = smul.addr %s628, 8
        %s630 = scalar_lea.vmem [#allocation2], %s629
        %p631 = pneg %p73
        %p632 = pneg %p70
        %s633 = sand.u32 %s38, 1
        %s634 = scalar_lea.sflag [#allocation6], %s633
        %s635 = sand.u32 %s86, 1
        %s636 = smul.addr %s635, 8
        %s637 = scalar_lea.vmem [#allocation5], %s636
        %p638 = pneg %p99
        %p639 = pneg %p96
        %s640 = sand.u32 %s38, 1
        %s641 = scalar_lea.sflag [#allocation6], %s640
        %s642 = sand.u32 %s114, 1
        %s643 = smul.addr %s642, 8
        %s644 = scalar_lea.vmem [#allocation7], %s643
        %p645 = pneg %p127
        %p646 = pneg %p124
        %p647 = pneg %p148
        %p648 = pneg %p145
        %p649 = pneg %p169
        %p650 = pneg %p166
        %p651 = pneg %p190
        %p652 = pneg %p187
        %p653 = pneg %p211
        %p654 = pneg %p208
        %p655 = pneg %p232
        %p656 = pneg %p229
        %p657 = pneg %p253
        %p658 = pneg %p250
        %p659 = pneg %p274
        %p660 = pneg %p271
        %p661 = pneg %p295
        %p662 = pneg %p292
        %p663 = pneg %p316
        %p664 = pneg %p313
        %p665 = pneg %p337
        %p666 = pneg %p334
        %p667 = pneg %p358
        %p668 = pneg %p355
        %p669 = pneg %p379
        %p670 = pneg %p376
        %p671 = pneg %p400
        %p672 = pneg %p397
        %p673 = pneg %p428
        %p674 = pneg %p425
        %s675 = sand.u32 %s415, 1
        %s676 = scalar_lea.sflag [#allocation4], %s675
        %s677 = sand.u32 %s415, 1
        %s678 = smul.addr %s677, 8
        %s679 = scalar_lea.vmem [#allocation14], %s678
        %v680 = vld [vmem:[%s587] sm:$0xff]
        %v681 = vld [vmem:[%s596] sm:$0xff]
        %v682 = vld [vmem:[%s605] sm:$0xff]
        %v683 = vld [vmem:[%s3] sm:$0xff]
        %v684 = vld [vmem:[%s3 + $0x8] sm:$0xff]
        %v685 = vld [vmem:[%s3 + $0x10] sm:$0xff]
        %v686 = vld [vmem:[%s3 + $0x18] sm:$0xff]
        %v687 = vld [vmem:[#allocation8] sm:$0x1]
        %v689 = vlaneseq
        %v690 = vshrl.u32 %v689, 7
        %v691 = vsub.s32 0, %v690
        %v692 = vrot.slane %v687, %v691
        %vm694 = vcmask 261120
        %v696 = vsel %vm694, %v680, 0
        %698 = vmatprep.subr.mxu0 0.0
        %699 = vmatpush1.msra.mxu0 0.0
        %700 = vmatprep.subr.mxu0 0.0
        %701 = vmatpush1.msra.mxu0 0.0
        %702 = vmatprep.subr.mxu0 0.0
        %703 = vmatpush1.msra.mxu0 0.0
        %704 = vmatprep.subr.mxu0 0.0
        %705 = vmatpush1.msra.mxu0 0.0
        %706 = vmatprep.subr.mxu0 0.0
        %707 = vmatpush1.msra.mxu0 0.0
        %708 = vmatprep.subr.mxu0 0.0
        %709 = vmatpush1.msra.mxu0 0.0
        %710 = vmatprep.subr.mxu0 0.0
        %711 = vmatpush1.msra.mxu0 0.0
        %712 = vmatprep.subr.mxu0 0.0
        %713 = vmatpush1.msra.mxu0 0.0
        %714 = vmatprep.subr.mxu0 0.0
        %715 = vmatpush1.msra.mxu0 0.0
        %716 = vmatprep.subr.mxu0 0.0
        %717 = vmatpush1.msra.mxu0 0.0
        %718 = vmatprep.subr.mxu0 0.0
        %719 = vmatpush1.msra.mxu0 0.0
        %720 = vmatprep.subr.mxu0 0.0
        %721 = vmatpush1.msra.mxu0 0.0
        %722 = vmatprep.subr.mxu0 0.0
        %723 = vmatpush1.msra.mxu0 %v686
        %724 = vmatprep.subr.mxu0 0.0
        %725 = vmatpush1.msra.mxu0 %v685
        %726 = vmatprep.subr.mxu0 0.0
        %727 = vmatpush1.msra.mxu0 %v684
        %728 = vmatprep.subr.mxu0 0.0
        %729 = vmatpush1.msra.mxu0 %v683
        %730 = vmatprep.subr.mxu0 0.0
        %731 = vmatpush2.msra.mxu0 0.0
        %732 = vmatprep.subr.mxu0 0.0
        %733 = vmatpush2.msra.mxu0 0.0
        %734 = vmatprep.subr.mxu0 0.0
        %735 = vmatpush2.msra.mxu0 0.0
        %736 = vmatprep.subr.mxu0 0.0
        %737 = vmatpush2.msra.mxu0 0.0
        %738 = vmatprep.subr.mxu0 0.0
        %739 = vmatpush2.msra.mxu0 0.0
        %740 = vmatprep.subr.mxu0 0.0
        %741 = vmatpush2.msra.mxu0 0.0
        %742 = vmatprep.subr.mxu0 0.0
        %743 = vmatpush2.msra.mxu0 0.0
        %744 = vmatprep.subr.mxu0 0.0
        %745 = vmatpush2.msra.mxu0 0.0
        %746 = vmatprep.subr.mxu0 0.0
        %747 = vmatpush2.msra.mxu0 0.0
        %748 = vmatprep.subr.mxu0 0.0
        %749 = vmatpush2.msra.mxu0 0.0
        %750 = vmatprep.subr.mxu0 0.0
        %751 = vmatpush2.msra.mxu0 0.0
        %752 = vmatprep.subr.mxu0 0.0
        %753 = vmatpush2.msra.mxu0 0.0
        %754 = vmatprep.subr.mxu0 0.0
        %755 = vmatpush2.msra.mxu0 0.0
        %756 = vmatprep.subr.mxu0 0.0
        %757 = vmatpush2.msra.mxu0 0.0
        %758 = vmatprep.subr.mxu0 0.0
        %759 = vmatpush2.msra.mxu0 0.0
        %760 = vmatprep.subr.mxu0 0.0
        %761 = vmatpush2.msra.mxu0 0.0
        %762 = vmatprep.mubr.f32.mxu0 0.0
        %763 = vmatmul.mubr.f32.gmra.mxu0 %v696
        %v764 = vpop.f32.mrf.mxu0
        %v765 = vadd.f32 %v692, %v764
        %v766 = vpop.f32.mrf.mxu0
        %767 = vdwg.mxu0
        %v768 = vld [vmem:[%s5] sm:$0xff]
        %v769 = vld [vmem:[%s5 + $0x8] sm:$0xff]
        %v770 = vld [vmem:[%s5 + $0x10] sm:$0xff]
        %v771 = vld [vmem:[%s5 + $0x18] sm:$0xff]
        %v772 = vld [vmem:[#allocation10] sm:$0x1]
        %v774 = vlaneseq
        %v775 = vshrl.u32 %v774, 7
        %v776 = vsub.s32 0, %v775
        %v777 = vrot.slane %v772, %v776
        %v780 = vsel %vm694, %v681, 0
        %782 = vmatprep.subr.mxu0 0.0
        %783 = vmatpush1.msra.mxu0 0.0
        %784 = vmatprep.subr.mxu0 0.0
        %785 = vmatpush1.msra.mxu0 0.0
        %786 = vmatprep.subr.mxu0 0.0
        %787 = vmatpush1.msra.mxu0 0.0
        %788 = vmatprep.subr.mxu0 0.0
        %789 = vmatpush1.msra.mxu0 0.0
        %790 = vmatprep.subr.mxu0 0.0
        %791 = vmatpush1.msra.mxu0 0.0
        %792 = vmatprep.subr.mxu0 0.0
        %793 = vmatpush1.msra.mxu0 0.0
        %794 = vmatprep.subr.mxu0 0.0
        %795 = vmatpush1.msra.mxu0 0.0
        %796 = vmatprep.subr.mxu0 0.0
        %797 = vmatpush1.msra.mxu0 0.0
        %798 = vmatprep.subr.mxu0 0.0
        %799 = vmatpush1.msra.mxu0 0.0
        %800 = vmatprep.subr.mxu0 0.0
        %801 = vmatpush1.msra.mxu0 0.0
        %802 = vmatprep.subr.mxu0 0.0
        %803 = vmatpush1.msra.mxu0 0.0
        %804 = vmatprep.subr.mxu0 0.0
        %805 = vmatpush1.msra.mxu0 0.0
        %806 = vmatprep.subr.mxu0 0.0
        %807 = vmatpush1.msra.mxu0 %v771
        %808 = vmatprep.subr.mxu0 0.0
        %809 = vmatpush1.msra.mxu0 %v770
        %810 = vmatprep.subr.mxu0 0.0
        %811 = vmatpush1.msra.mxu0 %v769
        %812 = vmatprep.subr.mxu0 0.0
        %813 = vmatpush1.msra.mxu0 %v768
        %814 = vmatprep.subr.mxu0 0.0
        %815 = vmatpush2.msra.mxu0 0.0
        %816 = vmatprep.subr.mxu0 0.0
        %817 = vmatpush2.msra.mxu0 0.0
        %818 = vmatprep.subr.mxu0 0.0
        %819 = vmatpush2.msra.mxu0 0.0
        %820 = vmatprep.subr.mxu0 0.0
        %821 = vmatpush2.msra.mxu0 0.0
        %822 = vmatprep.subr.mxu0 0.0
        %823 = vmatpush2.msra.mxu0 0.0
        %824 = vmatprep.subr.mxu0 0.0
        %825 = vmatpush2.msra.mxu0 0.0
        %826 = vmatprep.subr.mxu0 0.0
        %827 = vmatpush2.msra.mxu0 0.0
        %828 = vmatprep.subr.mxu0 0.0
        %829 = vmatpush2.msra.mxu0 0.0
        %830 = vmatprep.subr.mxu0 0.0
        %831 = vmatpush2.msra.mxu0 0.0
        %832 = vmatprep.subr.mxu0 0.0
        %833 = vmatpush2.msra.mxu0 0.0
        %834 = vmatprep.subr.mxu0 0.0
        %835 = vmatpush2.msra.mxu0 0.0
        %836 = vmatprep.subr.mxu0 0.0
        %837 = vmatpush2.msra.mxu0 0.0
        %838 = vmatprep.subr.mxu0 0.0
        %839 = vmatpush2.msra.mxu0 0.0
        %840 = vmatprep.subr.mxu0 0.0
        %841 = vmatpush2.msra.mxu0 0.0
        %842 = vmatprep.subr.mxu0 0.0
        %843 = vmatpush2.msra.mxu0 0.0
        %844 = vmatprep.subr.mxu0 0.0
        %845 = vmatpush2.msra.mxu0 0.0
        %846 = vmatprep.mubr.f32.mxu0 0.0
        %847 = vmatmul.mubr.f32.gmra.mxu0 %v780
        %v848 = vpop.f32.mrf.mxu0
        %v849 = vadd.f32 %v777, %v848
        %v850 = vpop.f32.mrf.mxu0
        %851 = vdwg.mxu0
        %v852 = vld [vmem:[%s7] sm:$0xff]
        %v853 = vld [vmem:[%s7 + $0x8] sm:$0xff]
        %v854 = vld [vmem:[%s7 + $0x10] sm:$0xff]
        %v855 = vld [vmem:[%s7 + $0x18] sm:$0xff]
        %v856 = vld [vmem:[#allocation11] sm:$0x1]
        %v858 = vlaneseq
        %v859 = vshrl.u32 %v858, 7
        %v860 = vsub.s32 0, %v859
        %v861 = vrot.slane %v856, %v860
        %863 = vmatprep.subr.mxu0 0.0
        %864 = vmatpush1.msra.mxu0 0.0
        %865 = vmatprep.subr.mxu0 0.0
        %866 = vmatpush1.msra.mxu0 0.0
        %867 = vmatprep.subr.mxu0 0.0
        %868 = vmatpush1.msra.mxu0 0.0
        %869 = vmatprep.subr.mxu0 0.0
        %870 = vmatpush1.msra.mxu0 0.0
        %871 = vmatprep.subr.mxu0 0.0
        %872 = vmatpush1.msra.mxu0 0.0
        %873 = vmatprep.subr.mxu0 0.0
        %874 = vmatpush1.msra.mxu0 0.0
        %875 = vmatprep.subr.mxu0 0.0
        %876 = vmatpush1.msra.mxu0 0.0
        %877 = vmatprep.subr.mxu0 0.0
        %878 = vmatpush1.msra.mxu0 0.0
        %879 = vmatprep.subr.mxu0 0.0
        %880 = vmatpush1.msra.mxu0 0.0
        %881 = vmatprep.subr.mxu0 0.0
        %882 = vmatpush1.msra.mxu0 0.0
        %883 = vmatprep.subr.mxu0 0.0
        %884 = vmatpush1.msra.mxu0 0.0
        %885 = vmatprep.subr.mxu0 0.0
        %886 = vmatpush1.msra.mxu0 0.0
        %887 = vmatprep.subr.mxu0 0.0
        %888 = vmatpush1.msra.mxu0 %v855
        %889 = vmatprep.subr.mxu0 0.0
        %890 = vmatpush1.msra.mxu0 %v854
        %891 = vmatprep.subr.mxu0 0.0
        %892 = vmatpush1.msra.mxu0 %v853
        %893 = vmatprep.subr.mxu0 0.0
        %894 = vmatpush1.msra.mxu0 %v852
        %895 = vmatprep.subr.mxu0 0.0
        %896 = vmatpush2.msra.mxu0 0.0
        %897 = vmatprep.subr.mxu0 0.0
        %898 = vmatpush2.msra.mxu0 0.0
        %899 = vmatprep.subr.mxu0 0.0
        %900 = vmatpush2.msra.mxu0 0.0
        %901 = vmatprep.subr.mxu0 0.0
        %902 = vmatpush2.msra.mxu0 0.0
        %903 = vmatprep.subr.mxu0 0.0
        %904 = vmatpush2.msra.mxu0 0.0
        %905 = vmatprep.subr.mxu0 0.0
        %906 = vmatpush2.msra.mxu0 0.0
        %907 = vmatprep.subr.mxu0 0.0
        %908 = vmatpush2.msra.mxu0 0.0
        %909 = vmatprep.subr.mxu0 0.0
        %910 = vmatpush2.msra.mxu0 0.0
        %911 = vmatprep.subr.mxu0 0.0
        %912 = vmatpush2.msra.mxu0 0.0
        %913 = vmatprep.subr.mxu0 0.0
        %914 = vmatpush2.msra.mxu0 0.0
        %915 = vmatprep.subr.mxu0 0.0
        %916 = vmatpush2.msra.mxu0 0.0
        %917 = vmatprep.subr.mxu0 0.0
        %918 = vmatpush2.msra.mxu0 0.0
        %919 = vmatprep.subr.mxu0 0.0
        %920 = vmatpush2.msra.mxu0 0.0
        %921 = vmatprep.subr.mxu0 0.0
        %922 = vmatpush2.msra.mxu0 0.0
        %923 = vmatprep.subr.mxu0 0.0
        %924 = vmatpush2.msra.mxu0 0.0
        %925 = vmatprep.subr.mxu0 0.0
        %926 = vmatpush2.msra.mxu0 0.0
        %927 = vmatprep.mubr.f32.mxu0 0.0
        %928 = vmatmul.mubr.f32.gmra.mxu0 %v780
        %v929 = vpop.f32.mrf.mxu0
        %v930 = vadd.f32 %v861, %v929
        %v931 = vpop.f32.mrf.mxu0
        %932 = vdwg.mxu0
        %934 = vrot.lane.b32.xlu0 %v765, 126
        %v935 = vpop.permute.xlu0 %934
        %936 = vrot.lane.b32.xlu0 %v765, 124
        %v937 = vpop.permute.xlu0 %936
        %938 = vrot.lane.b32.xlu0 %v765, 122
        %v939 = vpop.permute.xlu0 %938
        %941 = vrot.lane.b32.xlu0 %v849, 126
        %v942 = vpop.permute.xlu0 %941
        %943 = vrot.lane.b32.xlu0 %v849, 124
        %v944 = vpop.permute.xlu0 %943
        %945 = vrot.lane.b32.xlu0 %v849, 122
        %v946 = vpop.permute.xlu0 %945
        %948 = vrot.lane.b32.xlu0 %v930, 120
        %v949 = vpop.permute.xlu0 %948
        %951 = vrot.lane.b32.xlu0 %v930, 112
        %v952 = vpop.permute.xlu0 %951
        %954 = vrot.lane.b32.xlu0 %v930, 104
        %v955 = vpop.permute.xlu0 %954
        %vm957 = vcmask 15360
        %v958 = vsel %vm957, %v765, 0
        %v960 = vsel %vm957, %v849, 0
        %962 = vmatprep.subr.mxu0 0.0
        %963 = vmatpush1.xpose.msra.mxu0 0.0
        %964 = vmatprep.subr.mxu0 0.0
        %965 = vmatpush1.xpose.msra.mxu0 0.0
        %966 = vmatprep.subr.mxu0 0.0
        %967 = vmatpush1.xpose.msra.mxu0 0.0
        %968 = vmatprep.subr.mxu0 0.0
        %969 = vmatpush1.xpose.msra.mxu0 0.0
        %970 = vmatprep.subr.mxu0 0.0
        %971 = vmatpush1.xpose.msra.mxu0 0.0
        %972 = vmatprep.subr.mxu0 0.0
        %973 = vmatpush1.xpose.msra.mxu0 0.0
        %974 = vmatprep.subr.mxu0 0.0
        %975 = vmatpush1.xpose.msra.mxu0 0.0
        %976 = vmatprep.subr.mxu0 0.0
        %977 = vmatpush1.xpose.msra.mxu0 0.0
        %978 = vmatprep.subr.mxu0 0.0
        %979 = vmatpush1.xpose.msra.mxu0 0.0
        %980 = vmatprep.subr.mxu0 0.0
        %981 = vmatpush1.xpose.msra.mxu0 0.0
        %982 = vmatprep.subr.mxu0 0.0
        %983 = vmatpush1.xpose.msra.mxu0 0.0
        %984 = vmatprep.subr.mxu0 0.0
        %985 = vmatpush1.xpose.msra.mxu0 0.0
        %986 = vmatprep.subr.mxu0 0.0
        %987 = vmatpush1.xpose.msra.mxu0 0.0
        %988 = vmatprep.subr.mxu0 0.0
        %989 = vmatpush1.xpose.msra.mxu0 0.0
        %990 = vmatprep.subr.mxu0 0.0
        %991 = vmatpush1.xpose.msra.mxu0 0.0
        %992 = vmatprep.subr.mxu0 0.0
        %993 = vmatpush1.xpose.msra.mxu0 %v960
        %994 = vmatprep.subr.mxu0 0.0
        %995 = vmatpush2.xpose.msra.mxu0 0.0
        %996 = vmatprep.subr.mxu0 0.0
        %997 = vmatpush2.xpose.msra.mxu0 0.0
        %998 = vmatprep.subr.mxu0 0.0
        %999 = vmatpush2.xpose.msra.mxu0 0.0
        %1000 = vmatprep.subr.mxu0 0.0
        %1001 = vmatpush2.xpose.msra.mxu0 0.0
        %1002 = vmatprep.subr.mxu0 0.0
        %1003 = vmatpush2.xpose.msra.mxu0 0.0
        %1004 = vmatprep.subr.mxu0 0.0
        %1005 = vmatpush2.xpose.msra.mxu0 0.0
        %1006 = vmatprep.subr.mxu0 0.0
        %1007 = vmatpush2.xpose.msra.mxu0 0.0
        %1008 = vmatprep.subr.mxu0 0.0
        %1009 = vmatpush2.xpose.msra.mxu0 0.0
        %1010 = vmatprep.subr.mxu0 0.0
        %1011 = vmatpush2.xpose.msra.mxu0 0.0
        %1012 = vmatprep.subr.mxu0 0.0
        %1013 = vmatpush2.xpose.msra.mxu0 0.0
        %1014 = vmatprep.subr.mxu0 0.0
        %1015 = vmatpush2.xpose.msra.mxu0 0.0
        %1016 = vmatprep.subr.mxu0 0.0
        %1017 = vmatpush2.xpose.msra.mxu0 0.0
        %1018 = vmatprep.subr.mxu0 0.0
        %1019 = vmatpush2.xpose.msra.mxu0 0.0
        %1020 = vmatprep.subr.mxu0 0.0
        %1021 = vmatpush2.xpose.msra.mxu0 0.0
        %1022 = vmatprep.subr.mxu0 0.0
        %1023 = vmatpush2.xpose.msra.mxu0 0.0
        %1024 = vmatprep.subr.mxu0 0.0
        %1025 = vmatpush2.xpose.msra.mxu0 0.0
        %1026 = vmatprep.mubr.f32.mxu0 0.0
        %1027 = vmatmul.mubr.f32.gmra.mxu0 %v958
        %v1028 = vpop.f32.mrf.mxu0
        %v1029 = vadd.f32 %v682, %v1028
        %v1030 = vpop.f32.mrf.mxu0
        %1031 = vdwg.mxu0
        %v1032 = vsel %vm957, %v935, 0
        %v1034 = vsel %vm957, %v942, 0
        %1036 = vmatprep.subr.mxu0 0.0
        %1037 = vmatpush1.xpose.msra.mxu0 0.0
        %1038 = vmatprep.subr.mxu0 0.0
        %1039 = vmatpush1.xpose.msra.mxu0 0.0
        %1040 = vmatprep.subr.mxu0 0.0
        %1041 = vmatpush1.xpose.msra.mxu0 0.0
        %1042 = vmatprep.subr.mxu0 0.0
        %1043 = vmatpush1.xpose.msra.mxu0 0.0
        %1044 = vmatprep.subr.mxu0 0.0
        %1045 = vmatpush1.xpose.msra.mxu0 0.0
        %1046 = vmatprep.subr.mxu0 0.0
        %1047 = vmatpush1.xpose.msra.mxu0 0.0
        %1048 = vmatprep.subr.mxu0 0.0
        %1049 = vmatpush1.xpose.msra.mxu0 0.0
        %1050 = vmatprep.subr.mxu0 0.0
        %1051 = vmatpush1.xpose.msra.mxu0 0.0
        %1052 = vmatprep.subr.mxu0 0.0
        %1053 = vmatpush1.xpose.msra.mxu0 0.0
        %1054 = vmatprep.subr.mxu0 0.0
        %1055 = vmatpush1.xpose.msra.mxu0 0.0
        %1056 = vmatprep.subr.mxu0 0.0
        %1057 = vmatpush1.xpose.msra.mxu0 0.0
        %1058 = vmatprep.subr.mxu0 0.0
        %1059 = vmatpush1.xpose.msra.mxu0 0.0
        %1060 = vmatprep.subr.mxu0 0.0
        %1061 = vmatpush1.xpose.msra.mxu0 0.0
        %1062 = vmatprep.subr.mxu0 0.0
        %1063 = vmatpush1.xpose.msra.mxu0 0.0
        %1064 = vmatprep.subr.mxu0 0.0
        %1065 = vmatpush1.xpose.msra.mxu0 0.0
        %1066 = vmatprep.subr.mxu0 0.0
        %1067 = vmatpush1.xpose.msra.mxu0 %v1034
        %1068 = vmatprep.subr.mxu0 0.0
        %1069 = vmatpush2.xpose.msra.mxu0 0.0
        %1070 = vmatprep.subr.mxu0 0.0
        %1071 = vmatpush2.xpose.msra.mxu0 0.0
        %1072 = vmatprep.subr.mxu0 0.0
        %1073 = vmatpush2.xpose.msra.mxu0 0.0
        %1074 = vmatprep.subr.mxu0 0.0
        %1075 = vmatpush2.xpose.msra.mxu0 0.0
        %1076 = vmatprep.subr.mxu0 0.0
        %1077 = vmatpush2.xpose.msra.mxu0 0.0
        %1078 = vmatprep.subr.mxu0 0.0
        %1079 = vmatpush2.xpose.msra.mxu0 0.0
        %1080 = vmatprep.subr.mxu0 0.0
        %1081 = vmatpush2.xpose.msra.mxu0 0.0
        %1082 = vmatprep.subr.mxu0 0.0
        %1083 = vmatpush2.xpose.msra.mxu0 0.0
        %1084 = vmatprep.subr.mxu0 0.0
        %1085 = vmatpush2.xpose.msra.mxu0 0.0
        %1086 = vmatprep.subr.mxu0 0.0
        %1087 = vmatpush2.xpose.msra.mxu0 0.0
        %1088 = vmatprep.subr.mxu0 0.0
        %1089 = vmatpush2.xpose.msra.mxu0 0.0
        %1090 = vmatprep.subr.mxu0 0.0
        %1091 = vmatpush2.xpose.msra.mxu0 0.0
        %1092 = vmatprep.subr.mxu0 0.0
        %1093 = vmatpush2.xpose.msra.mxu0 0.0
        %1094 = vmatprep.subr.mxu0 0.0
        %1095 = vmatpush2.xpose.msra.mxu0 0.0
        %1096 = vmatprep.subr.mxu0 0.0
        %1097 = vmatpush2.xpose.msra.mxu0 0.0
        %1098 = vmatprep.subr.mxu0 0.0
        %1099 = vmatpush2.xpose.msra.mxu0 0.0
        %1100 = vmatprep.mubr.f32.mxu0 0.0
        %1101 = vmatmul.mubr.f32.gmra.mxu0 %v1032
        %v1102 = vpop.f32.mrf.mxu0
        %v1103 = vadd.f32 %v682, %v1102
        %v1104 = vpop.f32.mrf.mxu0
        %1105 = vdwg.mxu0
        %v1106 = vsel %vm957, %v937, 0
        %v1108 = vsel %vm957, %v944, 0
        %1110 = vmatprep.subr.mxu0 0.0
        %1111 = vmatpush1.xpose.msra.mxu0 0.0
        %1112 = vmatprep.subr.mxu0 0.0
        %1113 = vmatpush1.xpose.msra.mxu0 0.0
        %1114 = vmatprep.subr.mxu0 0.0
        %1115 = vmatpush1.xpose.msra.mxu0 0.0
        %1116 = vmatprep.subr.mxu0 0.0
        %1117 = vmatpush1.xpose.msra.mxu0 0.0
        %1118 = vmatprep.subr.mxu0 0.0
        %1119 = vmatpush1.xpose.msra.mxu0 0.0
        %1120 = vmatprep.subr.mxu0 0.0
        %1121 = vmatpush1.xpose.msra.mxu0 0.0
        %1122 = vmatprep.subr.mxu0 0.0
        %1123 = vmatpush1.xpose.msra.mxu0 0.0
        %1124 = vmatprep.subr.mxu0 0.0
        %1125 = vmatpush1.xpose.msra.mxu0 0.0
        %1126 = vmatprep.subr.mxu0 0.0
        %1127 = vmatpush1.xpose.msra.mxu0 0.0
        %1128 = vmatprep.subr.mxu0 0.0
        %1129 = vmatpush1.xpose.msra.mxu0 0.0
        %1130 = vmatprep.subr.mxu0 0.0
        %1131 = vmatpush1.xpose.msra.mxu0 0.0
        %1132 = vmatprep.subr.mxu0 0.0
        %1133 = vmatpush1.xpose.msra.mxu0 0.0
        %1134 = vmatprep.subr.mxu0 0.0
        %1135 = vmatpush1.xpose.msra.mxu0 0.0
        %1136 = vmatprep.subr.mxu0 0.0
        %1137 = vmatpush1.xpose.msra.mxu0 0.0
        %1138 = vmatprep.subr.mxu0 0.0
        %1139 = vmatpush1.xpose.msra.mxu0 0.0
        %1140 = vmatprep.subr.mxu0 0.0
        %1141 = vmatpush1.xpose.msra.mxu0 %v1108
        %1142 = vmatprep.subr.mxu0 0.0
        %1143 = vmatpush2.xpose.msra.mxu0 0.0
        %1144 = vmatprep.subr.mxu0 0.0
        %1145 = vmatpush2.xpose.msra.mxu0 0.0
        %1146 = vmatprep.subr.mxu0 0.0
        %1147 = vmatpush2.xpose.msra.mxu0 0.0
        %1148 = vmatprep.subr.mxu0 0.0
        %1149 = vmatpush2.xpose.msra.mxu0 0.0
        %1150 = vmatprep.subr.mxu0 0.0
        %1151 = vmatpush2.xpose.msra.mxu0 0.0
        %1152 = vmatprep.subr.mxu0 0.0
        %1153 = vmatpush2.xpose.msra.mxu0 0.0
        %1154 = vmatprep.subr.mxu0 0.0
        %1155 = vmatpush2.xpose.msra.mxu0 0.0
        %1156 = vmatprep.subr.mxu0 0.0
        %1157 = vmatpush2.xpose.msra.mxu0 0.0
        %1158 = vmatprep.subr.mxu0 0.0
        %1159 = vmatpush2.xpose.msra.mxu0 0.0
        %1160 = vmatprep.subr.mxu0 0.0
        %1161 = vmatpush2.xpose.msra.mxu0 0.0
        %1162 = vmatprep.subr.mxu0 0.0
        %1163 = vmatpush2.xpose.msra.mxu0 0.0
        %1164 = vmatprep.subr.mxu0 0.0
        %1165 = vmatpush2.xpose.msra.mxu0 0.0
        %1166 = vmatprep.subr.mxu0 0.0
        %1167 = vmatpush2.xpose.msra.mxu0 0.0
        %1168 = vmatprep.subr.mxu0 0.0
        %1169 = vmatpush2.xpose.msra.mxu0 0.0
        %1170 = vmatprep.subr.mxu0 0.0
        %1171 = vmatpush2.xpose.msra.mxu0 0.0
        %1172 = vmatprep.subr.mxu0 0.0
        %1173 = vmatpush2.xpose.msra.mxu0 0.0
        %1174 = vmatprep.mubr.f32.mxu0 0.0
        %1175 = vmatmul.mubr.f32.gmra.mxu0 %v1106
        %v1176 = vpop.f32.mrf.mxu0
        %v1177 = vadd.f32 %v682, %v1176
        %v1178 = vpop.f32.mrf.mxu0
        %1179 = vdwg.mxu0
        %v1180 = vsel %vm957, %v939, 0
        %v1182 = vsel %vm957, %v946, 0
        %1184 = vmatprep.subr.mxu0 0.0
        %1185 = vmatpush1.xpose.msra.mxu0 0.0
        %1186 = vmatprep.subr.mxu0 0.0
        %1187 = vmatpush1.xpose.msra.mxu0 0.0
        %1188 = vmatprep.subr.mxu0 0.0
        %1189 = vmatpush1.xpose.msra.mxu0 0.0
        %1190 = vmatprep.subr.mxu0 0.0
        %1191 = vmatpush1.xpose.msra.mxu0 0.0
        %1192 = vmatprep.subr.mxu0 0.0
        %1193 = vmatpush1.xpose.msra.mxu0 0.0
        %1194 = vmatprep.subr.mxu0 0.0
        %1195 = vmatpush1.xpose.msra.mxu0 0.0
        %1196 = vmatprep.subr.mxu0 0.0
        %1197 = vmatpush1.xpose.msra.mxu0 0.0
        %1198 = vmatprep.subr.mxu0 0.0
        %1199 = vmatpush1.xpose.msra.mxu0 0.0
        %1200 = vmatprep.subr.mxu0 0.0
        %1201 = vmatpush1.xpose.msra.mxu0 0.0
        %1202 = vmatprep.subr.mxu0 0.0
        %1203 = vmatpush1.xpose.msra.mxu0 0.0
        %1204 = vmatprep.subr.mxu0 0.0
        %1205 = vmatpush1.xpose.msra.mxu0 0.0
        %1206 = vmatprep.subr.mxu0 0.0
        %1207 = vmatpush1.xpose.msra.mxu0 0.0
        %1208 = vmatprep.subr.mxu0 0.0
        %1209 = vmatpush1.xpose.msra.mxu0 0.0
        %1210 = vmatprep.subr.mxu0 0.0
        %1211 = vmatpush1.xpose.msra.mxu0 0.0
        %1212 = vmatprep.subr.mxu0 0.0
        %1213 = vmatpush1.xpose.msra.mxu0 0.0
        %1214 = vmatprep.subr.mxu0 0.0
        %1215 = vmatpush1.xpose.msra.mxu0 %v1182
        %1216 = vmatprep.subr.mxu0 0.0
        %1217 = vmatpush2.xpose.msra.mxu0 0.0
        %1218 = vmatprep.subr.mxu0 0.0
        %1219 = vmatpush2.xpose.msra.mxu0 0.0
        %1220 = vmatprep.subr.mxu0 0.0
        %1221 = vmatpush2.xpose.msra.mxu0 0.0
        %1222 = vmatprep.subr.mxu0 0.0
        %1223 = vmatpush2.xpose.msra.mxu0 0.0
        %1224 = vmatprep.subr.mxu0 0.0
        %1225 = vmatpush2.xpose.msra.mxu0 0.0
        %1226 = vmatprep.subr.mxu0 0.0
        %1227 = vmatpush2.xpose.msra.mxu0 0.0
        %1228 = vmatprep.subr.mxu0 0.0
        %1229 = vmatpush2.xpose.msra.mxu0 0.0
        %1230 = vmatprep.subr.mxu0 0.0
        %1231 = vmatpush2.xpose.msra.mxu0 0.0
        %1232 = vmatprep.subr.mxu0 0.0
        %1233 = vmatpush2.xpose.msra.mxu0 0.0
        %1234 = vmatprep.subr.mxu0 0.0
        %1235 = vmatpush2.xpose.msra.mxu0 0.0
        %1236 = vmatprep.subr.mxu0 0.0
        %1237 = vmatpush2.xpose.msra.mxu0 0.0
        %1238 = vmatprep.subr.mxu0 0.0
        %1239 = vmatpush2.xpose.msra.mxu0 0.0
        %1240 = vmatprep.subr.mxu0 0.0
        %1241 = vmatpush2.xpose.msra.mxu0 0.0
        %1242 = vmatprep.subr.mxu0 0.0
        %1243 = vmatpush2.xpose.msra.mxu0 0.0
        %1244 = vmatprep.subr.mxu0 0.0
        %1245 = vmatpush2.xpose.msra.mxu0 0.0
        %1246 = vmatprep.subr.mxu0 0.0
        %1247 = vmatpush2.xpose.msra.mxu0 0.0
        %1248 = vmatprep.mubr.f32.mxu0 0.0
        %1249 = vmatmul.mubr.f32.gmra.mxu0 %v1180
        %v1250 = vpop.f32.mrf.mxu0
        %v1251 = vadd.f32 %v682, %v1250
        %v1252 = vpop.f32.mrf.mxu0
        %1253 = vdwg.mxu0
        %vm1254 = vcmask 64512
        %v1255 = vsel %vm1254, %v1029, -inf
        %1256 = vmax.xlane.f32.xlu0 %v1255
        %v1257 = vpop.xlane.xlu0 %1256
        %v1258 = vsel %vm1254, %v1103, -inf
        %1259 = vmax.xlane.f32.xlu0 %v1258
        %v1260 = vpop.xlane.xlu0 %1259
        %v1261 = vsel %vm1254, %v1177, -inf
        %1262 = vmax.xlane.f32.xlu0 %v1261
        %v1263 = vpop.xlane.xlu0 %1262
        %v1264 = vsel %vm1254, %v1251, -inf
        %1265 = vmax.xlane.f32.xlu0 %v1264
        %v1266 = vpop.xlane.xlu0 %1265
        %v1267 = vsub.f32 %v1029, %v1257
        %v1268 = vsub.f32 %v1103, %v1260
        %v1269 = vsub.f32 %v1177, %v1263
        %v1270 = vsub.f32 %v1251, %v1266
        %v1271 = vmul.f32 %v1267, 1.442695
        %v1272 = vpow.pop %v1271
        %v1273 = vmul.f32 %v1268, 1.442695
        %v1274 = vpow.pop %v1273
        %v1275 = vmul.f32 %v1269, 1.442695
        %v1276 = vpow.pop %v1275
        %v1277 = vmul.f32 %v1270, 1.442695
        %v1278 = vpow.pop %v1277
        %v1279 = vsel %vm1254, %v1272, 0.0
        %1280 = vadd.xlane.f32.xlu0 %v1279
        %v1281 = vpop.xlane.xlu0 %1280
        %v1282 = vsel %vm1254, %v1274, 0.0
        %1283 = vadd.xlane.f32.xlu0 %v1282
        %v1284 = vpop.xlane.xlu0 %1283
        %v1285 = vsel %vm1254, %v1276, 0.0
        %1286 = vadd.xlane.f32.xlu0 %v1285
        %v1287 = vpop.xlane.xlu0 %1286
        %v1288 = vsel %vm1254, %v1278, 0.0
        %1289 = vadd.xlane.f32.xlu0 %v1288
        %v1290 = vpop.xlane.xlu0 %1289
        %v1291 = vrcp.pop %v1281
        %v1292 = vrcp.pop %v1284
        %v1293 = vrcp.pop %v1287
        %v1294 = vrcp.pop %v1290
        %v1295 = vmul.f32 %v1272, %v1291
        %v1296 = vmul.f32 %v1274, %v1292
        %v1297 = vmul.f32 %v1276, %v1293
        %v1298 = vmul.f32 %v1278, %v1294
        %v1300 = vsel %vm1254, %v1295, 0
        %1302 = vmatprep.subr.mxu0 0.0
        %1303 = vmatpush1.msra.mxu0 0.0
        %1304 = vmatprep.subr.mxu0 0.0
        %1305 = vmatpush1.msra.mxu0 0.0
        %1306 = vmatprep.subr.mxu0 0.0
        %1307 = vmatpush1.msra.mxu0 0.0
        %1308 = vmatprep.subr.mxu0 0.0
        %1309 = vmatpush1.msra.mxu0 0.0
        %1310 = vmatprep.subr.mxu0 0.0
        %1311 = vmatpush1.msra.mxu0 0.0
        %1312 = vmatprep.subr.mxu0 0.0
        %1313 = vmatpush1.msra.mxu0 0.0
        %1314 = vmatprep.subr.mxu0 0.0
        %1315 = vmatpush1.msra.mxu0 0.0
        %1316 = vmatprep.subr.mxu0 0.0
        %1317 = vmatpush1.msra.mxu0 0.0
        %1318 = vmatprep.subr.mxu0 0.0
        %1319 = vmatpush1.msra.mxu0 0.0
        %1320 = vmatprep.subr.mxu0 0.0
        %1321 = vmatpush1.msra.mxu0 0.0
        %1322 = vmatprep.subr.mxu0 0.0
        %1323 = vmatpush1.msra.mxu0 0.0
        %1324 = vmatprep.subr.mxu0 0.0
        %1325 = vmatpush1.msra.mxu0 0.0
        %1326 = vmatprep.subr.mxu0 0.0
        %1327 = vmatpush1.msra.mxu0 0.0
        %1328 = vmatprep.subr.mxu0 0.0
        %1329 = vmatpush1.msra.mxu0 0.0
        %1330 = vmatprep.subr.mxu0 0.0
        %1331 = vmatpush1.msra.mxu0 0.0
        %1332 = vmatprep.subr.mxu0 0.0
        %1333 = vmatpush1.msra.mxu0 %v930
        %1334 = vmatprep.subr.mxu0 0.0
        %1335 = vmatpush2.msra.mxu0 0.0
        %1336 = vmatprep.subr.mxu0 0.0
        %1337 = vmatpush2.msra.mxu0 0.0
        %1338 = vmatprep.subr.mxu0 0.0
        %1339 = vmatpush2.msra.mxu0 0.0
        %1340 = vmatprep.subr.mxu0 0.0
        %1341 = vmatpush2.msra.mxu0 0.0
        %1342 = vmatprep.subr.mxu0 0.0
        %1343 = vmatpush2.msra.mxu0 0.0
        %1344 = vmatprep.subr.mxu0 0.0
        %1345 = vmatpush2.msra.mxu0 0.0
        %1346 = vmatprep.subr.mxu0 0.0
        %1347 = vmatpush2.msra.mxu0 0.0
        %1348 = vmatprep.subr.mxu0 0.0
        %1349 = vmatpush2.msra.mxu0 0.0
        %1350 = vmatprep.subr.mxu0 0.0
        %1351 = vmatpush2.msra.mxu0 0.0
        %1352 = vmatprep.subr.mxu0 0.0
        %1353 = vmatpush2.msra.mxu0 0.0
        %1354 = vmatprep.subr.mxu0 0.0
        %1355 = vmatpush2.msra.mxu0 0.0
        %1356 = vmatprep.subr.mxu0 0.0
        %1357 = vmatpush2.msra.mxu0 0.0
        %1358 = vmatprep.subr.mxu0 0.0
        %1359 = vmatpush2.msra.mxu0 0.0
        %1360 = vmatprep.subr.mxu0 0.0
        %1361 = vmatpush2.msra.mxu0 0.0
        %1362 = vmatprep.subr.mxu0 0.0
        %1363 = vmatpush2.msra.mxu0 0.0
        %1364 = vmatprep.subr.mxu0 0.0
        %1365 = vmatpush2.msra.mxu0 0.0
        %1366 = vmatprep.mubr.f32.mxu0 0.0
        %1367 = vmatmul.mubr.f32.gmra.mxu0 %v1300
        %v1368 = vpop.f32.mrf.mxu0
        %v1369 = vadd.f32 0.0, %v1368
        %v1370 = vpop.f32.mrf.mxu0
        %1371 = vdwg.mxu0
        %v1373 = vsel %vm1254, %v1296, 0
        %1375 = vmatprep.subr.mxu0 0.0
        %1376 = vmatpush1.msra.mxu0 0.0
        %1377 = vmatprep.subr.mxu0 0.0
        %1378 = vmatpush1.msra.mxu0 0.0
        %1379 = vmatprep.subr.mxu0 0.0
        %1380 = vmatpush1.msra.mxu0 0.0
        %1381 = vmatprep.subr.mxu0 0.0
        %1382 = vmatpush1.msra.mxu0 0.0
        %1383 = vmatprep.subr.mxu0 0.0
        %1384 = vmatpush1.msra.mxu0 0.0
        %1385 = vmatprep.subr.mxu0 0.0
        %1386 = vmatpush1.msra.mxu0 0.0
        %1387 = vmatprep.subr.mxu0 0.0
        %1388 = vmatpush1.msra.mxu0 0.0
        %1389 = vmatprep.subr.mxu0 0.0
        %1390 = vmatpush1.msra.mxu0 0.0
        %1391 = vmatprep.subr.mxu0 0.0
        %1392 = vmatpush1.msra.mxu0 0.0
        %1393 = vmatprep.subr.mxu0 0.0
        %1394 = vmatpush1.msra.mxu0 0.0
        %1395 = vmatprep.subr.mxu0 0.0
        %1396 = vmatpush1.msra.mxu0 0.0
        %1397 = vmatprep.subr.mxu0 0.0
        %1398 = vmatpush1.msra.mxu0 0.0
        %1399 = vmatprep.subr.mxu0 0.0
        %1400 = vmatpush1.msra.mxu0 0.0
        %1401 = vmatprep.subr.mxu0 0.0
        %1402 = vmatpush1.msra.mxu0 0.0
        %1403 = vmatprep.subr.mxu0 0.0
        %1404 = vmatpush1.msra.mxu0 0.0
        %1405 = vmatprep.subr.mxu0 0.0
        %1406 = vmatpush1.msra.mxu0 %v949
        %1407 = vmatprep.subr.mxu0 0.0
        %1408 = vmatpush2.msra.mxu0 0.0
        %1409 = vmatprep.subr.mxu0 0.0
        %1410 = vmatpush2.msra.mxu0 0.0
        %1411 = vmatprep.subr.mxu0 0.0
        %1412 = vmatpush2.msra.mxu0 0.0
        %1413 = vmatprep.subr.mxu0 0.0
        %1414 = vmatpush2.msra.mxu0 0.0
        %1415 = vmatprep.subr.mxu0 0.0
        %1416 = vmatpush2.msra.mxu0 0.0
        %1417 = vmatprep.subr.mxu0 0.0
        %1418 = vmatpush2.msra.mxu0 0.0
        %1419 = vmatprep.subr.mxu0 0.0
        %1420 = vmatpush2.msra.mxu0 0.0
        %1421 = vmatprep.subr.mxu0 0.0
        %1422 = vmatpush2.msra.mxu0 0.0
        %1423 = vmatprep.subr.mxu0 0.0
        %1424 = vmatpush2.msra.mxu0 0.0
        %1425 = vmatprep.subr.mxu0 0.0
        %1426 = vmatpush2.msra.mxu0 0.0
        %1427 = vmatprep.subr.mxu0 0.0
        %1428 = vmatpush2.msra.mxu0 0.0
        %1429 = vmatprep.subr.mxu0 0.0
        %1430 = vmatpush2.msra.mxu0 0.0
        %1431 = vmatprep.subr.mxu0 0.0
        %1432 = vmatpush2.msra.mxu0 0.0
        %1433 = vmatprep.subr.mxu0 0.0
        %1434 = vmatpush2.msra.mxu0 0.0
        %1435 = vmatprep.subr.mxu0 0.0
        %1436 = vmatpush2.msra.mxu0 0.0
        %1437 = vmatprep.subr.mxu0 0.0
        %1438 = vmatpush2.msra.mxu0 0.0
        %1439 = vmatprep.mubr.f32.mxu0 0.0
        %1440 = vmatmul.mubr.f32.gmra.mxu0 %v1373
        %v1441 = vpop.f32.mrf.mxu0
        %v1442 = vadd.f32 0.0, %v1441
        %v1443 = vpop.f32.mrf.mxu0
        %1444 = vdwg.mxu0
        %v1446 = vsel %vm1254, %v1297, 0
        %1448 = vmatprep.subr.mxu0 0.0
        %1449 = vmatpush1.msra.mxu0 0.0
        %1450 = vmatprep.subr.mxu0 0.0
        %1451 = vmatpush1.msra.mxu0 0.0
        %1452 = vmatprep.subr.mxu0 0.0
        %1453 = vmatpush1.msra.mxu0 0.0
        %1454 = vmatprep.subr.mxu0 0.0
        %1455 = vmatpush1.msra.mxu0 0.0
        %1456 = vmatprep.subr.mxu0 0.0
        %1457 = vmatpush1.msra.mxu0 0.0
        %1458 = vmatprep.subr.mxu0 0.0
        %1459 = vmatpush1.msra.mxu0 0.0
        %1460 = vmatprep.subr.mxu0 0.0
        %1461 = vmatpush1.msra.mxu0 0.0
        %1462 = vmatprep.subr.mxu0 0.0
        %1463 = vmatpush1.msra.mxu0 0.0
        %1464 = vmatprep.subr.mxu0 0.0
        %1465 = vmatpush1.msra.mxu0 0.0
        %1466 = vmatprep.subr.mxu0 0.0
        %1467 = vmatpush1.msra.mxu0 0.0
        %1468 = vmatprep.subr.mxu0 0.0
        %1469 = vmatpush1.msra.mxu0 0.0
        %1470 = vmatprep.subr.mxu0 0.0
        %1471 = vmatpush1.msra.mxu0 0.0
        %1472 = vmatprep.subr.mxu0 0.0
        %1473 = vmatpush1.msra.mxu0 0.0
        %1474 = vmatprep.subr.mxu0 0.0
        %1475 = vmatpush1.msra.mxu0 0.0
        %1476 = vmatprep.subr.mxu0 0.0
        %1477 = vmatpush1.msra.mxu0 0.0
        %1478 = vmatprep.subr.mxu0 0.0
        %1479 = vmatpush1.msra.mxu0 %v952
        %1480 = vmatprep.subr.mxu0 0.0
        %1481 = vmatpush2.msra.mxu0 0.0
        %1482 = vmatprep.subr.mxu0 0.0
        %1483 = vmatpush2.msra.mxu0 0.0
        %1484 = vmatprep.subr.mxu0 0.0
        %1485 = vmatpush2.msra.mxu0 0.0
        %1486 = vmatprep.subr.mxu0 0.0
        %1487 = vmatpush2.msra.mxu0 0.0
        %1488 = vmatprep.subr.mxu0 0.0
        %1489 = vmatpush2.msra.mxu0 0.0
        %1490 = vmatprep.subr.mxu0 0.0
        %1491 = vmatpush2.msra.mxu0 0.0
        %1492 = vmatprep.subr.mxu0 0.0
        %1493 = vmatpush2.msra.mxu0 0.0
        %1494 = vmatprep.subr.mxu0 0.0
        %1495 = vmatpush2.msra.mxu0 0.0
        %1496 = vmatprep.subr.mxu0 0.0
        %1497 = vmatpush2.msra.mxu0 0.0
        %1498 = vmatprep.subr.mxu0 0.0
        %1499 = vmatpush2.msra.mxu0 0.0
        %1500 = vmatprep.subr.mxu0 0.0
        %1501 = vmatpush2.msra.mxu0 0.0
        %1502 = vmatprep.subr.mxu0 0.0
        %1503 = vmatpush2.msra.mxu0 0.0
        %1504 = vmatprep.subr.mxu0 0.0
        %1505 = vmatpush2.msra.mxu0 0.0
        %1506 = vmatprep.subr.mxu0 0.0
        %1507 = vmatpush2.msra.mxu0 0.0
        %1508 = vmatprep.subr.mxu0 0.0
        %1509 = vmatpush2.msra.mxu0 0.0
        %1510 = vmatprep.subr.mxu0 0.0
        %1511 = vmatpush2.msra.mxu0 0.0
        %1512 = vmatprep.mubr.f32.mxu0 0.0
        %1513 = vmatmul.mubr.f32.gmra.mxu0 %v1446
        %v1514 = vpop.f32.mrf.mxu0
        %v1515 = vadd.f32 0.0, %v1514
        %v1516 = vpop.f32.mrf.mxu0
        %1517 = vdwg.mxu0
        %v1519 = vsel %vm1254, %v1298, 0
        %1521 = vmatprep.subr.mxu0 0.0
        %1522 = vmatpush1.msra.mxu0 0.0
        %1523 = vmatprep.subr.mxu0 0.0
        %1524 = vmatpush1.msra.mxu0 0.0
        %1525 = vmatprep.subr.mxu0 0.0
        %1526 = vmatpush1.msra.mxu0 0.0
        %1527 = vmatprep.subr.mxu0 0.0
        %1528 = vmatpush1.msra.mxu0 0.0
        %1529 = vmatprep.subr.mxu0 0.0
        %1530 = vmatpush1.msra.mxu0 0.0
        %1531 = vmatprep.subr.mxu0 0.0
        %1532 = vmatpush1.msra.mxu0 0.0
        %1533 = vmatprep.subr.mxu0 0.0
        %1534 = vmatpush1.msra.mxu0 0.0
        %1535 = vmatprep.subr.mxu0 0.0
        %1536 = vmatpush1.msra.mxu0 0.0
        %1537 = vmatprep.subr.mxu0 0.0
        %1538 = vmatpush1.msra.mxu0 0.0
        %1539 = vmatprep.subr.mxu0 0.0
        %1540 = vmatpush1.msra.mxu0 0.0
        %1541 = vmatprep.subr.mxu0 0.0
        %1542 = vmatpush1.msra.mxu0 0.0
        %1543 = vmatprep.subr.mxu0 0.0
        %1544 = vmatpush1.msra.mxu0 0.0
        %1545 = vmatprep.subr.mxu0 0.0
        %1546 = vmatpush1.msra.mxu0 0.0
        %1547 = vmatprep.subr.mxu0 0.0
        %1548 = vmatpush1.msra.mxu0 0.0
        %1549 = vmatprep.subr.mxu0 0.0
        %1550 = vmatpush1.msra.mxu0 0.0
        %1551 = vmatprep.subr.mxu0 0.0
        %1552 = vmatpush1.msra.mxu0 %v955
        %1553 = vmatprep.subr.mxu0 0.0
        %1554 = vmatpush2.msra.mxu0 0.0
        %1555 = vmatprep.subr.mxu0 0.0
        %1556 = vmatpush2.msra.mxu0 0.0
        %1557 = vmatprep.subr.mxu0 0.0
        %1558 = vmatpush2.msra.mxu0 0.0
        %1559 = vmatprep.subr.mxu0 0.0
        %1560 = vmatpush2.msra.mxu0 0.0
        %1561 = vmatprep.subr.mxu0 0.0
        %1562 = vmatpush2.msra.mxu0 0.0
        %1563 = vmatprep.subr.mxu0 0.0
        %1564 = vmatpush2.msra.mxu0 0.0
        %1565 = vmatprep.subr.mxu0 0.0
        %1566 = vmatpush2.msra.mxu0 0.0
        %1567 = vmatprep.subr.mxu0 0.0
        %1568 = vmatpush2.msra.mxu0 0.0
        %1569 = vmatprep.subr.mxu0 0.0
        %1570 = vmatpush2.msra.mxu0 0.0
        %1571 = vmatprep.subr.mxu0 0.0
        %1572 = vmatpush2.msra.mxu0 0.0
        %1573 = vmatprep.subr.mxu0 0.0
        %1574 = vmatpush2.msra.mxu0 0.0
        %1575 = vmatprep.subr.mxu0 0.0
        %1576 = vmatpush2.msra.mxu0 0.0
        %1577 = vmatprep.subr.mxu0 0.0
        %1578 = vmatpush2.msra.mxu0 0.0
        %1579 = vmatprep.subr.mxu0 0.0
        %1580 = vmatpush2.msra.mxu0 0.0
        %1581 = vmatprep.subr.mxu0 0.0
        %1582 = vmatpush2.msra.mxu0 0.0
        %1583 = vmatprep.subr.mxu0 0.0
        %1584 = vmatpush2.msra.mxu0 0.0
        %1585 = vmatprep.mubr.f32.mxu0 0.0
        %1586 = vmatmul.mubr.f32.gmra.mxu0 %v1519
        %v1587 = vpop.f32.mrf.mxu0
        %v1588 = vadd.f32 0.0, %v1587
        %v1589 = vpop.f32.mrf.mxu0
        %1590 = vdwg.mxu0
        %1592 = vrot.lane.b32.xlu0 %v1442, 8
        %v1593 = vpop.permute.xlu0 %1592
        %1596 = vrot.lane.b32.xlu0 %v1515, 16
        %v1597 = vpop.permute.xlu0 %1596
        %1600 = vrot.lane.b32.xlu0 %v1588, 24
        %v1601 = vpop.permute.xlu0 %1600
        %v1603 = vsel %vm1254, %v1369, %v1593
        %vm1604 = vcmask 130048
        %v1605 = vsel %vm1604, %v1603, %v1597
        %vm1606 = vcmask 195584
        %v1607 = vsel %vm1606, %v1605, %v1601
        %v1608 = vld [vmem:[%s9] sm:$0xff]
        %v1609 = vld [vmem:[%s9 + $0x8] sm:$0xff]
        %v1610 = vld [vmem:[%s9 + $0x10] sm:$0xff]
        %v1611 = vld [vmem:[%s9 + $0x18] sm:$0xff]
        %v1612 = vld [vmem:[%s10] sm:$0x1]
        %v1614 = vlaneseq
        %v1615 = vshrl.u32 %v1614, 7
        %v1616 = vsub.s32 0, %v1615
        %v1617 = vrot.slane %v1612, %v1616
        %v1620 = vsel %vm694, %v1607, 0
        %1622 = vmatprep.subr.mxu0 0.0
        %1623 = vmatpush1.msra.mxu0 0.0
        %1624 = vmatprep.subr.mxu0 0.0
        %1625 = vmatpush1.msra.mxu0 0.0
        %1626 = vmatprep.subr.mxu0 0.0
        %1627 = vmatpush1.msra.mxu0 0.0
        %1628 = vmatprep.subr.mxu0 0.0
        %1629 = vmatpush1.msra.mxu0 0.0
        %1630 = vmatprep.subr.mxu0 0.0
        %1631 = vmatpush1.msra.mxu0 0.0
        %1632 = vmatprep.subr.mxu0 0.0
        %1633 = vmatpush1.msra.mxu0 0.0
        %1634 = vmatprep.subr.mxu0 0.0
        %1635 = vmatpush1.msra.mxu0 0.0
        %1636 = vmatprep.subr.mxu0 0.0
        %1637 = vmatpush1.msra.mxu0 0.0
        %1638 = vmatprep.subr.mxu0 0.0
        %1639 = vmatpush1.msra.mxu0 0.0
        %1640 = vmatprep.subr.mxu0 0.0
        %1641 = vmatpush1.msra.mxu0 0.0
        %1642 = vmatprep.subr.mxu0 0.0
        %1643 = vmatpush1.msra.mxu0 0.0
        %1644 = vmatprep.subr.mxu0 0.0
        %1645 = vmatpush1.msra.mxu0 0.0
        %1646 = vmatprep.subr.mxu0 0.0
        %1647 = vmatpush1.msra.mxu0 %v1611
        %1648 = vmatprep.subr.mxu0 0.0
        %1649 = vmatpush1.msra.mxu0 %v1610
        %1650 = vmatprep.subr.mxu0 0.0
        %1651 = vmatpush1.msra.mxu0 %v1609
        %1652 = vmatprep.subr.mxu0 0.0
        %1653 = vmatpush1.msra.mxu0 %v1608
        %1654 = vmatprep.subr.mxu0 0.0
        %1655 = vmatpush2.msra.mxu0 0.0
        %1656 = vmatprep.subr.mxu0 0.0
        %1657 = vmatpush2.msra.mxu0 0.0
        %1658 = vmatprep.subr.mxu0 0.0
        %1659 = vmatpush2.msra.mxu0 0.0
        %1660 = vmatprep.subr.mxu0 0.0
        %1661 = vmatpush2.msra.mxu0 0.0
        %1662 = vmatprep.subr.mxu0 0.0
        %1663 = vmatpush2.msra.mxu0 0.0
        %1664 = vmatprep.subr.mxu0 0.0
        %1665 = vmatpush2.msra.mxu0 0.0
        %1666 = vmatprep.subr.mxu0 0.0
        %1667 = vmatpush2.msra.mxu0 0.0
        %1668 = vmatprep.subr.mxu0 0.0
        %1669 = vmatpush2.msra.mxu0 0.0
        %1670 = vmatprep.subr.mxu0 0.0
        %1671 = vmatpush2.msra.mxu0 0.0
        %1672 = vmatprep.subr.mxu0 0.0
        %1673 = vmatpush2.msra.mxu0 0.0
        %1674 = vmatprep.subr.mxu0 0.0
        %1675 = vmatpush2.msra.mxu0 0.0
        %1676 = vmatprep.subr.mxu0 0.0
        %1677 = vmatpush2.msra.mxu0 0.0
        %1678 = vmatprep.subr.mxu0 0.0
        %1679 = vmatpush2.msra.mxu0 0.0
        %1680 = vmatprep.subr.mxu0 0.0
        %1681 = vmatpush2.msra.mxu0 0.0
        %1682 = vmatprep.subr.mxu0 0.0
        %1683 = vmatpush2.msra.mxu0 0.0
        %1684 = vmatprep.subr.mxu0 0.0
        %1685 = vmatpush2.msra.mxu0 0.0
        %1686 = vmatprep.mubr.f32.mxu0 0.0
        %1687 = vmatmul.mubr.f32.gmra.mxu0 %v1620
        %v1688 = vpop.f32.mrf.mxu0
        %v1689 = vadd.f32 %v1617, %v1688
        %v1690 = vpop.f32.mrf.mxu0
        %1691 = vdwg.mxu0
        %v1692 = vld [vmem:[%s11] sm:$0xff]
        %v1693 = vld [vmem:[%s11 + $0x8] sm:$0xff]
        %v1694 = vld [vmem:[%s11 + $0x10] sm:$0xff]
        %v1695 = vld [vmem:[%s11 + $0x18] sm:$0xff]
        %v1696 = vld [vmem:[#allocation13] sm:$0xff]
        %v1697 = vld [vmem:[#allocation13 + $0x8] sm:$0xff]
        %v1698 = vld [vmem:[#allocation13 + $0x10] sm:$0xff]
        %v1699 = vld [vmem:[#allocation13 + $0x18] sm:$0xff]
        %v1701 = vsel %vm694, %v1689, 0
        %1703 = vmatprep.subr.mxu0 0.0
        %1704 = vmatpush1.msra.mxu0 0.0
        %1705 = vmatprep.subr.mxu0 0.0
        %1706 = vmatpush1.msra.mxu0 0.0
        %1707 = vmatprep.subr.mxu0 0.0
        %1708 = vmatpush1.msra.mxu0 0.0
        %1709 = vmatprep.subr.mxu0 0.0
        %1710 = vmatpush1.msra.mxu0 0.0
        %1711 = vmatprep.subr.mxu0 0.0
        %1712 = vmatpush1.msra.mxu0 0.0
        %1713 = vmatprep.subr.mxu0 0.0
        %1714 = vmatpush1.msra.mxu0 0.0
        %1715 = vmatprep.subr.mxu0 0.0
        %1716 = vmatpush1.msra.mxu0 0.0
        %1717 = vmatprep.subr.mxu0 0.0
        %1718 = vmatpush1.msra.mxu0 0.0
        %1719 = vmatprep.subr.mxu0 0.0
        %1720 = vmatpush1.msra.mxu0 0.0
        %1721 = vmatprep.subr.mxu0 0.0
        %1722 = vmatpush1.msra.mxu0 0.0
        %1723 = vmatprep.subr.mxu0 0.0
        %1724 = vmatpush1.msra.mxu0 0.0
        %1725 = vmatprep.subr.mxu0 0.0
        %1726 = vmatpush1.msra.mxu0 0.0
        %1727 = vmatprep.subr.mxu0 0.0
        %1728 = vmatpush1.msra.mxu0 %v1699
        %1729 = vmatprep.subr.mxu0 0.0
        %1730 = vmatpush1.msra.mxu0 %v1698
        %1731 = vmatprep.subr.mxu0 0.0
        %1732 = vmatpush1.msra.mxu0 %v1697
        %1733 = vmatprep.subr.mxu0 0.0
        %1734 = vmatpush1.msra.mxu0 %v1696
        %1735 = vmatprep.subr.mxu0 0.0
        %1736 = vmatpush2.msra.mxu0 0.0
        %1737 = vmatprep.subr.mxu0 0.0
        %1738 = vmatpush2.msra.mxu0 0.0
        %1739 = vmatprep.subr.mxu0 0.0
        %1740 = vmatpush2.msra.mxu0 0.0
        %1741 = vmatprep.subr.mxu0 0.0
        %1742 = vmatpush2.msra.mxu0 0.0
        %1743 = vmatprep.subr.mxu0 0.0
        %1744 = vmatpush2.msra.mxu0 0.0
        %1745 = vmatprep.subr.mxu0 0.0
        %1746 = vmatpush2.msra.mxu0 0.0
        %1747 = vmatprep.subr.mxu0 0.0
        %1748 = vmatpush2.msra.mxu0 0.0
        %1749 = vmatprep.subr.mxu0 0.0
        %1750 = vmatpush2.msra.mxu0 0.0
        %1751 = vmatprep.subr.mxu0 0.0
        %1752 = vmatpush2.msra.mxu0 0.0
        %1753 = vmatprep.subr.mxu0 0.0
        %1754 = vmatpush2.msra.mxu0 0.0
        %1755 = vmatprep.subr.mxu0 0.0
        %1756 = vmatpush2.msra.mxu0 0.0
        %1757 = vmatprep.subr.mxu0 0.0
        %1758 = vmatpush2.msra.mxu0 0.0
        %1759 = vmatprep.subr.mxu0 0.0
        %1760 = vmatpush2.msra.mxu0 0.0
        %1761 = vmatprep.subr.mxu0 0.0
        %1762 = vmatpush2.msra.mxu0 0.0
        %1763 = vmatprep.subr.mxu0 0.0
        %1764 = vmatpush2.msra.mxu0 0.0
        %1765 = vmatprep.subr.mxu0 0.0
        %1766 = vmatpush2.msra.mxu0 0.0
        %1767 = vmatprep.mubr.f32.mxu0 0.0
        %1768 = vmatmul.mubr.f32.gmra.mxu0 %v1701
        %v1769 = vpop.f32.mrf.mxu0
        %v1770 = vadd.f32 0.0, %v1769
        %v1771 = vpop.f32.mrf.mxu0
        %1772 = vdwg.mxu0
        %1773 = vmatprep.subr.mxu0 0.0
        %1774 = vmatpush1.msra.mxu0 0.0
        %1775 = vmatprep.subr.mxu0 0.0
        %1776 = vmatpush1.msra.mxu0 0.0
        %1777 = vmatprep.subr.mxu0 0.0
        %1778 = vmatpush1.msra.mxu0 0.0
        %1779 = vmatprep.subr.mxu0 0.0
        %1780 = vmatpush1.msra.mxu0 0.0
        %1781 = vmatprep.subr.mxu0 0.0
        %1782 = vmatpush1.msra.mxu0 0.0
        %1783 = vmatprep.subr.mxu0 0.0
        %1784 = vmatpush1.msra.mxu0 0.0
        %1785 = vmatprep.subr.mxu0 0.0
        %1786 = vmatpush1.msra.mxu0 0.0
        %1787 = vmatprep.subr.mxu0 0.0
        %1788 = vmatpush1.msra.mxu0 0.0
        %1789 = vmatprep.subr.mxu0 0.0
        %1790 = vmatpush1.msra.mxu0 0.0
        %1791 = vmatprep.subr.mxu0 0.0
        %1792 = vmatpush1.msra.mxu0 0.0
        %1793 = vmatprep.subr.mxu0 0.0
        %1794 = vmatpush1.msra.mxu0 0.0
        %1795 = vmatprep.subr.mxu0 0.0
        %1796 = vmatpush1.msra.mxu0 0.0
        %1797 = vmatprep.subr.mxu0 0.0
        %1798 = vmatpush1.msra.mxu0 %v1695
        %1799 = vmatprep.subr.mxu0 0.0
        %1800 = vmatpush1.msra.mxu0 %v1694
        %1801 = vmatprep.subr.mxu0 0.0
        %1802 = vmatpush1.msra.mxu0 %v1693
        %1803 = vmatprep.subr.mxu0 0.0
        %1804 = vmatpush1.msra.mxu0 %v1692
        %1805 = vmatprep.subr.mxu0 0.0
        %1806 = vmatpush2.msra.mxu0 0.0
        %1807 = vmatprep.subr.mxu0 0.0
        %1808 = vmatpush2.msra.mxu0 0.0
        %1809 = vmatprep.subr.mxu0 0.0
        %1810 = vmatpush2.msra.mxu0 0.0
        %1811 = vmatprep.subr.mxu0 0.0
        %1812 = vmatpush2.msra.mxu0 0.0
        %1813 = vmatprep.subr.mxu0 0.0
        %1814 = vmatpush2.msra.mxu0 0.0
        %1815 = vmatprep.subr.mxu0 0.0
        %1816 = vmatpush2.msra.mxu0 0.0
        %1817 = vmatprep.subr.mxu0 0.0
        %1818 = vmatpush2.msra.mxu0 0.0
        %1819 = vmatprep.subr.mxu0 0.0
        %1820 = vmatpush2.msra.mxu0 0.0
        %1821 = vmatprep.subr.mxu0 0.0
        %1822 = vmatpush2.msra.mxu0 0.0
        %1823 = vmatprep.subr.mxu0 0.0
        %1824 = vmatpush2.msra.mxu0 0.0
        %1825 = vmatprep.subr.mxu0 0.0
        %1826 = vmatpush2.msra.mxu0 0.0
        %1827 = vmatprep.subr.mxu0 0.0
        %1828 = vmatpush2.msra.mxu0 0.0
        %1829 = vmatprep.subr.mxu0 0.0
        %1830 = vmatpush2.msra.mxu0 0.0
        %1831 = vmatprep.subr.mxu0 0.0
        %1832 = vmatpush2.msra.mxu0 0.0
        %1833 = vmatprep.subr.mxu0 0.0
        %1834 = vmatpush2.msra.mxu0 0.0
        %1835 = vmatprep.subr.mxu0 0.0
        %1836 = vmatpush2.msra.mxu0 0.0
        %1837 = vmatprep.mubr.f32.mxu0 0.0
        %1838 = vmatmul.mubr.f32.gmra.mxu0 %v696
        %v1839 = vpop.f32.mrf.mxu0
        %v1840 = vadd.f32 %v1770, %v1839
        %v1841 = vpop.f32.mrf.mxu0
        %1842 = vdwg.mxu0
        %v1843 = vld [vmem:[%s13] sm:$0x1]
        %v1845 = vlaneseq
        %v1846 = vshrl.u32 %v1845, 7
        %v1847 = vsub.s32 0, %v1846
        %v1848 = vrot.slane %v1843, %v1847
        %v1850 = vadd.f32 %v1840, %v1848
        %v1851 = vxor.u32 %v1850, 2147483648
        %v1852 = vmul.f32 %v1851, 1.442695
        %v1853 = vpow.pop %v1852
        %v1854 = vadd.f32 %v1853, 1.0
        %v1855 = vrcp.pop %v1854
        %v1856 = vmul.f32 1.0, %v1855
        %v1857 = vmul.f32 %v1856, %v1689
        %v1858 = vsub.f32 1.0, %v1856
        %v1859 = vmul.f32 %v1858, %v680
        %v1860 = vadd.f32 %v1857, %v1859
        %v1861 = vsel %vm694, %v1860, 0.0
        %1862 = vadd.xlane.f32.xlu0 %v1861
        %v1863 = vpop.xlane.xlu0 %1862
        %v1864 = vrcp.pop 32.0
        %v1865 = vmul.f32 %v1863, %v1864
        %v1866 = vsub.f32 %v1860, %v1865
        %v1867 = vmul.f32 %v1866, %v1866
        %v1868 = vsel %vm694, %v1867, 0.0
        %1869 = vadd.xlane.f32.xlu0 %v1868
        %v1870 = vpop.xlane.xlu0 %1869
        %v1871 = vmul.f32 %v1870, %v1864
        %v1872 = vadd.f32 %v1871, 1e-12
        %v1873 = vrsqrt.pop %v1872
        %v1874 = vmul.f32 %v1866, %v1873
        %v1875 = vld [vmem:[%s14] sm:$0x1]
        %v1877 = vlaneseq
        %v1878 = vshrl.u32 %v1877, 7
        %v1879 = vsub.s32 0, %v1878
        %v1880 = vrot.slane %v1875, %v1879
        %v1882 = vmul.f32 %v1874, %v1880
        %v1883 = vld [vmem:[%s15] sm:$0x1]
        %v1885 = vlaneseq
        %v1886 = vshrl.u32 %v1885, 7
        %v1887 = vsub.s32 0, %v1886
        %v1888 = vrot.slane %v1883, %v1887
        %v1890 = vadd.f32 %v1882, %v1888
        %1891 = vst.msk [vmem:[%s679] sm:$0xff] %vm694, %v1890
        %s1892 = sand.u32 %s415, 1
        %s1893 = scalar_lea.sflag [#allocation4], %s1892
        %s1894 = sand.u32 %s415, 1
        %s1895 = smul.addr %s1894, 8
        %s1896 = scalar_lea.vmem [#allocation14], %s1895
        // Predicated region
        $region113: #{tpu_custom_call.1} parent=83 // pred_check
          %p1897 = pneg %p425
        $region114: #{tpu_custom_call.1} parent=83 // pred_check_branch
          %1899 = sbr.rel (%p1897) target = $region116
        $region115: #{tpu_custom_call.1} parent=83 // pred_region
          %s1901 = ssub.s32 128, 128
          %1902 = vsyncadd %s1893, %s1901
          %s1903 = sadd.s32 %s43, %s42
          %s1904 = smul.addr %s1903, 128
          %s1905 = scalar_lea.hbm %s16, %s1904
          %s1907 = sshll.u32 %s1896, 4
          %s1908 = int_to_ptr.vmem [resolvable:$true] %s1907
          %1910 = dma.vmem_to_hbm [thread:$0]  %s1908, 128, %s1905, %s1893
        $region116: #{tpu_custom_call.1} parent=83 // pred_fallthru
          _
      $region84: #{tpu_custom_call.1} parent=5 // pred_fallthru
        _
      %p1911 = scmp.le.s32.totalorder 2, %s33
      // Predicated region
      $region117: #{tpu_custom_call.1} parent=5 // pred_check
        %p1912 = pneg %p1911
      $region118: #{tpu_custom_call.1} parent=5 // pred_check_branch
        %1914 = sbr.rel (%p1912) target = $region120
      $region119: #{tpu_custom_call.1} parent=5 // pred_region
        %s1915 = ssub.s32 %s33, 2
        // Predicated region
        $region121: #{tpu_custom_call.1} parent=119 // pred_check
          %p1916 = pneg %p431
        $region122: #{tpu_custom_call.1} parent=119 // pred_check_branch
          %1918 = sbr.rel (%p1916) target = $region124
        $region123: #{tpu_custom_call.1} parent=119 // pred_region
          %s1919 = sand.u32 %s416, 1
          %s1920 = scalar_lea.sflag [#allocation4], %s1919
          %s1921 = sand.u32 %s416, 1
          %s1922 = smul.addr %s1921, 8
          %s1923 = scalar_lea.vmem [#allocation14], %s1922
          %1924 = dma.done %s1920, 128
        $region124: #{tpu_custom_call.1} parent=119 // pred_fallthru
          _
      $region120: #{tpu_custom_call.1} parent=5 // pred_fallthru
        _
    $region6: #{tpu_custom_call.1} parent=1 // loop_footer
      %s37 = sadd.s32 1, %s33
    $region7: #{tpu_custom_call.1} parent=1 // loop_footer_branch
      %32 = sbr.rel target = $region3
    $region8: #{tpu_custom_call.1} parent=1 // loop_exit
      _
    %1925 = vsyncpa [#allocation3], 1
    %s1926 = scalar_lea.sflag [#allocation3], 1
    %1927 = vsyncpa %s1926, 1
    %1928 = vsyncpa [#allocation6], 1
    %s1929 = scalar_lea.sflag [#allocation6], 1
    %1930 = vsyncpa %s1929, 1
    %1931 = vsyncpa [#allocation9], 1
    %1932 = vsyncpa [#allocation12], 1
    %1933 = vsyncpa [#allocation4], 1
    %s1934 = scalar_lea.sflag [#allocation4], 1
    %1935 = vsyncpa %s1934, 1

</llo_original>
